<compile_context>
chip_gen: v5e
topology: v5e:2x2
jax: 0.10.0
libtpu: 0.0.40
codegen_flags: <defaults>
</compile_context>

<pallas_src>
import functools

import jax
import jax.numpy as jnp
from jax.experimental import pallas as pl
from jax.experimental.pallas import tpu as pltpu

SUBLANE = 8


# ---------------------------------------------------------------------------
# Fused kernel: (im2col conv + LSTM input proj) matmul -> LSTM recurrence -> Linear.
# ---------------------------------------------------------------------------
def crnn_fused_kernel(x_ref, wproj_ref, b0_ref, whh_ref, wclf_ref, bclf_ref,
                      o_ref, *, batch):
    # x:     (T*Bp, K*Cin)  im2col, row index = t*Bp + b  (Bp = padded batch, mult of 8)
    # wproj: (K*Cin, 4H)    fused conv+input-projection weight, gate order (i, f, g, o)
    # b0:    (1, 4H)        fused bias: conv_b @ W_ih^T + b_ih + b_hh
    # whh:   (4, H, H)      per-gate recurrent weights, whh[g] = W_hh[g*H:(g+1)*H].T
    # wclf:  (H, NC)        bclf: (1, NC)
    # o:     (Bp, NC)
    Bp = batch
    TB = x_ref.shape[0]
    T = TB // Bp
    H = whh_ref.shape[1]

    # --- Fused Conv1d + LSTM input projection: ONE MXU matmul for all timesteps. ---
    gx = jnp.dot(x_ref[...], wproj_ref[...],
                 preferred_element_type=jnp.float32) + b0_ref[...]       # (T*Bp, 4H)

    # --- Per-gate lane-aligned slabs, sliced ONCE outside the recurrence. ---
    gxi = gx[:, 0 * H:1 * H]
    gxf = gx[:, 1 * H:2 * H]
    gxg = gx[:, 2 * H:3 * H]
    gxo = gx[:, 3 * H:4 * H]

    whh_i = whh_ref[0]
    whh_f = whh_ref[1]
    whh_g = whh_ref[2]
    whh_o = whh_ref[3]

    # --- t = 0 peeled: h = c = 0 -> no h @ W_hh matmuls, f-gate irrelevant. ---
    i0 = jax.nn.sigmoid(gxi[0:Bp])
    g0 = jnp.tanh(gxg[0:Bp])
    o0 = jax.nn.sigmoid(gxo[0:Bp])
    c = i0 * g0
    h = o0 * jnp.tanh(c)

    # --- Serial recurrence (T-1 remaining steps, fully unrolled; T is static). ---
    for t in range(1, T):
        r0 = t * Bp                                # multiple of 8 -> sublane aligned
        gi = jax.nn.sigmoid(
            gxi[r0:r0 + Bp] + jnp.dot(h, whh_i, preferred_element_type=jnp.float32))
        gf = jax.nn.sigmoid(
            gxf[r0:r0 + Bp] + jnp.dot(h, whh_f, preferred_element_type=jnp.float32))
        gg = jnp.tanh(
            gxg[r0:r0 + Bp] + jnp.dot(h, whh_g, preferred_element_type=jnp.float32))
        go = jax.nn.sigmoid(
            gxo[r0:r0 + Bp] + jnp.dot(h, whh_o, preferred_element_type=jnp.float32))
        c = gf * c + gi * gg
        h = go * jnp.tanh(c)

    # --- Classifier on the last timestep's hidden state. ---
    o_ref[...] = jnp.dot(h, wclf_ref[...],
                         preferred_element_type=jnp.float32) + bclf_ref[...]


# ---------------------------------------------------------------------------
# One-time parameter repacking / weight fusion (do NOT redo per forward call).
# ---------------------------------------------------------------------------
def pack_params(params):
    conv_w = params["conv_w"]                    # (Cout, Cin, K)
    wih_t = params["w_ih"].T                     # (Cout, 4H), gate order (i, f, g, o)
    Cout, Cin, K = conv_w.shape
    H = params["w_hh"].shape[1]

    # Fold the conv into the LSTM input projection: per-tap (Cin, 4H) blocks.
    w_proj = jnp.concatenate(
        [conv_w[:, :, k].T @ wih_t for k in range(K)], axis=0)          # (K*Cin, 4H)
    b0 = (params["conv_b"] @ wih_t + params["b_ih"] + params["b_hh"])[None, :]

    # Split the recurrent weight into four lane-aligned per-gate (H, H) blocks.
    w_hh = params["w_hh"]                                               # (4H, H)
    whh_blocks = jnp.stack(
        [w_hh[g * H:(g + 1) * H, :].T for g in range(4)], axis=0)       # (4, H, H)

    return {
        "w_proj": w_proj,
        "b0": b0,
        "w_hh": whh_blocks,
        "w_clf": params["w_clf"].T,                                     # (H, NC)
        "b_clf": params["b_clf"][None, :],                              # (1, NC)
        "kernel_size": K,
    }


# ---------------------------------------------------------------------------
# Forward: im2col + batch pad (pure layout plumbing), then one fused pallas_call.
# ---------------------------------------------------------------------------
@functools.partial(jax.jit, static_argnames=("kernel_size",))
def _crnn_forward_impl(x_bcl, w_proj, b0, w_hh, w_clf, b_clf, *, kernel_size):
    B, Cin, L = x_bcl.shape
    K = kernel_size
    T = L - K + 1
    assert T >= 1, "sequence too short for the conv kernel"
    NC = w_clf.shape[1]
    Bp = ((B + SUBLANE - 1) // SUBLANE) * SUBLANE        # pad batch to sublane width

    # (B, Cin, L) -> time-major (L, Bp, Cin), zero-padded batch.
    x_lbc = jnp.transpose(x_bcl, (2, 0, 1))
    if Bp != B:
        x_lbc = jnp.pad(x_lbc, ((0, 0), (0, Bp - B), (0, 0)))
    # im2col: row (t*Bp + b) holds [x[t], x[t+1], ..., x[t+K-1]] channels concatenated.
    cols = jnp.concatenate([x_lbc[k:k + T] for k in range(K)], axis=-1)  # (T, Bp, K*Cin)
    x2d = cols.reshape(T * Bp, K * Cin)

    kernel = functools.partial(crnn_fused_kernel, batch=Bp)
    out_padded = pl.pallas_call(
        kernel,
        out_shape=jax.ShapeDtypeStruct((Bp, NC), jnp.float32),
        in_specs=[pl.BlockSpec(memory_space=pltpu.MemorySpace.VMEM)] * 6,
        out_specs=pl.BlockSpec(memory_space=pltpu.MemorySpace.VMEM),
    )(x2d, w_proj, b0, w_hh, w_clf, b_clf)
    return out_padded[:B]


def crnn_forward(x_bcl, packed):
    return _crnn_forward_impl(
        x_bcl, packed["w_proj"], packed["b0"], packed["w_hh"],
        packed["w_clf"], packed["b_clf"], kernel_size=int(packed["kernel_size"]))


# ---------------------------------------------------------------------------
# Pure-JAX reference (mirrors PyTorch semantics, full f32 matmuls).
# ---------------------------------------------------------------------------
def crnn_reference(x_bcl, params):
    B, Cin, L = x_bcl.shape
    Cout, _, K = params["conv_w"].shape
    H = params["w_hh"].shape[1]
    Lout = L - K + 1
    with jax.default_matmul_precision("float32"):
        x_blc = jnp.transpose(x_bcl, (0, 2, 1))
        feat = jnp.zeros((B, Lout, Cout), jnp.float32)
        for k in range(K):
            feat = feat + x_blc[:, k:k + Lout, :] @ params["conv_w"][:, :, k].T
        feat = feat + params["conv_b"]
        h = jnp.zeros((B, H), jnp.float32)
        c = jnp.zeros((B, H), jnp.float32)
        for t in range(Lout):
            gates = (feat[:, t, :] @ params["w_ih"].T + h @ params["w_hh"].T
                     + params["b_ih"] + params["b_hh"])
            i = jax.nn.sigmoid(gates[:, 0 * H:1 * H])
            f = jax.nn.sigmoid(gates[:, 1 * H:2 * H])
            g = jnp.tanh(gates[:, 2 * H:3 * H])
            o = jax.nn.sigmoid(gates[:, 3 * H:4 * H])
            c = f * c + i * g
            h = o * jnp.tanh(c)
        return h @ params["w_clf"].T + params["b_clf"]


if __name__ == "__main__":
    # Small, forward-consistent shapes.
    B, C_in, L = 2, 4, 16          # Conv1d input (NCL)
    C_out, K = 8, 3                # cnn_cfg: Conv1d(4 -> 8, kernel_size=3)
    H = 32                         # rnn_cfg: LSTM(input_size=8, hidden_size=32, batch_first)
    NC = 4                         # clf: Linear(32 -> 4)

    key = jax.random.PRNGKey(0)
    ks = jax.random.split(key, 10)

    def u(k, shape, fan_in):
        bound = 1.0 / jnp.sqrt(jnp.float32(fan_in))
        return jax.random.uniform(k, shape, jnp.float32, -bound, bound)

    params = {
        "conv_w": u(ks[0], (C_out, C_in, K), C_in * K),
        "conv_b": u(ks[1], (C_out,), C_in * K),
        "w_ih":   u(ks[2], (4 * H, C_out), H),
        "w_hh":   u(ks[3], (4 * H, H), H),
        "b_ih":   u(ks[4], (4 * H,), H),
        "b_hh":   u(ks[5], (4 * H,), H),
        "w_clf":  u(ks[6], (NC, H), H),
        "b_clf":  u(ks[7], (NC,), H),
    }
    x = jax.random.normal(ks[8], (B, C_in, L), jnp.float32)

    packed = pack_params(params)   # one-time weight fusion / repacking

    out = jax.block_until_ready(crnn_forward(x, packed))
    ref = jax.block_until_ready(crnn_reference(x, params))

    assert out.shape == (B, NC), out.shape
    # f32-level tolerance; catches any gate-split / weight-fusion / layout bug.
    assert jnp.allclose(out, ref, atol=2e-5, rtol=2e-5), (
        out, ref, jnp.abs(out - ref).max())
    print("KERNEL_OK")
</pallas_src>

<mosaic_0001>
module attributes {stable_mosaic.version = 11 : i64} {
  func.func @crnn_fused_kernel(%arg0: memref<112x12xf32, #tpu.memory_space<vmem>>, %arg1: memref<12x128xf32, #tpu.memory_space<vmem>>, %arg2: memref<1x128xf32, #tpu.memory_space<vmem>>, %arg3: memref<4x32x32xf32, #tpu.memory_space<vmem>>, %arg4: memref<32x4xf32, #tpu.memory_space<vmem>>, %arg5: memref<1x4xf32, #tpu.memory_space<vmem>>, %arg6: memref<8x4xf32, #tpu.memory_space<vmem>>) attributes {dimension_semantics = [], scalar_prefetch = 0 : i64, scratch_operands = 0 : i64, tpu.core_type = #tpu.core_type<tc>} {
    %c0 = arith.constant 0 : index
    %c0_0 = arith.constant 0 : index
    %0 = vector.load %arg0[%c0, %c0_0] : memref<112x12xf32, #tpu.memory_space<vmem>>, vector<112x12xf32>
    %c0_1 = arith.constant 0 : index
    %c0_2 = arith.constant 0 : index
    %1 = vector.load %arg1[%c0_1, %c0_2] : memref<12x128xf32, #tpu.memory_space<vmem>>, vector<12x128xf32>
    %cst = arith.constant dense<0.000000e+00> : vector<112x128xf32>
    %2 = tpu.matmul %0, %1, %cst {dimension_numbers = #tpu.dot_dimension_numbers<[1], [0], [0], [1], [0, 0, 1, 1], [], []>} : vector<112x12xf32>, vector<12x128xf32>, vector<112x128xf32> -> vector<112x128xf32>
    %c0_3 = arith.constant 0 : index
    %c0_4 = arith.constant 0 : index
    %3 = vector.load %arg2[%c0_3, %c0_4] : memref<1x128xf32, #tpu.memory_space<vmem>>, vector<1x128xf32>
    %4 = vector.broadcast %3 : vector<1x128xf32> to vector<112x128xf32>
    %5 = arith.addf %2, %4 : vector<112x128xf32>
    %6 = vector.extract_strided_slice %5 {offsets = [0, 0], sizes = [112, 32], strides = [1, 1]} : vector<112x128xf32> to vector<112x32xf32>
    %7 = vector.extract_strided_slice %5 {offsets = [0, 32], sizes = [112, 32], strides = [1, 1]} : vector<112x128xf32> to vector<112x32xf32>
    %8 = vector.extract_strided_slice %5 {offsets = [0, 64], sizes = [112, 32], strides = [1, 1]} : vector<112x128xf32> to vector<112x32xf32>
    %9 = vector.extract_strided_slice %5 {offsets = [0, 96], sizes = [112, 32], strides = [1, 1]} : vector<112x128xf32> to vector<112x32xf32>
    %c0_5 = arith.constant 0 : index
    %c0_6 = arith.constant 0 : index
    %c0_7 = arith.constant 0 : index
    %10 = vector.load %arg3[%c0_5, %c0_6, %c0_7] : memref<4x32x32xf32, #tpu.memory_space<vmem>>, vector<1x32x32xf32>
    %11 = vector.shape_cast %10 : vector<1x32x32xf32> to vector<32x32xf32>
    %c1 = arith.constant 1 : index
    %c0_8 = arith.constant 0 : index
    %c0_9 = arith.constant 0 : index
    %12 = vector.load %arg3[%c1, %c0_8, %c0_9] : memref<4x32x32xf32, #tpu.memory_space<vmem>>, vector<1x32x32xf32>
    %13 = vector.shape_cast %12 : vector<1x32x32xf32> to vector<32x32xf32>
    %c2 = arith.constant 2 : index
    %c0_10 = arith.constant 0 : index
    %c0_11 = arith.constant 0 : index
    %14 = vector.load %arg3[%c2, %c0_10, %c0_11] : memref<4x32x32xf32, #tpu.memory_space<vmem>>, vector<1x32x32xf32>
    %15 = vector.shape_cast %14 : vector<1x32x32xf32> to vector<32x32xf32>
    %c3 = arith.constant 3 : index
    %c0_12 = arith.constant 0 : index
    %c0_13 = arith.constant 0 : index
    %16 = vector.load %arg3[%c3, %c0_12, %c0_13] : memref<4x32x32xf32, #tpu.memory_space<vmem>>, vector<1x32x32xf32>
    %17 = vector.shape_cast %16 : vector<1x32x32xf32> to vector<32x32xf32>
    %18 = vector.extract_strided_slice %6 {offsets = [0, 0], sizes = [8, 32], strides = [1, 1]} : vector<112x32xf32> to vector<8x32xf32>
    %19 = arith.negf %18 : vector<8x32xf32>
    %20 = math.exp %19 : vector<8x32xf32>
    %cst_14 = arith.constant 1.000000e+00 : f32
    %21 = vector.broadcast %cst_14 : f32 to vector<8x32xf32>
    %22 = arith.addf %21, %20 : vector<8x32xf32>
    %23 = arith.divf %21, %22 : vector<8x32xf32>
    %24 = vector.extract_strided_slice %8 {offsets = [0, 0], sizes = [8, 32], strides = [1, 1]} : vector<112x32xf32> to vector<8x32xf32>
    %25 = math.tanh %24 : vector<8x32xf32>
    %26 = vector.extract_strided_slice %9 {offsets = [0, 0], sizes = [8, 32], strides = [1, 1]} : vector<112x32xf32> to vector<8x32xf32>
    %27 = arith.negf %26 : vector<8x32xf32>
    %28 = math.exp %27 : vector<8x32xf32>
    %cst_15 = arith.constant 1.000000e+00 : f32
    %29 = vector.broadcast %cst_15 : f32 to vector<8x32xf32>
    %30 = arith.addf %29, %28 : vector<8x32xf32>
    %31 = arith.divf %29, %30 : vector<8x32xf32>
    %32 = arith.mulf %23, %25 : vector<8x32xf32>
    %33 = math.tanh %32 : vector<8x32xf32>
    %34 = arith.mulf %31, %33 : vector<8x32xf32>
    %35 = vector.extract_strided_slice %6 {offsets = [8, 0], sizes = [8, 32], strides = [1, 1]} : vector<112x32xf32> to vector<8x32xf32>
    %cst_16 = arith.constant dense<0.000000e+00> : vector<8x32xf32>
    %36 = tpu.matmul %34, %11, %cst_16 {dimension_numbers = #tpu.dot_dimension_numbers<[1], [0], [0], [1], [0, 0, 1, 1], [], []>} : vector<8x32xf32>, vector<32x32xf32>, vector<8x32xf32> -> vector<8x32xf32>
    %37 = arith.addf %35, %36 : vector<8x32xf32>
    %38 = arith.negf %37 : vector<8x32xf32>
    %39 = math.exp %38 : vector<8x32xf32>
    %cst_17 = arith.constant 1.000000e+00 : f32
    %40 = vector.broadcast %cst_17 : f32 to vector<8x32xf32>
    %41 = arith.addf %40, %39 : vector<8x32xf32>
    %42 = arith.divf %40, %41 : vector<8x32xf32>
    %43 = vector.extract_strided_slice %7 {offsets = [8, 0], sizes = [8, 32], strides = [1, 1]} : vector<112x32xf32> to vector<8x32xf32>
    %cst_18 = arith.constant dense<0.000000e+00> : vector<8x32xf32>
    %44 = tpu.matmul %34, %13, %cst_18 {dimension_numbers = #tpu.dot_dimension_numbers<[1], [0], [0], [1], [0, 0, 1, 1], [], []>} : vector<8x32xf32>, vector<32x32xf32>, vector<8x32xf32> -> vector<8x32xf32>
    %45 = arith.addf %43, %44 : vector<8x32xf32>
    %46 = arith.negf %45 : vector<8x32xf32>
    %47 = math.exp %46 : vector<8x32xf32>
    %cst_19 = arith.constant 1.000000e+00 : f32
    %48 = vector.broadcast %cst_19 : f32 to vector<8x32xf32>
    %49 = arith.addf %48, %47 : vector<8x32xf32>
    %50 = arith.divf %48, %49 : vector<8x32xf32>
    %51 = vector.extract_strided_slice %8 {offsets = [8, 0], sizes = [8, 32], strides = [1, 1]} : vector<112x32xf32> to vector<8x32xf32>
    %cst_20 = arith.constant dense<0.000000e+00> : vector<8x32xf32>
    %52 = tpu.matmul %34, %15, %cst_20 {dimension_numbers = #tpu.dot_dimension_numbers<[1], [0], [0], [1], [0, 0, 1, 1], [], []>} : vector<8x32xf32>, vector<32x32xf32>, vector<8x32xf32> -> vector<8x32xf32>
    %53 = arith.addf %51, %52 : vector<8x32xf32>
    %54 = math.tanh %53 : vector<8x32xf32>
    %55 = vector.extract_strided_slice %9 {offsets = [8, 0], sizes = [8, 32], strides = [1, 1]} : vector<112x32xf32> to vector<8x32xf32>
    %cst_21 = arith.constant dense<0.000000e+00> : vector<8x32xf32>
    %56 = tpu.matmul %34, %17, %cst_21 {dimension_numbers = #tpu.dot_dimension_numbers<[1], [0], [0], [1], [0, 0, 1, 1], [], []>} : vector<8x32xf32>, vector<32x32xf32>, vector<8x32xf32> -> vector<8x32xf32>
    %57 = arith.addf %55, %56 : vector<8x32xf32>
    %58 = arith.negf %57 : vector<8x32xf32>
    %59 = math.exp %58 : vector<8x32xf32>
    %cst_22 = arith.constant 1.000000e+00 : f32
    %60 = vector.broadcast %cst_22 : f32 to vector<8x32xf32>
    %61 = arith.addf %60, %59 : vector<8x32xf32>
    %62 = arith.divf %60, %61 : vector<8x32xf32>
    %63 = arith.mulf %50, %32 : vector<8x32xf32>
    %64 = arith.mulf %42, %54 : vector<8x32xf32>
    %65 = arith.addf %63, %64 : vector<8x32xf32>
    %66 = math.tanh %65 : vector<8x32xf32>
    %67 = arith.mulf %62, %66 : vector<8x32xf32>
    %68 = vector.extract_strided_slice %6 {offsets = [16, 0], sizes = [8, 32], strides = [1, 1]} : vector<112x32xf32> to vector<8x32xf32>
    %cst_23 = arith.constant dense<0.000000e+00> : vector<8x32xf32>
    %69 = tpu.matmul %67, %11, %cst_23 {dimension_numbers = #tpu.dot_dimension_numbers<[1], [0], [0], [1], [0, 0, 1, 1], [], []>} : vector<8x32xf32>, vector<32x32xf32>, vector<8x32xf32> -> vector<8x32xf32>
    %70 = arith.addf %68, %69 : vector<8x32xf32>
    %71 = arith.negf %70 : vector<8x32xf32>
    %72 = math.exp %71 : vector<8x32xf32>
    %cst_24 = arith.constant 1.000000e+00 : f32
    %73 = vector.broadcast %cst_24 : f32 to vector<8x32xf32>
    %74 = arith.addf %73, %72 : vector<8x32xf32>
    %75 = arith.divf %73, %74 : vector<8x32xf32>
    %76 = vector.extract_strided_slice %7 {offsets = [16, 0], sizes = [8, 32], strides = [1, 1]} : vector<112x32xf32> to vector<8x32xf32>
    %cst_25 = arith.constant dense<0.000000e+00> : vector<8x32xf32>
    %77 = tpu.matmul %67, %13, %cst_25 {dimension_numbers = #tpu.dot_dimension_numbers<[1], [0], [0], [1], [0, 0, 1, 1], [], []>} : vector<8x32xf32>, vector<32x32xf32>, vector<8x32xf32> -> vector<8x32xf32>
    %78 = arith.addf %76, %77 : vector<8x32xf32>
    %79 = arith.negf %78 : vector<8x32xf32>
    %80 = math.exp %79 : vector<8x32xf32>
    %cst_26 = arith.constant 1.000000e+00 : f32
    %81 = vector.broadcast %cst_26 : f32 to vector<8x32xf32>
    %82 = arith.addf %81, %80 : vector<8x32xf32>
    %83 = arith.divf %81, %82 : vector<8x32xf32>
    %84 = vector.extract_strided_slice %8 {offsets = [16, 0], sizes = [8, 32], strides = [1, 1]} : vector<112x32xf32> to vector<8x32xf32>
    %cst_27 = arith.constant dense<0.000000e+00> : vector<8x32xf32>
    %85 = tpu.matmul %67, %15, %cst_27 {dimension_numbers = #tpu.dot_dimension_numbers<[1], [0], [0], [1], [0, 0, 1, 1], [], []>} : vector<8x32xf32>, vector<32x32xf32>, vector<8x32xf32> -> vector<8x32xf32>
    %86 = arith.addf %84, %85 : vector<8x32xf32>
    %87 = math.tanh %86 : vector<8x32xf32>
    %88 = vector.extract_strided_slice %9 {offsets = [16, 0], sizes = [8, 32], strides = [1, 1]} : vector<112x32xf32> to vector<8x32xf32>
    %cst_28 = arith.constant dense<0.000000e+00> : vector<8x32xf32>
    %89 = tpu.matmul %67, %17, %cst_28 {dimension_numbers = #tpu.dot_dimension_numbers<[1], [0], [0], [1], [0, 0, 1, 1], [], []>} : vector<8x32xf32>, vector<32x32xf32>, vector<8x32xf32> -> vector<8x32xf32>
    %90 = arith.addf %88, %89 : vector<8x32xf32>
    %91 = arith.negf %90 : vector<8x32xf32>
    %92 = math.exp %91 : vector<8x32xf32>
    %cst_29 = arith.constant 1.000000e+00 : f32
    %93 = vector.broadcast %cst_29 : f32 to vector<8x32xf32>
    %94 = arith.addf %93, %92 : vector<8x32xf32>
    %95 = arith.divf %93, %94 : vector<8x32xf32>
    %96 = arith.mulf %83, %65 : vector<8x32xf32>
    %97 = arith.mulf %75, %87 : vector<8x32xf32>
    %98 = arith.addf %96, %97 : vector<8x32xf32>
    %99 = math.tanh %98 : vector<8x32xf32>
    %100 = arith.mulf %95, %99 : vector<8x32xf32>
    %101 = vector.extract_strided_slice %6 {offsets = [24, 0], sizes = [8, 32], strides = [1, 1]} : vector<112x32xf32> to vector<8x32xf32>
    %cst_30 = arith.constant dense<0.000000e+00> : vector<8x32xf32>
    %102 = tpu.matmul %100, %11, %cst_30 {dimension_numbers = #tpu.dot_dimension_numbers<[1], [0], [0], [1], [0, 0, 1, 1], [], []>} : vector<8x32xf32>, vector<32x32xf32>, vector<8x32xf32> -> vector<8x32xf32>
    %103 = arith.addf %101, %102 : vector<8x32xf32>
    %104 = arith.negf %103 : vector<8x32xf32>
    %105 = math.exp %104 : vector<8x32xf32>
    %cst_31 = arith.constant 1.000000e+00 : f32
    %106 = vector.broadcast %cst_31 : f32 to vector<8x32xf32>
    %107 = arith.addf %106, %105 : vector<8x32xf32>
    %108 = arith.divf %106, %107 : vector<8x32xf32>
    %109 = vector.extract_strided_slice %7 {offsets = [24, 0], sizes = [8, 32], strides = [1, 1]} : vector<112x32xf32> to vector<8x32xf32>
    %cst_32 = arith.constant dense<0.000000e+00> : vector<8x32xf32>
    %110 = tpu.matmul %100, %13, %cst_32 {dimension_numbers = #tpu.dot_dimension_numbers<[1], [0], [0], [1], [0, 0, 1, 1], [], []>} : vector<8x32xf32>, vector<32x32xf32>, vector<8x32xf32> -> vector<8x32xf32>
    %111 = arith.addf %109, %110 : vector<8x32xf32>
    %112 = arith.negf %111 : vector<8x32xf32>
    %113 = math.exp %112 : vector<8x32xf32>
    %cst_33 = arith.constant 1.000000e+00 : f32
    %114 = vector.broadcast %cst_33 : f32 to vector<8x32xf32>
    %115 = arith.addf %114, %113 : vector<8x32xf32>
    %116 = arith.divf %114, %115 : vector<8x32xf32>
    %117 = vector.extract_strided_slice %8 {offsets = [24, 0], sizes = [8, 32], strides = [1, 1]} : vector<112x32xf32> to vector<8x32xf32>
    %cst_34 = arith.constant dense<0.000000e+00> : vector<8x32xf32>
    %118 = tpu.matmul %100, %15, %cst_34 {dimension_numbers = #tpu.dot_dimension_numbers<[1], [0], [0], [1], [0, 0, 1, 1], [], []>} : vector<8x32xf32>, vector<32x32xf32>, vector<8x32xf32> -> vector<8x32xf32>
    %119 = arith.addf %117, %118 : vector<8x32xf32>
    %120 = math.tanh %119 : vector<8x32xf32>
    %121 = vector.extract_strided_slice %9 {offsets = [24, 0], sizes = [8, 32], strides = [1, 1]} : vector<112x32xf32> to vector<8x32xf32>
    %cst_35 = arith.constant dense<0.000000e+00> : vector<8x32xf32>
    %122 = tpu.matmul %100, %17, %cst_35 {dimension_numbers = #tpu.dot_dimension_numbers<[1], [0], [0], [1], [0, 0, 1, 1], [], []>} : vector<8x32xf32>, vector<32x32xf32>, vector<8x32xf32> -> vector<8x32xf32>
    %123 = arith.addf %121, %122 : vector<8x32xf32>
    %124 = arith.negf %123 : vector<8x32xf32>
    %125 = math.exp %124 : vector<8x32xf32>
    %cst_36 = arith.constant 1.000000e+00 : f32
    %126 = vector.broadcast %cst_36 : f32 to vector<8x32xf32>
    %127 = arith.addf %126, %125 : vector<8x32xf32>
    %128 = arith.divf %126, %127 : vector<8x32xf32>
    %129 = arith.mulf %116, %98 : vector<8x32xf32>
    %130 = arith.mulf %108, %120 : vector<8x32xf32>
    %131 = arith.addf %129, %130 : vector<8x32xf32>
    %132 = math.tanh %131 : vector<8x32xf32>
    %133 = arith.mulf %128, %132 : vector<8x32xf32>
    %134 = vector.extract_strided_slice %6 {offsets = [32, 0], sizes = [8, 32], strides = [1, 1]} : vector<112x32xf32> to vector<8x32xf32>
    %cst_37 = arith.constant dense<0.000000e+00> : vector<8x32xf32>
    %135 = tpu.matmul %133, %11, %cst_37 {dimension_numbers = #tpu.dot_dimension_numbers<[1], [0], [0], [1], [0, 0, 1, 1], [], []>} : vector<8x32xf32>, vector<32x32xf32>, vector<8x32xf32> -> vector<8x32xf32>
    %136 = arith.addf %134, %135 : vector<8x32xf32>
    %137 = arith.negf %136 : vector<8x32xf32>
    %138 = math.exp %137 : vector<8x32xf32>
    %cst_38 = arith.constant 1.000000e+00 : f32
    %139 = vector.broadcast %cst_38 : f32 to vector<8x32xf32>
    %140 = arith.addf %139, %138 : vector<8x32xf32>
    %141 = arith.divf %139, %140 : vector<8x32xf32>
    %142 = vector.extract_strided_slice %7 {offsets = [32, 0], sizes = [8, 32], strides = [1, 1]} : vector<112x32xf32> to vector<8x32xf32>
    %cst_39 = arith.constant dense<0.000000e+00> : vector<8x32xf32>
    %143 = tpu.matmul %133, %13, %cst_39 {dimension_numbers = #tpu.dot_dimension_numbers<[1], [0], [0], [1], [0, 0, 1, 1], [], []>} : vector<8x32xf32>, vector<32x32xf32>, vector<8x32xf32> -> vector<8x32xf32>
    %144 = arith.addf %142, %143 : vector<8x32xf32>
    %145 = arith.negf %144 : vector<8x32xf32>
    %146 = math.exp %145 : vector<8x32xf32>
    %cst_40 = arith.constant 1.000000e+00 : f32
    %147 = vector.broadcast %cst_40 : f32 to vector<8x32xf32>
    %148 = arith.addf %147, %146 : vector<8x32xf32>
    %149 = arith.divf %147, %148 : vector<8x32xf32>
    %150 = vector.extract_strided_slice %8 {offsets = [32, 0], sizes = [8, 32], strides = [1, 1]} : vector<112x32xf32> to vector<8x32xf32>
    %cst_41 = arith.constant dense<0.000000e+00> : vector<8x32xf32>
    %151 = tpu.matmul %133, %15, %cst_41 {dimension_numbers = #tpu.dot_dimension_numbers<[1], [0], [0], [1], [0, 0, 1, 1], [], []>} : vector<8x32xf32>, vector<32x32xf32>, vector<8x32xf32> -> vector<8x32xf32>
    %152 = arith.addf %150, %151 : vector<8x32xf32>
    %153 = math.tanh %152 : vector<8x32xf32>
    %154 = vector.extract_strided_slice %9 {offsets = [32, 0], sizes = [8, 32], strides = [1, 1]} : vector<112x32xf32> to vector<8x32xf32>
    %cst_42 = arith.constant dense<0.000000e+00> : vector<8x32xf32>
    %155 = tpu.matmul %133, %17, %cst_42 {dimension_numbers = #tpu.dot_dimension_numbers<[1], [0], [0], [1], [0, 0, 1, 1], [], []>} : vector<8x32xf32>, vector<32x32xf32>, vector<8x32xf32> -> vector<8x32xf32>
    %156 = arith.addf %154, %155 : vector<8x32xf32>
    %157 = arith.negf %156 : vector<8x32xf32>
    %158 = math.exp %157 : vector<8x32xf32>
    %cst_43 = arith.constant 1.000000e+00 : f32
    %159 = vector.broadcast %cst_43 : f32 to vector<8x32xf32>
    %160 = arith.addf %159, %158 : vector<8x32xf32>
    %161 = arith.divf %159, %160 : vector<8x32xf32>
    %162 = arith.mulf %149, %131 : vector<8x32xf32>
    %163 = arith.mulf %141, %153 : vector<8x32xf32>
    %164 = arith.addf %162, %163 : vector<8x32xf32>
    %165 = math.tanh %164 : vector<8x32xf32>
    %166 = arith.mulf %161, %165 : vector<8x32xf32>
    %167 = vector.extract_strided_slice %6 {offsets = [40, 0], sizes = [8, 32], strides = [1, 1]} : vector<112x32xf32> to vector<8x32xf32>
    %cst_44 = arith.constant dense<0.000000e+00> : vector<8x32xf32>
    %168 = tpu.matmul %166, %11, %cst_44 {dimension_numbers = #tpu.dot_dimension_numbers<[1], [0], [0], [1], [0, 0, 1, 1], [], []>} : vector<8x32xf32>, vector<32x32xf32>, vector<8x32xf32> -> vector<8x32xf32>
    %169 = arith.addf %167, %168 : vector<8x32xf32>
    %170 = arith.negf %169 : vector<8x32xf32>
    %171 = math.exp %170 : vector<8x32xf32>
    %cst_45 = arith.constant 1.000000e+00 : f32
    %172 = vector.broadcast %cst_45 : f32 to vector<8x32xf32>
    %173 = arith.addf %172, %171 : vector<8x32xf32>
    %174 = arith.divf %172, %173 : vector<8x32xf32>
    %175 = vector.extract_strided_slice %7 {offsets = [40, 0], sizes = [8, 32], strides = [1, 1]} : vector<112x32xf32> to vector<8x32xf32>
    %cst_46 = arith.constant dense<0.000000e+00> : vector<8x32xf32>
    %176 = tpu.matmul %166, %13, %cst_46 {dimension_numbers = #tpu.dot_dimension_numbers<[1], [0], [0], [1], [0, 0, 1, 1], [], []>} : vector<8x32xf32>, vector<32x32xf32>, vector<8x32xf32> -> vector<8x32xf32>
    %177 = arith.addf %175, %176 : vector<8x32xf32>
    %178 = arith.negf %177 : vector<8x32xf32>
    %179 = math.exp %178 : vector<8x32xf32>
    %cst_47 = arith.constant 1.000000e+00 : f32
    %180 = vector.broadcast %cst_47 : f32 to vector<8x32xf32>
    %181 = arith.addf %180, %179 : vector<8x32xf32>
    %182 = arith.divf %180, %181 : vector<8x32xf32>
    %183 = vector.extract_strided_slice %8 {offsets = [40, 0], sizes = [8, 32], strides = [1, 1]} : vector<112x32xf32> to vector<8x32xf32>
    %cst_48 = arith.constant dense<0.000000e+00> : vector<8x32xf32>
    %184 = tpu.matmul %166, %15, %cst_48 {dimension_numbers = #tpu.dot_dimension_numbers<[1], [0], [0], [1], [0, 0, 1, 1], [], []>} : vector<8x32xf32>, vector<32x32xf32>, vector<8x32xf32> -> vector<8x32xf32>
    %185 = arith.addf %183, %184 : vector<8x32xf32>
    %186 = math.tanh %185 : vector<8x32xf32>
    %187 = vector.extract_strided_slice %9 {offsets = [40, 0], sizes = [8, 32], strides = [1, 1]} : vector<112x32xf32> to vector<8x32xf32>
    %cst_49 = arith.constant dense<0.000000e+00> : vector<8x32xf32>
    %188 = tpu.matmul %166, %17, %cst_49 {dimension_numbers = #tpu.dot_dimension_numbers<[1], [0], [0], [1], [0, 0, 1, 1], [], []>} : vector<8x32xf32>, vector<32x32xf32>, vector<8x32xf32> -> vector<8x32xf32>
    %189 = arith.addf %187, %188 : vector<8x32xf32>
    %190 = arith.negf %189 : vector<8x32xf32>
    %191 = math.exp %190 : vector<8x32xf32>
    %cst_50 = arith.constant 1.000000e+00 : f32
    %192 = vector.broadcast %cst_50 : f32 to vector<8x32xf32>
    %193 = arith.addf %192, %191 : vector<8x32xf32>
    %194 = arith.divf %192, %193 : vector<8x32xf32>
    %195 = arith.mulf %182, %164 : vector<8x32xf32>
    %196 = arith.mulf %174, %186 : vector<8x32xf32>
    %197 = arith.addf %195, %196 : vector<8x32xf32>
    %198 = math.tanh %197 : vector<8x32xf32>
    %199 = arith.mulf %194, %198 : vector<8x32xf32>
    %200 = vector.extract_strided_slice %6 {offsets = [48, 0], sizes = [8, 32], strides = [1, 1]} : vector<112x32xf32> to vector<8x32xf32>
    %cst_51 = arith.constant dense<0.000000e+00> : vector<8x32xf32>
    %201 = tpu.matmul %199, %11, %cst_51 {dimension_numbers = #tpu.dot_dimension_numbers<[1], [0], [0], [1], [0, 0, 1, 1], [], []>} : vector<8x32xf32>, vector<32x32xf32>, vector<8x32xf32> -> vector<8x32xf32>
    %202 = arith.addf %200, %201 : vector<8x32xf32>
    %203 = arith.negf %202 : vector<8x32xf32>
    %204 = math.exp %203 : vector<8x32xf32>
    %cst_52 = arith.constant 1.000000e+00 : f32
    %205 = vector.broadcast %cst_52 : f32 to vector<8x32xf32>
    %206 = arith.addf %205, %204 : vector<8x32xf32>
    %207 = arith.divf %205, %206 : vector<8x32xf32>
    %208 = vector.extract_strided_slice %7 {offsets = [48, 0], sizes = [8, 32], strides = [1, 1]} : vector<112x32xf32> to vector<8x32xf32>
    %cst_53 = arith.constant dense<0.000000e+00> : vector<8x32xf32>
    %209 = tpu.matmul %199, %13, %cst_53 {dimension_numbers = #tpu.dot_dimension_numbers<[1], [0], [0], [1], [0, 0, 1, 1], [], []>} : vector<8x32xf32>, vector<32x32xf32>, vector<8x32xf32> -> vector<8x32xf32>
    %210 = arith.addf %208, %209 : vector<8x32xf32>
    %211 = arith.negf %210 : vector<8x32xf32>
    %212 = math.exp %211 : vector<8x32xf32>
    %cst_54 = arith.constant 1.000000e+00 : f32
    %213 = vector.broadcast %cst_54 : f32 to vector<8x32xf32>
    %214 = arith.addf %213, %212 : vector<8x32xf32>
    %215 = arith.divf %213, %214 : vector<8x32xf32>
    %216 = vector.extract_strided_slice %8 {offsets = [48, 0], sizes = [8, 32], strides = [1, 1]} : vector<112x32xf32> to vector<8x32xf32>
    %cst_55 = arith.constant dense<0.000000e+00> : vector<8x32xf32>
    %217 = tpu.matmul %199, %15, %cst_55 {dimension_numbers = #tpu.dot_dimension_numbers<[1], [0], [0], [1], [0, 0, 1, 1], [], []>} : vector<8x32xf32>, vector<32x32xf32>, vector<8x32xf32> -> vector<8x32xf32>
    %218 = arith.addf %216, %217 : vector<8x32xf32>
    %219 = math.tanh %218 : vector<8x32xf32>
    %220 = vector.extract_strided_slice %9 {offsets = [48, 0], sizes = [8, 32], strides = [1, 1]} : vector<112x32xf32> to vector<8x32xf32>
    %cst_56 = arith.constant dense<0.000000e+00> : vector<8x32xf32>
    %221 = tpu.matmul %199, %17, %cst_56 {dimension_numbers = #tpu.dot_dimension_numbers<[1], [0], [0], [1], [0, 0, 1, 1], [], []>} : vector<8x32xf32>, vector<32x32xf32>, vector<8x32xf32> -> vector<8x32xf32>
    %222 = arith.addf %220, %221 : vector<8x32xf32>
    %223 = arith.negf %222 : vector<8x32xf32>
    %224 = math.exp %223 : vector<8x32xf32>
    %cst_57 = arith.constant 1.000000e+00 : f32
    %225 = vector.broadcast %cst_57 : f32 to vector<8x32xf32>
    %226 = arith.addf %225, %224 : vector<8x32xf32>
    %227 = arith.divf %225, %226 : vector<8x32xf32>
    %228 = arith.mulf %215, %197 : vector<8x32xf32>
    %229 = arith.mulf %207, %219 : vector<8x32xf32>
    %230 = arith.addf %228, %229 : vector<8x32xf32>
    %231 = math.tanh %230 : vector<8x32xf32>
    %232 = arith.mulf %227, %231 : vector<8x32xf32>
    %233 = vector.extract_strided_slice %6 {offsets = [56, 0], sizes = [8, 32], strides = [1, 1]} : vector<112x32xf32> to vector<8x32xf32>
    %cst_58 = arith.constant dense<0.000000e+00> : vector<8x32xf32>
    %234 = tpu.matmul %232, %11, %cst_58 {dimension_numbers = #tpu.dot_dimension_numbers<[1], [0], [0], [1], [0, 0, 1, 1], [], []>} : vector<8x32xf32>, vector<32x32xf32>, vector<8x32xf32> -> vector<8x32xf32>
    %235 = arith.addf %233, %234 : vector<8x32xf32>
    %236 = arith.negf %235 : vector<8x32xf32>
    %237 = math.exp %236 : vector<8x32xf32>
    %cst_59 = arith.constant 1.000000e+00 : f32
    %238 = vector.broadcast %cst_59 : f32 to vector<8x32xf32>
    %239 = arith.addf %238, %237 : vector<8x32xf32>
    %240 = arith.divf %238, %239 : vector<8x32xf32>
    %241 = vector.extract_strided_slice %7 {offsets = [56, 0], sizes = [8, 32], strides = [1, 1]} : vector<112x32xf32> to vector<8x32xf32>
    %cst_60 = arith.constant dense<0.000000e+00> : vector<8x32xf32>
    %242 = tpu.matmul %232, %13, %cst_60 {dimension_numbers = #tpu.dot_dimension_numbers<[1], [0], [0], [1], [0, 0, 1, 1], [], []>} : vector<8x32xf32>, vector<32x32xf32>, vector<8x32xf32> -> vector<8x32xf32>
    %243 = arith.addf %241, %242 : vector<8x32xf32>
    %244 = arith.negf %243 : vector<8x32xf32>
    %245 = math.exp %244 : vector<8x32xf32>
    %cst_61 = arith.constant 1.000000e+00 : f32
    %246 = vector.broadcast %cst_61 : f32 to vector<8x32xf32>
    %247 = arith.addf %246, %245 : vector<8x32xf32>
    %248 = arith.divf %246, %247 : vector<8x32xf32>
    %249 = vector.extract_strided_slice %8 {offsets = [56, 0], sizes = [8, 32], strides = [1, 1]} : vector<112x32xf32> to vector<8x32xf32>
    %cst_62 = arith.constant dense<0.000000e+00> : vector<8x32xf32>
    %250 = tpu.matmul %232, %15, %cst_62 {dimension_numbers = #tpu.dot_dimension_numbers<[1], [0], [0], [1], [0, 0, 1, 1], [], []>} : vector<8x32xf32>, vector<32x32xf32>, vector<8x32xf32> -> vector<8x32xf32>
    %251 = arith.addf %249, %250 : vector<8x32xf32>
    %252 = math.tanh %251 : vector<8x32xf32>
    %253 = vector.extract_strided_slice %9 {offsets = [56, 0], sizes = [8, 32], strides = [1, 1]} : vector<112x32xf32> to vector<8x32xf32>
    %cst_63 = arith.constant dense<0.000000e+00> : vector<8x32xf32>
    %254 = tpu.matmul %232, %17, %cst_63 {dimension_numbers = #tpu.dot_dimension_numbers<[1], [0], [0], [1], [0, 0, 1, 1], [], []>} : vector<8x32xf32>, vector<32x32xf32>, vector<8x32xf32> -> vector<8x32xf32>
    %255 = arith.addf %253, %254 : vector<8x32xf32>
    %256 = arith.negf %255 : vector<8x32xf32>
    %257 = math.exp %256 : vector<8x32xf32>
    %cst_64 = arith.constant 1.000000e+00 : f32
    %258 = vector.broadcast %cst_64 : f32 to vector<8x32xf32>
    %259 = arith.addf %258, %257 : vector<8x32xf32>
    %260 = arith.divf %258, %259 : vector<8x32xf32>
    %261 = arith.mulf %248, %230 : vector<8x32xf32>
    %262 = arith.mulf %240, %252 : vector<8x32xf32>
    %263 = arith.addf %261, %262 : vector<8x32xf32>
    %264 = math.tanh %263 : vector<8x32xf32>
    %265 = arith.mulf %260, %264 : vector<8x32xf32>
    %266 = vector.extract_strided_slice %6 {offsets = [64, 0], sizes = [8, 32], strides = [1, 1]} : vector<112x32xf32> to vector<8x32xf32>
    %cst_65 = arith.constant dense<0.000000e+00> : vector<8x32xf32>
    %267 = tpu.matmul %265, %11, %cst_65 {dimension_numbers = #tpu.dot_dimension_numbers<[1], [0], [0], [1], [0, 0, 1, 1], [], []>} : vector<8x32xf32>, vector<32x32xf32>, vector<8x32xf32> -> vector<8x32xf32>
    %268 = arith.addf %266, %267 : vector<8x32xf32>
    %269 = arith.negf %268 : vector<8x32xf32>
    %270 = math.exp %269 : vector<8x32xf32>
    %cst_66 = arith.constant 1.000000e+00 : f32
    %271 = vector.broadcast %cst_66 : f32 to vector<8x32xf32>
    %272 = arith.addf %271, %270 : vector<8x32xf32>
    %273 = arith.divf %271, %272 : vector<8x32xf32>
    %274 = vector.extract_strided_slice %7 {offsets = [64, 0], sizes = [8, 32], strides = [1, 1]} : vector<112x32xf32> to vector<8x32xf32>
    %cst_67 = arith.constant dense<0.000000e+00> : vector<8x32xf32>
    %275 = tpu.matmul %265, %13, %cst_67 {dimension_numbers = #tpu.dot_dimension_numbers<[1], [0], [0], [1], [0, 0, 1, 1], [], []>} : vector<8x32xf32>, vector<32x32xf32>, vector<8x32xf32> -> vector<8x32xf32>
    %276 = arith.addf %274, %275 : vector<8x32xf32>
    %277 = arith.negf %276 : vector<8x32xf32>
    %278 = math.exp %277 : vector<8x32xf32>
    %cst_68 = arith.constant 1.000000e+00 : f32
    %279 = vector.broadcast %cst_68 : f32 to vector<8x32xf32>
    %280 = arith.addf %279, %278 : vector<8x32xf32>
    %281 = arith.divf %279, %280 : vector<8x32xf32>
    %282 = vector.extract_strided_slice %8 {offsets = [64, 0], sizes = [8, 32], strides = [1, 1]} : vector<112x32xf32> to vector<8x32xf32>
    %cst_69 = arith.constant dense<0.000000e+00> : vector<8x32xf32>
    %283 = tpu.matmul %265, %15, %cst_69 {dimension_numbers = #tpu.dot_dimension_numbers<[1], [0], [0], [1], [0, 0, 1, 1], [], []>} : vector<8x32xf32>, vector<32x32xf32>, vector<8x32xf32> -> vector<8x32xf32>
    %284 = arith.addf %282, %283 : vector<8x32xf32>
    %285 = math.tanh %284 : vector<8x32xf32>
    %286 = vector.extract_strided_slice %9 {offsets = [64, 0], sizes = [8, 32], strides = [1, 1]} : vector<112x32xf32> to vector<8x32xf32>
    %cst_70 = arith.constant dense<0.000000e+00> : vector<8x32xf32>
    %287 = tpu.matmul %265, %17, %cst_70 {dimension_numbers = #tpu.dot_dimension_numbers<[1], [0], [0], [1], [0, 0, 1, 1], [], []>} : vector<8x32xf32>, vector<32x32xf32>, vector<8x32xf32> -> vector<8x32xf32>
    %288 = arith.addf %286, %287 : vector<8x32xf32>
    %289 = arith.negf %288 : vector<8x32xf32>
    %290 = math.exp %289 : vector<8x32xf32>
    %cst_71 = arith.constant 1.000000e+00 : f32
    %291 = vector.broadcast %cst_71 : f32 to vector<8x32xf32>
    %292 = arith.addf %291, %290 : vector<8x32xf32>
    %293 = arith.divf %291, %292 : vector<8x32xf32>
    %294 = arith.mulf %281, %263 : vector<8x32xf32>
    %295 = arith.mulf %273, %285 : vector<8x32xf32>
    %296 = arith.addf %294, %295 : vector<8x32xf32>
    %297 = math.tanh %296 : vector<8x32xf32>
    %298 = arith.mulf %293, %297 : vector<8x32xf32>
    %299 = vector.extract_strided_slice %6 {offsets = [72, 0], sizes = [8, 32], strides = [1, 1]} : vector<112x32xf32> to vector<8x32xf32>
    %cst_72 = arith.constant dense<0.000000e+00> : vector<8x32xf32>
    %300 = tpu.matmul %298, %11, %cst_72 {dimension_numbers = #tpu.dot_dimension_numbers<[1], [0], [0], [1], [0, 0, 1, 1], [], []>} : vector<8x32xf32>, vector<32x32xf32>, vector<8x32xf32> -> vector<8x32xf32>
    %301 = arith.addf %299, %300 : vector<8x32xf32>
    %302 = arith.negf %301 : vector<8x32xf32>
    %303 = math.exp %302 : vector<8x32xf32>
    %cst_73 = arith.constant 1.000000e+00 : f32
    %304 = vector.broadcast %cst_73 : f32 to vector<8x32xf32>
    %305 = arith.addf %304, %303 : vector<8x32xf32>
    %306 = arith.divf %304, %305 : vector<8x32xf32>
    %307 = vector.extract_strided_slice %7 {offsets = [72, 0], sizes = [8, 32], strides = [1, 1]} : vector<112x32xf32> to vector<8x32xf32>
    %cst_74 = arith.constant dense<0.000000e+00> : vector<8x32xf32>
    %308 = tpu.matmul %298, %13, %cst_74 {dimension_numbers = #tpu.dot_dimension_numbers<[1], [0], [0], [1], [0, 0, 1, 1], [], []>} : vector<8x32xf32>, vector<32x32xf32>, vector<8x32xf32> -> vector<8x32xf32>
    %309 = arith.addf %307, %308 : vector<8x32xf32>
    %310 = arith.negf %309 : vector<8x32xf32>
    %311 = math.exp %310 : vector<8x32xf32>
    %cst_75 = arith.constant 1.000000e+00 : f32
    %312 = vector.broadcast %cst_75 : f32 to vector<8x32xf32>
    %313 = arith.addf %312, %311 : vector<8x32xf32>
    %314 = arith.divf %312, %313 : vector<8x32xf32>
    %315 = vector.extract_strided_slice %8 {offsets = [72, 0], sizes = [8, 32], strides = [1, 1]} : vector<112x32xf32> to vector<8x32xf32>
    %cst_76 = arith.constant dense<0.000000e+00> : vector<8x32xf32>
    %316 = tpu.matmul %298, %15, %cst_76 {dimension_numbers = #tpu.dot_dimension_numbers<[1], [0], [0], [1], [0, 0, 1, 1], [], []>} : vector<8x32xf32>, vector<32x32xf32>, vector<8x32xf32> -> vector<8x32xf32>
    %317 = arith.addf %315, %316 : vector<8x32xf32>
    %318 = math.tanh %317 : vector<8x32xf32>
    %319 = vector.extract_strided_slice %9 {offsets = [72, 0], sizes = [8, 32], strides = [1, 1]} : vector<112x32xf32> to vector<8x32xf32>
    %cst_77 = arith.constant dense<0.000000e+00> : vector<8x32xf32>
    %320 = tpu.matmul %298, %17, %cst_77 {dimension_numbers = #tpu.dot_dimension_numbers<[1], [0], [0], [1], [0, 0, 1, 1], [], []>} : vector<8x32xf32>, vector<32x32xf32>, vector<8x32xf32> -> vector<8x32xf32>
    %321 = arith.addf %319, %320 : vector<8x32xf32>
    %322 = arith.negf %321 : vector<8x32xf32>
    %323 = math.exp %322 : vector<8x32xf32>
    %cst_78 = arith.constant 1.000000e+00 : f32
    %324 = vector.broadcast %cst_78 : f32 to vector<8x32xf32>
    %325 = arith.addf %324, %323 : vector<8x32xf32>
    %326 = arith.divf %324, %325 : vector<8x32xf32>
    %327 = arith.mulf %314, %296 : vector<8x32xf32>
    %328 = arith.mulf %306, %318 : vector<8x32xf32>
    %329 = arith.addf %327, %328 : vector<8x32xf32>
    %330 = math.tanh %329 : vector<8x32xf32>
    %331 = arith.mulf %326, %330 : vector<8x32xf32>
    %332 = vector.extract_strided_slice %6 {offsets = [80, 0], sizes = [8, 32], strides = [1, 1]} : vector<112x32xf32> to vector<8x32xf32>
    %cst_79 = arith.constant dense<0.000000e+00> : vector<8x32xf32>
    %333 = tpu.matmul %331, %11, %cst_79 {dimension_numbers = #tpu.dot_dimension_numbers<[1], [0], [0], [1], [0, 0, 1, 1], [], []>} : vector<8x32xf32>, vector<32x32xf32>, vector<8x32xf32> -> vector<8x32xf32>
    %334 = arith.addf %332, %333 : vector<8x32xf32>
    %335 = arith.negf %334 : vector<8x32xf32>
    %336 = math.exp %335 : vector<8x32xf32>
    %cst_80 = arith.constant 1.000000e+00 : f32
    %337 = vector.broadcast %cst_80 : f32 to vector<8x32xf32>
    %338 = arith.addf %337, %336 : vector<8x32xf32>
    %339 = arith.divf %337, %338 : vector<8x32xf32>
    %340 = vector.extract_strided_slice %7 {offsets = [80, 0], sizes = [8, 32], strides = [1, 1]} : vector<112x32xf32> to vector<8x32xf32>
    %cst_81 = arith.constant dense<0.000000e+00> : vector<8x32xf32>
    %341 = tpu.matmul %331, %13, %cst_81 {dimension_numbers = #tpu.dot_dimension_numbers<[1], [0], [0], [1], [0, 0, 1, 1], [], []>} : vector<8x32xf32>, vector<32x32xf32>, vector<8x32xf32> -> vector<8x32xf32>
    %342 = arith.addf %340, %341 : vector<8x32xf32>
    %343 = arith.negf %342 : vector<8x32xf32>
    %344 = math.exp %343 : vector<8x32xf32>
    %cst_82 = arith.constant 1.000000e+00 : f32
    %345 = vector.broadcast %cst_82 : f32 to vector<8x32xf32>
    %346 = arith.addf %345, %344 : vector<8x32xf32>
    %347 = arith.divf %345, %346 : vector<8x32xf32>
    %348 = vector.extract_strided_slice %8 {offsets = [80, 0], sizes = [8, 32], strides = [1, 1]} : vector<112x32xf32> to vector<8x32xf32>
    %cst_83 = arith.constant dense<0.000000e+00> : vector<8x32xf32>
    %349 = tpu.matmul %331, %15, %cst_83 {dimension_numbers = #tpu.dot_dimension_numbers<[1], [0], [0], [1], [0, 0, 1, 1], [], []>} : vector<8x32xf32>, vector<32x32xf32>, vector<8x32xf32> -> vector<8x32xf32>
    %350 = arith.addf %348, %349 : vector<8x32xf32>
    %351 = math.tanh %350 : vector<8x32xf32>
    %352 = vector.extract_strided_slice %9 {offsets = [80, 0], sizes = [8, 32], strides = [1, 1]} : vector<112x32xf32> to vector<8x32xf32>
    %cst_84 = arith.constant dense<0.000000e+00> : vector<8x32xf32>
    %353 = tpu.matmul %331, %17, %cst_84 {dimension_numbers = #tpu.dot_dimension_numbers<[1], [0], [0], [1], [0, 0, 1, 1], [], []>} : vector<8x32xf32>, vector<32x32xf32>, vector<8x32xf32> -> vector<8x32xf32>
    %354 = arith.addf %352, %353 : vector<8x32xf32>
    %355 = arith.negf %354 : vector<8x32xf32>
    %356 = math.exp %355 : vector<8x32xf32>
    %cst_85 = arith.constant 1.000000e+00 : f32
    %357 = vector.broadcast %cst_85 : f32 to vector<8x32xf32>
    %358 = arith.addf %357, %356 : vector<8x32xf32>
    %359 = arith.divf %357, %358 : vector<8x32xf32>
    %360 = arith.mulf %347, %329 : vector<8x32xf32>
    %361 = arith.mulf %339, %351 : vector<8x32xf32>
    %362 = arith.addf %360, %361 : vector<8x32xf32>
    %363 = math.tanh %362 : vector<8x32xf32>
    %364 = arith.mulf %359, %363 : vector<8x32xf32>
    %365 = vector.extract_strided_slice %6 {offsets = [88, 0], sizes = [8, 32], strides = [1, 1]} : vector<112x32xf32> to vector<8x32xf32>
    %cst_86 = arith.constant dense<0.000000e+00> : vector<8x32xf32>
    %366 = tpu.matmul %364, %11, %cst_86 {dimension_numbers = #tpu.dot_dimension_numbers<[1], [0], [0], [1], [0, 0, 1, 1], [], []>} : vector<8x32xf32>, vector<32x32xf32>, vector<8x32xf32> -> vector<8x32xf32>
    %367 = arith.addf %365, %366 : vector<8x32xf32>
    %368 = arith.negf %367 : vector<8x32xf32>
    %369 = math.exp %368 : vector<8x32xf32>
    %cst_87 = arith.constant 1.000000e+00 : f32
    %370 = vector.broadcast %cst_87 : f32 to vector<8x32xf32>
    %371 = arith.addf %370, %369 : vector<8x32xf32>
    %372 = arith.divf %370, %371 : vector<8x32xf32>
    %373 = vector.extract_strided_slice %7 {offsets = [88, 0], sizes = [8, 32], strides = [1, 1]} : vector<112x32xf32> to vector<8x32xf32>
    %cst_88 = arith.constant dense<0.000000e+00> : vector<8x32xf32>
    %374 = tpu.matmul %364, %13, %cst_88 {dimension_numbers = #tpu.dot_dimension_numbers<[1], [0], [0], [1], [0, 0, 1, 1], [], []>} : vector<8x32xf32>, vector<32x32xf32>, vector<8x32xf32> -> vector<8x32xf32>
    %375 = arith.addf %373, %374 : vector<8x32xf32>
    %376 = arith.negf %375 : vector<8x32xf32>
    %377 = math.exp %376 : vector<8x32xf32>
    %cst_89 = arith.constant 1.000000e+00 : f32
    %378 = vector.broadcast %cst_89 : f32 to vector<8x32xf32>
    %379 = arith.addf %378, %377 : vector<8x32xf32>
    %380 = arith.divf %378, %379 : vector<8x32xf32>
    %381 = vector.extract_strided_slice %8 {offsets = [88, 0], sizes = [8, 32], strides = [1, 1]} : vector<112x32xf32> to vector<8x32xf32>
    %cst_90 = arith.constant dense<0.000000e+00> : vector<8x32xf32>
    %382 = tpu.matmul %364, %15, %cst_90 {dimension_numbers = #tpu.dot_dimension_numbers<[1], [0], [0], [1], [0, 0, 1, 1], [], []>} : vector<8x32xf32>, vector<32x32xf32>, vector<8x32xf32> -> vector<8x32xf32>
    %383 = arith.addf %381, %382 : vector<8x32xf32>
    %384 = math.tanh %383 : vector<8x32xf32>
    %385 = vector.extract_strided_slice %9 {offsets = [88, 0], sizes = [8, 32], strides = [1, 1]} : vector<112x32xf32> to vector<8x32xf32>
    %cst_91 = arith.constant dense<0.000000e+00> : vector<8x32xf32>
    %386 = tpu.matmul %364, %17, %cst_91 {dimension_numbers = #tpu.dot_dimension_numbers<[1], [0], [0], [1], [0, 0, 1, 1], [], []>} : vector<8x32xf32>, vector<32x32xf32>, vector<8x32xf32> -> vector<8x32xf32>
    %387 = arith.addf %385, %386 : vector<8x32xf32>
    %388 = arith.negf %387 : vector<8x32xf32>
    %389 = math.exp %388 : vector<8x32xf32>
    %cst_92 = arith.constant 1.000000e+00 : f32
    %390 = vector.broadcast %cst_92 : f32 to vector<8x32xf32>
    %391 = arith.addf %390, %389 : vector<8x32xf32>
    %392 = arith.divf %390, %391 : vector<8x32xf32>
    %393 = arith.mulf %380, %362 : vector<8x32xf32>
    %394 = arith.mulf %372, %384 : vector<8x32xf32>
    %395 = arith.addf %393, %394 : vector<8x32xf32>
    %396 = math.tanh %395 : vector<8x32xf32>
    %397 = arith.mulf %392, %396 : vector<8x32xf32>
    %398 = vector.extract_strided_slice %6 {offsets = [96, 0], sizes = [8, 32], strides = [1, 1]} : vector<112x32xf32> to vector<8x32xf32>
    %cst_93 = arith.constant dense<0.000000e+00> : vector<8x32xf32>
    %399 = tpu.matmul %397, %11, %cst_93 {dimension_numbers = #tpu.dot_dimension_numbers<[1], [0], [0], [1], [0, 0, 1, 1], [], []>} : vector<8x32xf32>, vector<32x32xf32>, vector<8x32xf32> -> vector<8x32xf32>
    %400 = arith.addf %398, %399 : vector<8x32xf32>
    %401 = arith.negf %400 : vector<8x32xf32>
    %402 = math.exp %401 : vector<8x32xf32>
    %cst_94 = arith.constant 1.000000e+00 : f32
    %403 = vector.broadcast %cst_94 : f32 to vector<8x32xf32>
    %404 = arith.addf %403, %402 : vector<8x32xf32>
    %405 = arith.divf %403, %404 : vector<8x32xf32>
    %406 = vector.extract_strided_slice %7 {offsets = [96, 0], sizes = [8, 32], strides = [1, 1]} : vector<112x32xf32> to vector<8x32xf32>
    %cst_95 = arith.constant dense<0.000000e+00> : vector<8x32xf32>
    %407 = tpu.matmul %397, %13, %cst_95 {dimension_numbers = #tpu.dot_dimension_numbers<[1], [0], [0], [1], [0, 0, 1, 1], [], []>} : vector<8x32xf32>, vector<32x32xf32>, vector<8x32xf32> -> vector<8x32xf32>
    %408 = arith.addf %406, %407 : vector<8x32xf32>
    %409 = arith.negf %408 : vector<8x32xf32>
    %410 = math.exp %409 : vector<8x32xf32>
    %cst_96 = arith.constant 1.000000e+00 : f32
    %411 = vector.broadcast %cst_96 : f32 to vector<8x32xf32>
    %412 = arith.addf %411, %410 : vector<8x32xf32>
    %413 = arith.divf %411, %412 : vector<8x32xf32>
    %414 = vector.extract_strided_slice %8 {offsets = [96, 0], sizes = [8, 32], strides = [1, 1]} : vector<112x32xf32> to vector<8x32xf32>
    %cst_97 = arith.constant dense<0.000000e+00> : vector<8x32xf32>
    %415 = tpu.matmul %397, %15, %cst_97 {dimension_numbers = #tpu.dot_dimension_numbers<[1], [0], [0], [1], [0, 0, 1, 1], [], []>} : vector<8x32xf32>, vector<32x32xf32>, vector<8x32xf32> -> vector<8x32xf32>
    %416 = arith.addf %414, %415 : vector<8x32xf32>
    %417 = math.tanh %416 : vector<8x32xf32>
    %418 = vector.extract_strided_slice %9 {offsets = [96, 0], sizes = [8, 32], strides = [1, 1]} : vector<112x32xf32> to vector<8x32xf32>
    %cst_98 = arith.constant dense<0.000000e+00> : vector<8x32xf32>
    %419 = tpu.matmul %397, %17, %cst_98 {dimension_numbers = #tpu.dot_dimension_numbers<[1], [0], [0], [1], [0, 0, 1, 1], [], []>} : vector<8x32xf32>, vector<32x32xf32>, vector<8x32xf32> -> vector<8x32xf32>
    %420 = arith.addf %418, %419 : vector<8x32xf32>
    %421 = arith.negf %420 : vector<8x32xf32>
    %422 = math.exp %421 : vector<8x32xf32>
    %cst_99 = arith.constant 1.000000e+00 : f32
    %423 = vector.broadcast %cst_99 : f32 to vector<8x32xf32>
    %424 = arith.addf %423, %422 : vector<8x32xf32>
    %425 = arith.divf %423, %424 : vector<8x32xf32>
    %426 = arith.mulf %413, %395 : vector<8x32xf32>
    %427 = arith.mulf %405, %417 : vector<8x32xf32>
    %428 = arith.addf %426, %427 : vector<8x32xf32>
    %429 = math.tanh %428 : vector<8x32xf32>
    %430 = arith.mulf %425, %429 : vector<8x32xf32>
    %431 = vector.extract_strided_slice %6 {offsets = [104, 0], sizes = [8, 32], strides = [1, 1]} : vector<112x32xf32> to vector<8x32xf32>
    %cst_100 = arith.constant dense<0.000000e+00> : vector<8x32xf32>
    %432 = tpu.matmul %430, %11, %cst_100 {dimension_numbers = #tpu.dot_dimension_numbers<[1], [0], [0], [1], [0, 0, 1, 1], [], []>} : vector<8x32xf32>, vector<32x32xf32>, vector<8x32xf32> -> vector<8x32xf32>
    %433 = arith.addf %431, %432 : vector<8x32xf32>
    %434 = arith.negf %433 : vector<8x32xf32>
    %435 = math.exp %434 : vector<8x32xf32>
    %cst_101 = arith.constant 1.000000e+00 : f32
    %436 = vector.broadcast %cst_101 : f32 to vector<8x32xf32>
    %437 = arith.addf %436, %435 : vector<8x32xf32>
    %438 = arith.divf %436, %437 : vector<8x32xf32>
    %439 = vector.extract_strided_slice %7 {offsets = [104, 0], sizes = [8, 32], strides = [1, 1]} : vector<112x32xf32> to vector<8x32xf32>
    %cst_102 = arith.constant dense<0.000000e+00> : vector<8x32xf32>
    %440 = tpu.matmul %430, %13, %cst_102 {dimension_numbers = #tpu.dot_dimension_numbers<[1], [0], [0], [1], [0, 0, 1, 1], [], []>} : vector<8x32xf32>, vector<32x32xf32>, vector<8x32xf32> -> vector<8x32xf32>
    %441 = arith.addf %439, %440 : vector<8x32xf32>
    %442 = arith.negf %441 : vector<8x32xf32>
    %443 = math.exp %442 : vector<8x32xf32>
    %cst_103 = arith.constant 1.000000e+00 : f32
    %444 = vector.broadcast %cst_103 : f32 to vector<8x32xf32>
    %445 = arith.addf %444, %443 : vector<8x32xf32>
    %446 = arith.divf %444, %445 : vector<8x32xf32>
    %447 = vector.extract_strided_slice %8 {offsets = [104, 0], sizes = [8, 32], strides = [1, 1]} : vector<112x32xf32> to vector<8x32xf32>
    %cst_104 = arith.constant dense<0.000000e+00> : vector<8x32xf32>
    %448 = tpu.matmul %430, %15, %cst_104 {dimension_numbers = #tpu.dot_dimension_numbers<[1], [0], [0], [1], [0, 0, 1, 1], [], []>} : vector<8x32xf32>, vector<32x32xf32>, vector<8x32xf32> -> vector<8x32xf32>
    %449 = arith.addf %447, %448 : vector<8x32xf32>
    %450 = math.tanh %449 : vector<8x32xf32>
    %451 = vector.extract_strided_slice %9 {offsets = [104, 0], sizes = [8, 32], strides = [1, 1]} : vector<112x32xf32> to vector<8x32xf32>
    %cst_105 = arith.constant dense<0.000000e+00> : vector<8x32xf32>
    %452 = tpu.matmul %430, %17, %cst_105 {dimension_numbers = #tpu.dot_dimension_numbers<[1], [0], [0], [1], [0, 0, 1, 1], [], []>} : vector<8x32xf32>, vector<32x32xf32>, vector<8x32xf32> -> vector<8x32xf32>
    %453 = arith.addf %451, %452 : vector<8x32xf32>
    %454 = arith.negf %453 : vector<8x32xf32>
    %455 = math.exp %454 : vector<8x32xf32>
    %cst_106 = arith.constant 1.000000e+00 : f32
    %456 = vector.broadcast %cst_106 : f32 to vector<8x32xf32>
    %457 = arith.addf %456, %455 : vector<8x32xf32>
    %458 = arith.divf %456, %457 : vector<8x32xf32>
    %459 = arith.mulf %446, %428 : vector<8x32xf32>
    %460 = arith.mulf %438, %450 : vector<8x32xf32>
    %461 = arith.addf %459, %460 : vector<8x32xf32>
    %462 = math.tanh %461 : vector<8x32xf32>
    %463 = arith.mulf %458, %462 : vector<8x32xf32>
    %c0_107 = arith.constant 0 : index
    %c0_108 = arith.constant 0 : index
    %464 = vector.load %arg4[%c0_107, %c0_108] : memref<32x4xf32, #tpu.memory_space<vmem>>, vector<32x4xf32>
    %cst_109 = arith.constant dense<0.000000e+00> : vector<8x4xf32>
    %465 = tpu.matmul %463, %464, %cst_109 {dimension_numbers = #tpu.dot_dimension_numbers<[1], [0], [0], [1], [0, 0, 1, 1], [], []>} : vector<8x32xf32>, vector<32x4xf32>, vector<8x4xf32> -> vector<8x4xf32>
    %c0_110 = arith.constant 0 : index
    %c0_111 = arith.constant 0 : index
    %466 = vector.load %arg5[%c0_110, %c0_111] : memref<1x4xf32, #tpu.memory_space<vmem>>, vector<1x4xf32>
    %467 = vector.broadcast %466 : vector<1x4xf32> to vector<8x4xf32>
    %468 = arith.addf %465, %467 : vector<8x4xf32>
    %c0_112 = arith.constant 0 : index
    %c0_113 = arith.constant 0 : index
    %469 = vector.load %arg6[%c0_112, %c0_113] : memref<8x4xf32, #tpu.memory_space<vmem>>, vector<8x4xf32>
    tpu.vector_store %arg6[%c0_112, %c0_113], %468 {strides = array<i32>} : memref<8x4xf32, #tpu.memory_space<vmem>>, vector<8x4xf32>,
    return
  }
}

</mosaic_0001>

<llo_original>
// kernel: _crnn_forward_impl.1
$region0: #{_crnn_forward_impl.1}
  #allocation0 [shape = 'u32[]', space=smem, size = 0x4, offset = 0x4, fixed_abs, tag = 'smem constant byte address 0x4 - core index']
  #allocation1 [shape = 'u32[72,128]{1,0:T(1,128)}', space=vmem, size = 0x9000, scoped, tag = 'internal scratch']
  %s0 = inlined_call_operand.vmem [shape: f32[112,12], index: 0, kind: input, shape index: {}]
  %s1 = inlined_call_operand.vmem [shape: f32[12,128], index: 1, kind: input, shape index: {}]
  %s2 = inlined_call_operand.vmem [shape: f32[1,128], index: 2, kind: input, shape index: {}]
  %s3 = inlined_call_operand.vmem [shape: f32[4,32,32], index: 3, kind: input, shape index: {}]
  %s4 = inlined_call_operand.vmem [shape: f32[32,4], index: 4, kind: input, shape index: {}]
  %s5 = inlined_call_operand.vmem [shape: f32[1,4], index: 5, kind: input, shape index: {}]
  %s6 = inlined_call_operand.vmem [shape: f32[8,4], index: 6, kind: output, shape index: {}]
  %s7 = sld [smem:[#allocation0]]
  $region34: #{_crnn_forward_impl.1} parent=0
    _
  %s9 = ssub.s32 1, %s7
  %s10 = scalar_select 0, %s9, %s7
  // Predicated region
  $region2: #{_crnn_forward_impl.1} parent=0 // pred_check
    _
  $region3: #{_crnn_forward_impl.1} parent=0 // pred_check_branch
    %12 = sbr.rel (0) target = $region5
  $region4: #{_crnn_forward_impl.1} parent=0 // pred_region
    _
  $region5: #{_crnn_forward_impl.1} parent=0 // pred_fallthru
    _
  // Predicated region
  $region6: #{_crnn_forward_impl.1} parent=0 // pred_check
    _
  $region7: #{_crnn_forward_impl.1} parent=0 // pred_check_branch
    %14 = sbr.rel (0) target = $region9
  $region8: #{_crnn_forward_impl.1} parent=0 // pred_region
    _
  $region9: #{_crnn_forward_impl.1} parent=0 // pred_fallthru
    _
  // Predicated region
  $region10: #{_crnn_forward_impl.1} parent=0 // pred_check
    _
  $region11: #{_crnn_forward_impl.1} parent=0 // pred_check_branch
    %16 = sbr.rel (0) target = $region13
  $region12: #{_crnn_forward_impl.1} parent=0 // pred_region
    _
  $region13: #{_crnn_forward_impl.1} parent=0 // pred_fallthru
    _
  // Predicated region
  $region14: #{_crnn_forward_impl.1} parent=0 // pred_check
    _
  $region15: #{_crnn_forward_impl.1} parent=0 // pred_check_branch
    %18 = sbr.rel (0) target = $region17
  $region16: #{_crnn_forward_impl.1} parent=0 // pred_region
    _
  $region17: #{_crnn_forward_impl.1} parent=0 // pred_fallthru
    _
  // Predicated region
  $region18: #{_crnn_forward_impl.1} parent=0 // pred_check
    _
  $region19: #{_crnn_forward_impl.1} parent=0 // pred_check_branch
    %20 = sbr.rel (0) target = $region21
  $region20: #{_crnn_forward_impl.1} parent=0 // pred_region
    _
  $region21: #{_crnn_forward_impl.1} parent=0 // pred_fallthru
    _
  // Predicated region
  $region22: #{_crnn_forward_impl.1} parent=0 // pred_check
    _
  $region23: #{_crnn_forward_impl.1} parent=0 // pred_check_branch
    %22 = sbr.rel (0) target = $region25
  $region24: #{_crnn_forward_impl.1} parent=0 // pred_region
    _
  $region25: #{_crnn_forward_impl.1} parent=0 // pred_fallthru
    _
  %v23 = vld [vmem:[%s0] sm:$0xff]
  %v24 = vld [vmem:[%s0 + $0x8] sm:$0xff]
  %v25 = vld [vmem:[%s0 + $0x10] sm:$0xff]
  %v26 = vld [vmem:[%s0 + $0x18] sm:$0xff]
  %v27 = vld [vmem:[%s0 + $0x20] sm:$0xff]
  %v28 = vld [vmem:[%s0 + $0x28] sm:$0xff]
  %v29 = vld [vmem:[%s0 + $0x30] sm:$0xff]
  %v30 = vld [vmem:[%s0 + $0x38] sm:$0xff]
  %v31 = vld [vmem:[%s0 + $0x40] sm:$0xff]
  %v32 = vld [vmem:[%s0 + $0x48] sm:$0xff]
  %v33 = vld [vmem:[%s0 + $0x50] sm:$0xff]
  %v34 = vld [vmem:[%s0 + $0x58] sm:$0xff]
  %v35 = vld [vmem:[%s0 + $0x60] sm:$0xff]
  %v36 = vld [vmem:[%s0 + $0x68] sm:$0xff]
  %v37 = vld [vmem:[%s1] sm:$0xff]
  %v38 = vld [vmem:[%s1 + $0x8] sm:$0xf]
  %v39 = vld [vmem:[%s2] sm:$0x1]
  %v41 = vperm.slane %v39, 0
  %vm43 = vcmask 97280
  %v45 = vsel %vm43, %v23, 0
  %v48 = vsel %vm43, %v24, 0
  %v51 = vsel %vm43, %v25, 0
  %v54 = vsel %vm43, %v26, 0
  %v57 = vsel %vm43, %v27, 0
  %v60 = vsel %vm43, %v28, 0
  %v63 = vsel %vm43, %v29, 0
  %v66 = vsel %vm43, %v30, 0
  %v69 = vsel %vm43, %v31, 0
  %v72 = vsel %vm43, %v32, 0
  %v75 = vsel %vm43, %v33, 0
  %v78 = vsel %vm43, %v34, 0
  %v81 = vsel %vm43, %v35, 0
  %v84 = vsel %vm43, %v36, 0
  %vm86 = vcmask 1043456
  %v88 = vsel %vm86, %v38, 0
  %90 = vmatpush.msra.mxu0 0.0
  %91 = vmatpush.msra.mxu0 0.0
  %92 = vmatpush.msra.mxu0 0.0
  %93 = vmatpush.msra.mxu0 0.0
  %94 = vmatpush.msra.mxu0 0.0
  %95 = vmatpush.msra.mxu0 0.0
  %96 = vmatpush.msra.mxu0 0.0
  %97 = vmatpush.msra.mxu0 0.0
  %98 = vmatpush.msra.mxu0 0.0
  %99 = vmatpush.msra.mxu0 0.0
  %100 = vmatpush.msra.mxu0 0.0
  %101 = vmatpush.msra.mxu0 0.0
  %102 = vmatpush.msra.mxu0 0.0
  %103 = vmatpush.msra.mxu0 0.0
  %104 = vmatpush.msra.mxu0 %v88
  %105 = vmatpush.msra.mxu0 %v37
  %106 = vmatmul.f32.gmra.mxu0 %v45
  %v107 = vpop.f32.mrf.mxu0
  %v108 = vadd.f32 %v41, %v107
  %109 = vmatmul.f32.gmra.mxu0 %v48
  %v110 = vpop.f32.mrf.mxu0
  %v111 = vadd.f32 %v41, %v110
  %112 = vmatmul.f32.gmra.mxu0 %v51
  %v113 = vpop.f32.mrf.mxu0
  %v114 = vadd.f32 %v41, %v113
  %115 = vmatmul.f32.gmra.mxu0 %v54
  %v116 = vpop.f32.mrf.mxu0
  %v117 = vadd.f32 %v41, %v116
  %118 = vmatmul.f32.gmra.mxu0 %v57
  %v119 = vpop.f32.mrf.mxu0
  %v120 = vadd.f32 %v41, %v119
  %121 = vmatmul.f32.gmra.mxu0 %v60
  %v122 = vpop.f32.mrf.mxu0
  %v123 = vadd.f32 %v41, %v122
  %124 = vmatmul.f32.gmra.mxu0 %v63
  %v125 = vpop.f32.mrf.mxu0
  %v126 = vadd.f32 %v41, %v125
  %127 = vmatmul.f32.gmra.mxu0 %v66
  %v128 = vpop.f32.mrf.mxu0
  %v129 = vadd.f32 %v41, %v128
  %130 = vmatmul.f32.gmra.mxu0 %v69
  %v131 = vpop.f32.mrf.mxu0
  %v132 = vadd.f32 %v41, %v131
  %133 = vmatmul.f32.gmra.mxu0 %v72
  %v134 = vpop.f32.mrf.mxu0
  %v135 = vadd.f32 %v41, %v134
  %136 = vmatmul.f32.gmra.mxu0 %v75
  %v137 = vpop.f32.mrf.mxu0
  %v138 = vadd.f32 %v41, %v137
  %139 = vmatmul.f32.gmra.mxu0 %v78
  %v140 = vpop.f32.mrf.mxu0
  %v141 = vadd.f32 %v41, %v140
  %142 = vmatmul.f32.gmra.mxu0 %v81
  %v143 = vpop.f32.mrf.mxu0
  %v144 = vadd.f32 %v41, %v143
  %145 = vmatmul.f32.gmra.mxu0 %v84
  %v146 = vpop.f32.mrf.mxu0
  %v147 = vadd.f32 %v41, %v146
  %148 = vdwg.mxu0
  %v149 = vld [vmem:[%s3] sm:$0xff]
  %v150 = vld [vmem:[%s3 + $0x8] sm:$0xff]
  %v151 = vld [vmem:[%s3 + $0x10] sm:$0xff]
  %v152 = vld [vmem:[%s3 + $0x18] sm:$0xff]
  %s153 = scalar_lea.vmem %s3, 32
  %v154 = vld [vmem:[%s153] sm:$0xff]
  %v155 = vld [vmem:[%s153 + $0x8] sm:$0xff]
  %v156 = vld [vmem:[%s153 + $0x10] sm:$0xff]
  %v157 = vld [vmem:[%s153 + $0x18] sm:$0xff]
  %s158 = scalar_lea.vmem %s3, 64
  %v159 = vld [vmem:[%s158] sm:$0xff]
  %v160 = vld [vmem:[%s158 + $0x8] sm:$0xff]
  %v161 = vld [vmem:[%s158 + $0x10] sm:$0xff]
  %v162 = vld [vmem:[%s158 + $0x18] sm:$0xff]
  %s163 = scalar_lea.vmem %s3, 96
  %v164 = vld [vmem:[%s163] sm:$0xff]
  %v165 = vld [vmem:[%s163 + $0x8] sm:$0xff]
  %v166 = vld [vmem:[%s163 + $0x10] sm:$0xff]
  %v167 = vld [vmem:[%s163 + $0x18] sm:$0xff]
  %v168 = vxor.u32 %v108, 2147483648
  %v169 = vmul.f32 %v168, 1.442695
  %v170 = vpow.pop %v169
  %v171 = vadd.f32 %v170, 1.0
  %v172 = vrcp.pop %v171
  %v173 = vmul.f32 %v171, %v172
  %v174 = vsub.f32 1.0, %v173
  %v175 = vmul.f32 %v172, %v174
  %v176 = vadd.f32 %v172, %v175
  %vm177 = vweird.f32 %v171
  %vm178 = vweird.f32 %v172
  %vm179 = vmor %vm177, %vm178
  %v180 = vsel %vm179, %v172, %v176
  %v181 = vand.u32 2147483647, %v171
  %vm182 = vcmp.eq.f32.partialorder %v181, 8.507059e+37
  %v183 = vand.u32 %v171, 2147483648
  %v184 = vor.u32 1.1754944e-38, %v183
  %v185 = vsel %vm182, %v184, %v180
  %v186 = vmul.f32 1.0, %v185
  %v187 = vtanh.pop %v108
  %189 = vrot.lane.b32.xlu0 %v187, 64
  %v190 = vpop.permute.xlu0 %189
  %v192 = vmul.f32 %v186, %v190
  %v193 = vtanh.pop %v192
  %195 = vrot.lane.b32.xlu0 %v193, 96
  %v196 = vpop.permute.xlu0 %195
  %v198 = vmul.f32 %v186, %v196
  %200 = vrot.lane.b32.xlu0 %v198, 32
  %v201 = vpop.permute.xlu0 %200
  %vm202 = vcmask 261120
  %v203 = vsel %vm202, %v201, 0
  %205 = vmatpush.msra.mxu0 0.0
  %206 = vmatpush.msra.mxu0 0.0
  %207 = vmatpush.msra.mxu0 0.0
  %208 = vmatpush.msra.mxu0 0.0
  %209 = vmatpush.msra.mxu0 0.0
  %210 = vmatpush.msra.mxu0 0.0
  %211 = vmatpush.msra.mxu0 0.0
  %212 = vmatpush.msra.mxu0 0.0
  %213 = vmatpush.msra.mxu0 0.0
  %214 = vmatpush.msra.mxu0 0.0
  %215 = vmatpush.msra.mxu0 0.0
  %216 = vmatpush.msra.mxu0 0.0
  %217 = vmatpush.msra.mxu0 %v152
  %218 = vmatpush.msra.mxu0 %v151
  %219 = vmatpush.msra.mxu0 %v150
  %220 = vmatpush.msra.mxu0 %v149
  %221 = vmatmul.f32.gmra.mxu0 %v203
  %v222 = vpop.f32.mrf.mxu0
  %v223 = vadd.f32 0.0, %v222
  %224 = vdwg.mxu0
  %v225 = vadd.f32 %v111, %v223
  %v226 = vxor.u32 %v225, 2147483648
  %v227 = vmul.f32 %v226, 1.442695
  %v228 = vpow.pop %v227
  %v229 = vadd.f32 %v228, 1.0
  %v230 = vrcp.pop %v229
  %v231 = vmul.f32 %v229, %v230
  %v232 = vsub.f32 1.0, %v231
  %v233 = vmul.f32 %v230, %v232
  %v234 = vadd.f32 %v230, %v233
  %vm235 = vweird.f32 %v229
  %vm236 = vweird.f32 %v230
  %vm237 = vmor %vm235, %vm236
  %v238 = vsel %vm237, %v230, %v234
  %v239 = vand.u32 2147483647, %v229
  %vm240 = vcmp.eq.f32.partialorder %v239, 8.507059e+37
  %v241 = vand.u32 %v229, 2147483648
  %v242 = vor.u32 1.1754944e-38, %v241
  %v243 = vsel %vm240, %v242, %v238
  %v244 = vmul.f32 1.0, %v243
  %245 = vmatpush.msra.mxu0 0.0
  %246 = vmatpush.msra.mxu0 0.0
  %247 = vmatpush.msra.mxu0 0.0
  %248 = vmatpush.msra.mxu0 0.0
  %249 = vmatpush.msra.mxu0 0.0
  %250 = vmatpush.msra.mxu0 0.0
  %251 = vmatpush.msra.mxu0 0.0
  %252 = vmatpush.msra.mxu0 0.0
  %253 = vmatpush.msra.mxu0 0.0
  %254 = vmatpush.msra.mxu0 0.0
  %255 = vmatpush.msra.mxu0 0.0
  %256 = vmatpush.msra.mxu0 0.0
  %257 = vmatpush.msra.mxu0 %v157
  %258 = vmatpush.msra.mxu0 %v156
  %259 = vmatpush.msra.mxu0 %v155
  %260 = vmatpush.msra.mxu0 %v154
  %261 = vmatmul.f32.gmra.mxu0 %v203
  %v262 = vpop.f32.mrf.mxu0
  %v263 = vadd.f32 0.0, %v262
  %264 = vdwg.mxu0
  %266 = vrot.lane.b32.xlu0 %v263, 32
  %v267 = vpop.permute.xlu0 %266
  %v269 = vadd.f32 %v111, %v267
  %v270 = vxor.u32 %v269, 2147483648
  %v271 = vmul.f32 %v270, 1.442695
  %v272 = vpow.pop %v271
  %v273 = vadd.f32 %v272, 1.0
  %v274 = vrcp.pop %v273
  %v275 = vmul.f32 %v273, %v274
  %v276 = vsub.f32 1.0, %v275
  %v277 = vmul.f32 %v274, %v276
  %v278 = vadd.f32 %v274, %v277
  %vm279 = vweird.f32 %v273
  %vm280 = vweird.f32 %v274
  %vm281 = vmor %vm279, %vm280
  %v282 = vsel %vm281, %v274, %v278
  %v283 = vand.u32 2147483647, %v273
  %vm284 = vcmp.eq.f32.partialorder %v283, 8.507059e+37
  %v285 = vand.u32 %v273, 2147483648
  %v286 = vor.u32 1.1754944e-38, %v285
  %v287 = vsel %vm284, %v286, %v282
  %v288 = vmul.f32 1.0, %v287
  %289 = vmatpush.msra.mxu0 0.0
  %290 = vmatpush.msra.mxu0 0.0
  %291 = vmatpush.msra.mxu0 0.0
  %292 = vmatpush.msra.mxu0 0.0
  %293 = vmatpush.msra.mxu0 0.0
  %294 = vmatpush.msra.mxu0 0.0
  %295 = vmatpush.msra.mxu0 0.0
  %296 = vmatpush.msra.mxu0 0.0
  %297 = vmatpush.msra.mxu0 0.0
  %298 = vmatpush.msra.mxu0 0.0
  %299 = vmatpush.msra.mxu0 0.0
  %300 = vmatpush.msra.mxu0 0.0
  %301 = vmatpush.msra.mxu0 %v162
  %302 = vmatpush.msra.mxu0 %v161
  %303 = vmatpush.msra.mxu0 %v160
  %304 = vmatpush.msra.mxu0 %v159
  %305 = vmatmul.f32.gmra.mxu0 %v203
  %v306 = vpop.f32.mrf.mxu0
  %v307 = vadd.f32 0.0, %v306
  %308 = vdwg.mxu0
  %310 = vrot.lane.b32.xlu0 %v307, 64
  %v311 = vpop.permute.xlu0 %310
  %v313 = vadd.f32 %v111, %v311
  %v314 = vtanh.pop %v313
  %315 = vmatpush.msra.mxu0 0.0
  %316 = vmatpush.msra.mxu0 0.0
  %317 = vmatpush.msra.mxu0 0.0
  %318 = vmatpush.msra.mxu0 0.0
  %319 = vmatpush.msra.mxu0 0.0
  %320 = vmatpush.msra.mxu0 0.0
  %321 = vmatpush.msra.mxu0 0.0
  %322 = vmatpush.msra.mxu0 0.0
  %323 = vmatpush.msra.mxu0 0.0
  %324 = vmatpush.msra.mxu0 0.0
  %325 = vmatpush.msra.mxu0 0.0
  %326 = vmatpush.msra.mxu0 0.0
  %327 = vmatpush.msra.mxu0 %v167
  %328 = vmatpush.msra.mxu0 %v166
  %329 = vmatpush.msra.mxu0 %v165
  %330 = vmatpush.msra.mxu0 %v164
  %331 = vmatmul.f32.gmra.mxu0 %v203
  %v332 = vpop.f32.mrf.mxu0
  %v333 = vadd.f32 0.0, %v332
  %334 = vdwg.mxu0
  %336 = vrot.lane.b32.xlu0 %v333, 96
  %v337 = vpop.permute.xlu0 %336
  %v339 = vadd.f32 %v111, %v337
  %v340 = vxor.u32 %v339, 2147483648
  %v341 = vmul.f32 %v340, 1.442695
  %v342 = vpow.pop %v341
  %v343 = vadd.f32 %v342, 1.0
  %v344 = vrcp.pop %v343
  %v345 = vmul.f32 %v343, %v344
  %v346 = vsub.f32 1.0, %v345
  %v347 = vmul.f32 %v344, %v346
  %v348 = vadd.f32 %v344, %v347
  %vm349 = vweird.f32 %v343
  %vm350 = vweird.f32 %v344
  %vm351 = vmor %vm349, %vm350
  %v352 = vsel %vm351, %v344, %v348
  %v353 = vand.u32 2147483647, %v343
  %vm354 = vcmp.eq.f32.partialorder %v353, 8.507059e+37
  %v355 = vand.u32 %v343, 2147483648
  %v356 = vor.u32 1.1754944e-38, %v355
  %v357 = vsel %vm354, %v356, %v352
  %v358 = vmul.f32 1.0, %v357
  %360 = vrot.lane.b32.xlu0 %v192, 32
  %v361 = vpop.permute.xlu0 %360
  %v363 = vmul.f32 %v288, %v361
  %365 = vrot.lane.b32.xlu0 %v314, 64
  %v366 = vpop.permute.xlu0 %365
  %v368 = vmul.f32 %v244, %v366
  %370 = vrot.lane.b32.xlu0 %v368, 32
  %v371 = vpop.permute.xlu0 %370
  %v373 = vadd.f32 %v363, %v371
  %v374 = vtanh.pop %v373
  %376 = vrot.lane.b32.xlu0 %v374, 64
  %v377 = vpop.permute.xlu0 %376
  %v379 = vmul.f32 %v358, %v377
  %381 = vrot.lane.b32.xlu0 %v379, 32
  %v382 = vpop.permute.xlu0 %381
  %v383 = vsel %vm202, %v382, 0
  %385 = vmatpush.msra.mxu0 0.0
  %386 = vmatpush.msra.mxu0 0.0
  %387 = vmatpush.msra.mxu0 0.0
  %388 = vmatpush.msra.mxu0 0.0
  %389 = vmatpush.msra.mxu0 0.0
  %390 = vmatpush.msra.mxu0 0.0
  %391 = vmatpush.msra.mxu0 0.0
  %392 = vmatpush.msra.mxu0 0.0
  %393 = vmatpush.msra.mxu0 0.0
  %394 = vmatpush.msra.mxu0 0.0
  %395 = vmatpush.msra.mxu0 0.0
  %396 = vmatpush.msra.mxu0 0.0
  %397 = vmatpush.msra.mxu0 %v152
  %398 = vmatpush.msra.mxu0 %v151
  %399 = vmatpush.msra.mxu0 %v150
  %400 = vmatpush.msra.mxu0 %v149
  %401 = vmatmul.f32.gmra.mxu0 %v383
  %v402 = vpop.f32.mrf.mxu0
  %v403 = vadd.f32 0.0, %v402
  %404 = vdwg.mxu0
  %v405 = vadd.f32 %v114, %v403
  %v406 = vxor.u32 %v405, 2147483648
  %v407 = vmul.f32 %v406, 1.442695
  %v408 = vpow.pop %v407
  %v409 = vadd.f32 %v408, 1.0
  %v410 = vrcp.pop %v409
  %v411 = vmul.f32 %v409, %v410
  %v412 = vsub.f32 1.0, %v411
  %v413 = vmul.f32 %v410, %v412
  %v414 = vadd.f32 %v410, %v413
  %vm415 = vweird.f32 %v409
  %vm416 = vweird.f32 %v410
  %vm417 = vmor %vm415, %vm416
  %v418 = vsel %vm417, %v410, %v414
  %v419 = vand.u32 2147483647, %v409
  %vm420 = vcmp.eq.f32.partialorder %v419, 8.507059e+37
  %v421 = vand.u32 %v409, 2147483648
  %v422 = vor.u32 1.1754944e-38, %v421
  %v423 = vsel %vm420, %v422, %v418
  %v424 = vmul.f32 1.0, %v423
  %425 = vmatpush.msra.mxu0 0.0
  %426 = vmatpush.msra.mxu0 0.0
  %427 = vmatpush.msra.mxu0 0.0
  %428 = vmatpush.msra.mxu0 0.0
  %429 = vmatpush.msra.mxu0 0.0
  %430 = vmatpush.msra.mxu0 0.0
  %431 = vmatpush.msra.mxu0 0.0
  %432 = vmatpush.msra.mxu0 0.0
  %433 = vmatpush.msra.mxu0 0.0
  %434 = vmatpush.msra.mxu0 0.0
  %435 = vmatpush.msra.mxu0 0.0
  %436 = vmatpush.msra.mxu0 0.0
  %437 = vmatpush.msra.mxu0 %v157
  %438 = vmatpush.msra.mxu0 %v156
  %439 = vmatpush.msra.mxu0 %v155
  %440 = vmatpush.msra.mxu0 %v154
  %441 = vmatmul.f32.gmra.mxu0 %v383
  %v442 = vpop.f32.mrf.mxu0
  %v443 = vadd.f32 0.0, %v442
  %444 = vdwg.mxu0
  %446 = vrot.lane.b32.xlu0 %v443, 32
  %v447 = vpop.permute.xlu0 %446
  %v449 = vadd.f32 %v114, %v447
  %v450 = vxor.u32 %v449, 2147483648
  %v451 = vmul.f32 %v450, 1.442695
  %v452 = vpow.pop %v451
  %v453 = vadd.f32 %v452, 1.0
  %v454 = vrcp.pop %v453
  %v455 = vmul.f32 %v453, %v454
  %v456 = vsub.f32 1.0, %v455
  %v457 = vmul.f32 %v454, %v456
  %v458 = vadd.f32 %v454, %v457
  %vm459 = vweird.f32 %v453
  %vm460 = vweird.f32 %v454
  %vm461 = vmor %vm459, %vm460
  %v462 = vsel %vm461, %v454, %v458
  %v463 = vand.u32 2147483647, %v453
  %vm464 = vcmp.eq.f32.partialorder %v463, 8.507059e+37
  %v465 = vand.u32 %v453, 2147483648
  %v466 = vor.u32 1.1754944e-38, %v465
  %v467 = vsel %vm464, %v466, %v462
  %v468 = vmul.f32 1.0, %v467
  %469 = vmatpush.msra.mxu0 0.0
  %470 = vmatpush.msra.mxu0 0.0
  %471 = vmatpush.msra.mxu0 0.0
  %472 = vmatpush.msra.mxu0 0.0
  %473 = vmatpush.msra.mxu0 0.0
  %474 = vmatpush.msra.mxu0 0.0
  %475 = vmatpush.msra.mxu0 0.0
  %476 = vmatpush.msra.mxu0 0.0
  %477 = vmatpush.msra.mxu0 0.0
  %478 = vmatpush.msra.mxu0 0.0
  %479 = vmatpush.msra.mxu0 0.0
  %480 = vmatpush.msra.mxu0 0.0
  %481 = vmatpush.msra.mxu0 %v162
  %482 = vmatpush.msra.mxu0 %v161
  %483 = vmatpush.msra.mxu0 %v160
  %484 = vmatpush.msra.mxu0 %v159
  %485 = vmatmul.f32.gmra.mxu0 %v383
  %v486 = vpop.f32.mrf.mxu0
  %v487 = vadd.f32 0.0, %v486
  %488 = vdwg.mxu0
  %490 = vrot.lane.b32.xlu0 %v487, 64
  %v491 = vpop.permute.xlu0 %490
  %v493 = vadd.f32 %v114, %v491
  %v494 = vtanh.pop %v493
  %495 = vmatpush.msra.mxu0 0.0
  %496 = vmatpush.msra.mxu0 0.0
  %497 = vmatpush.msra.mxu0 0.0
  %498 = vmatpush.msra.mxu0 0.0
  %499 = vmatpush.msra.mxu0 0.0
  %500 = vmatpush.msra.mxu0 0.0
  %501 = vmatpush.msra.mxu0 0.0
  %502 = vmatpush.msra.mxu0 0.0
  %503 = vmatpush.msra.mxu0 0.0
  %504 = vmatpush.msra.mxu0 0.0
  %505 = vmatpush.msra.mxu0 0.0
  %506 = vmatpush.msra.mxu0 0.0
  %507 = vmatpush.msra.mxu0 %v167
  %508 = vmatpush.msra.mxu0 %v166
  %509 = vmatpush.msra.mxu0 %v165
  %510 = vmatpush.msra.mxu0 %v164
  %511 = vmatmul.f32.gmra.mxu0 %v383
  %v512 = vpop.f32.mrf.mxu0
  %v513 = vadd.f32 0.0, %v512
  %514 = vdwg.mxu0
  %516 = vrot.lane.b32.xlu0 %v513, 96
  %v517 = vpop.permute.xlu0 %516
  %v519 = vadd.f32 %v114, %v517
  %v520 = vxor.u32 %v519, 2147483648
  %v521 = vmul.f32 %v520, 1.442695
  %v522 = vpow.pop %v521
  %v523 = vadd.f32 %v522, 1.0
  %v524 = vrcp.pop %v523
  %v525 = vmul.f32 %v523, %v524
  %v526 = vsub.f32 1.0, %v525
  %v527 = vmul.f32 %v524, %v526
  %v528 = vadd.f32 %v524, %v527
  %vm529 = vweird.f32 %v523
  %vm530 = vweird.f32 %v524
  %vm531 = vmor %vm529, %vm530
  %v532 = vsel %vm531, %v524, %v528
  %v533 = vand.u32 2147483647, %v523
  %vm534 = vcmp.eq.f32.partialorder %v533, 8.507059e+37
  %v535 = vand.u32 %v523, 2147483648
  %v536 = vor.u32 1.1754944e-38, %v535
  %v537 = vsel %vm534, %v536, %v532
  %v538 = vmul.f32 1.0, %v537
  %v539 = vmul.f32 %v468, %v373
  %541 = vrot.lane.b32.xlu0 %v494, 64
  %v542 = vpop.permute.xlu0 %541
  %v544 = vmul.f32 %v424, %v542
  %546 = vrot.lane.b32.xlu0 %v544, 32
  %v547 = vpop.permute.xlu0 %546
  %v549 = vadd.f32 %v539, %v547
  %v550 = vtanh.pop %v549
  %552 = vrot.lane.b32.xlu0 %v550, 64
  %v553 = vpop.permute.xlu0 %552
  %v555 = vmul.f32 %v538, %v553
  %557 = vrot.lane.b32.xlu0 %v555, 32
  %v558 = vpop.permute.xlu0 %557
  %v559 = vsel %vm202, %v558, 0
  %561 = vmatpush.msra.mxu0 0.0
  %562 = vmatpush.msra.mxu0 0.0
  %563 = vmatpush.msra.mxu0 0.0
  %564 = vmatpush.msra.mxu0 0.0
  %565 = vmatpush.msra.mxu0 0.0
  %566 = vmatpush.msra.mxu0 0.0
  %567 = vmatpush.msra.mxu0 0.0
  %568 = vmatpush.msra.mxu0 0.0
  %569 = vmatpush.msra.mxu0 0.0
  %570 = vmatpush.msra.mxu0 0.0
  %571 = vmatpush.msra.mxu0 0.0
  %572 = vmatpush.msra.mxu0 0.0
  %573 = vmatpush.msra.mxu0 %v152
  %574 = vmatpush.msra.mxu0 %v151
  %575 = vmatpush.msra.mxu0 %v150
  %576 = vmatpush.msra.mxu0 %v149
  %577 = vmatmul.f32.gmra.mxu0 %v559
  %v578 = vpop.f32.mrf.mxu0
  %v579 = vadd.f32 0.0, %v578
  %580 = vdwg.mxu0
  %v581 = vadd.f32 %v117, %v579
  %v582 = vxor.u32 %v581, 2147483648
  %v583 = vmul.f32 %v582, 1.442695
  %v584 = vpow.pop %v583
  %v585 = vadd.f32 %v584, 1.0
  %v586 = vrcp.pop %v585
  %v587 = vmul.f32 %v585, %v586
  %v588 = vsub.f32 1.0, %v587
  %v589 = vmul.f32 %v586, %v588
  %v590 = vadd.f32 %v586, %v589
  %vm591 = vweird.f32 %v585
  %vm592 = vweird.f32 %v586
  %vm593 = vmor %vm591, %vm592
  %v594 = vsel %vm593, %v586, %v590
  %v595 = vand.u32 2147483647, %v585
  %vm596 = vcmp.eq.f32.partialorder %v595, 8.507059e+37
  %v597 = vand.u32 %v585, 2147483648
  %v598 = vor.u32 1.1754944e-38, %v597
  %v599 = vsel %vm596, %v598, %v594
  %v600 = vmul.f32 1.0, %v599
  %601 = vmatpush.msra.mxu0 0.0
  %602 = vmatpush.msra.mxu0 0.0
  %603 = vmatpush.msra.mxu0 0.0
  %604 = vmatpush.msra.mxu0 0.0
  %605 = vmatpush.msra.mxu0 0.0
  %606 = vmatpush.msra.mxu0 0.0
  %607 = vmatpush.msra.mxu0 0.0
  %608 = vmatpush.msra.mxu0 0.0
  %609 = vmatpush.msra.mxu0 0.0
  %610 = vmatpush.msra.mxu0 0.0
  %611 = vmatpush.msra.mxu0 0.0
  %612 = vmatpush.msra.mxu0 0.0
  %613 = vmatpush.msra.mxu0 %v157
  %614 = vmatpush.msra.mxu0 %v156
  %615 = vmatpush.msra.mxu0 %v155
  %616 = vmatpush.msra.mxu0 %v154
  %617 = vmatmul.f32.gmra.mxu0 %v559
  %v618 = vpop.f32.mrf.mxu0
  %v619 = vadd.f32 0.0, %v618
  %620 = vdwg.mxu0
  %622 = vrot.lane.b32.xlu0 %v619, 32
  %v623 = vpop.permute.xlu0 %622
  %v625 = vadd.f32 %v117, %v623
  %v626 = vxor.u32 %v625, 2147483648
  %v627 = vmul.f32 %v626, 1.442695
  %v628 = vpow.pop %v627
  %v629 = vadd.f32 %v628, 1.0
  %v630 = vrcp.pop %v629
  %v631 = vmul.f32 %v629, %v630
  %v632 = vsub.f32 1.0, %v631
  %v633 = vmul.f32 %v630, %v632
  %v634 = vadd.f32 %v630, %v633
  %vm635 = vweird.f32 %v629
  %vm636 = vweird.f32 %v630
  %vm637 = vmor %vm635, %vm636
  %v638 = vsel %vm637, %v630, %v634
  %v639 = vand.u32 2147483647, %v629
  %vm640 = vcmp.eq.f32.partialorder %v639, 8.507059e+37
  %v641 = vand.u32 %v629, 2147483648
  %v642 = vor.u32 1.1754944e-38, %v641
  %v643 = vsel %vm640, %v642, %v638
  %v644 = vmul.f32 1.0, %v643
  %645 = vmatpush.msra.mxu0 0.0
  %646 = vmatpush.msra.mxu0 0.0
  %647 = vmatpush.msra.mxu0 0.0
  %648 = vmatpush.msra.mxu0 0.0
  %649 = vmatpush.msra.mxu0 0.0
  %650 = vmatpush.msra.mxu0 0.0
  %651 = vmatpush.msra.mxu0 0.0
  %652 = vmatpush.msra.mxu0 0.0
  %653 = vmatpush.msra.mxu0 0.0
  %654 = vmatpush.msra.mxu0 0.0
  %655 = vmatpush.msra.mxu0 0.0
  %656 = vmatpush.msra.mxu0 0.0
  %657 = vmatpush.msra.mxu0 %v162
  %658 = vmatpush.msra.mxu0 %v161
  %659 = vmatpush.msra.mxu0 %v160
  %660 = vmatpush.msra.mxu0 %v159
  %661 = vmatmul.f32.gmra.mxu0 %v559
  %v662 = vpop.f32.mrf.mxu0
  %v663 = vadd.f32 0.0, %v662
  %664 = vdwg.mxu0
  %666 = vrot.lane.b32.xlu0 %v663, 64
  %v667 = vpop.permute.xlu0 %666
  %v669 = vadd.f32 %v117, %v667
  %v670 = vtanh.pop %v669
  %671 = vmatpush.msra.mxu0 0.0
  %672 = vmatpush.msra.mxu0 0.0
  %673 = vmatpush.msra.mxu0 0.0
  %674 = vmatpush.msra.mxu0 0.0
  %675 = vmatpush.msra.mxu0 0.0
  %676 = vmatpush.msra.mxu0 0.0
  %677 = vmatpush.msra.mxu0 0.0
  %678 = vmatpush.msra.mxu0 0.0
  %679 = vmatpush.msra.mxu0 0.0
  %680 = vmatpush.msra.mxu0 0.0
  %681 = vmatpush.msra.mxu0 0.0
  %682 = vmatpush.msra.mxu0 0.0
  %683 = vmatpush.msra.mxu0 %v167
  %684 = vmatpush.msra.mxu0 %v166
  %685 = vmatpush.msra.mxu0 %v165
  %686 = vmatpush.msra.mxu0 %v164
  %687 = vmatmul.f32.gmra.mxu0 %v559
  %v688 = vpop.f32.mrf.mxu0
  %v689 = vadd.f32 0.0, %v688
  %690 = vdwg.mxu0
  %692 = vrot.lane.b32.xlu0 %v689, 96
  %v693 = vpop.permute.xlu0 %692
  %v695 = vadd.f32 %v117, %v693
  %v696 = vxor.u32 %v695, 2147483648
  %v697 = vmul.f32 %v696, 1.442695
  %v698 = vpow.pop %v697
  %v699 = vadd.f32 %v698, 1.0
  %v700 = vrcp.pop %v699
  %v701 = vmul.f32 %v699, %v700
  %v702 = vsub.f32 1.0, %v701
  %v703 = vmul.f32 %v700, %v702
  %v704 = vadd.f32 %v700, %v703
  %vm705 = vweird.f32 %v699
  %vm706 = vweird.f32 %v700
  %vm707 = vmor %vm705, %vm706
  %v708 = vsel %vm707, %v700, %v704
  %v709 = vand.u32 2147483647, %v699
  %vm710 = vcmp.eq.f32.partialorder %v709, 8.507059e+37
  %v711 = vand.u32 %v699, 2147483648
  %v712 = vor.u32 1.1754944e-38, %v711
  %v713 = vsel %vm710, %v712, %v708
  %v714 = vmul.f32 1.0, %v713
  %v715 = vmul.f32 %v644, %v549
  %717 = vrot.lane.b32.xlu0 %v670, 64
  %v718 = vpop.permute.xlu0 %717
  %v720 = vmul.f32 %v600, %v718
  %722 = vrot.lane.b32.xlu0 %v720, 32
  %v723 = vpop.permute.xlu0 %722
  %v725 = vadd.f32 %v715, %v723
  %v726 = vtanh.pop %v725
  %728 = vrot.lane.b32.xlu0 %v726, 64
  %v729 = vpop.permute.xlu0 %728
  %v731 = vmul.f32 %v714, %v729
  %733 = vrot.lane.b32.xlu0 %v731, 32
  %v734 = vpop.permute.xlu0 %733
  %v735 = vsel %vm202, %v734, 0
  %737 = vmatpush.msra.mxu0 0.0
  %738 = vmatpush.msra.mxu0 0.0
  %739 = vmatpush.msra.mxu0 0.0
  %740 = vmatpush.msra.mxu0 0.0
  %741 = vmatpush.msra.mxu0 0.0
  %742 = vmatpush.msra.mxu0 0.0
  %743 = vmatpush.msra.mxu0 0.0
  %744 = vmatpush.msra.mxu0 0.0
  %745 = vmatpush.msra.mxu0 0.0
  %746 = vmatpush.msra.mxu0 0.0
  %747 = vmatpush.msra.mxu0 0.0
  %748 = vmatpush.msra.mxu0 0.0
  %749 = vmatpush.msra.mxu0 %v152
  %750 = vmatpush.msra.mxu0 %v151
  %751 = vmatpush.msra.mxu0 %v150
  %752 = vmatpush.msra.mxu0 %v149
  %753 = vmatmul.f32.gmra.mxu0 %v735
  %v754 = vpop.f32.mrf.mxu0
  %v755 = vadd.f32 0.0, %v754
  %756 = vdwg.mxu0
  %v757 = vadd.f32 %v120, %v755
  %v758 = vxor.u32 %v757, 2147483648
  %v759 = vmul.f32 %v758, 1.442695
  %v760 = vpow.pop %v759
  %v761 = vadd.f32 %v760, 1.0
  %v762 = vrcp.pop %v761
  %v763 = vmul.f32 %v761, %v762
  %v764 = vsub.f32 1.0, %v763
  %v765 = vmul.f32 %v762, %v764
  %v766 = vadd.f32 %v762, %v765
  %vm767 = vweird.f32 %v761
  %vm768 = vweird.f32 %v762
  %vm769 = vmor %vm767, %vm768
  %v770 = vsel %vm769, %v762, %v766
  %v771 = vand.u32 2147483647, %v761
  %vm772 = vcmp.eq.f32.partialorder %v771, 8.507059e+37
  %v773 = vand.u32 %v761, 2147483648
  %v774 = vor.u32 1.1754944e-38, %v773
  %v775 = vsel %vm772, %v774, %v770
  %v776 = vmul.f32 1.0, %v775
  %777 = vmatpush.msra.mxu0 0.0
  %778 = vmatpush.msra.mxu0 0.0
  %779 = vmatpush.msra.mxu0 0.0
  %780 = vmatpush.msra.mxu0 0.0
  %781 = vmatpush.msra.mxu0 0.0
  %782 = vmatpush.msra.mxu0 0.0
  %783 = vmatpush.msra.mxu0 0.0
  %784 = vmatpush.msra.mxu0 0.0
  %785 = vmatpush.msra.mxu0 0.0
  %786 = vmatpush.msra.mxu0 0.0
  %787 = vmatpush.msra.mxu0 0.0
  %788 = vmatpush.msra.mxu0 0.0
  %789 = vmatpush.msra.mxu0 %v157
  %790 = vmatpush.msra.mxu0 %v156
  %791 = vmatpush.msra.mxu0 %v155
  %792 = vmatpush.msra.mxu0 %v154
  %793 = vmatmul.f32.gmra.mxu0 %v735
  %v794 = vpop.f32.mrf.mxu0
  %v795 = vadd.f32 0.0, %v794
  %796 = vdwg.mxu0
  %798 = vrot.lane.b32.xlu0 %v795, 32
  %v799 = vpop.permute.xlu0 %798
  %v801 = vadd.f32 %v120, %v799
  %v802 = vxor.u32 %v801, 2147483648
  %v803 = vmul.f32 %v802, 1.442695
  %v804 = vpow.pop %v803
  %v805 = vadd.f32 %v804, 1.0
  %v806 = vrcp.pop %v805
  %v807 = vmul.f32 %v805, %v806
  %v808 = vsub.f32 1.0, %v807
  %v809 = vmul.f32 %v806, %v808
  %v810 = vadd.f32 %v806, %v809
  %vm811 = vweird.f32 %v805
  %vm812 = vweird.f32 %v806
  %vm813 = vmor %vm811, %vm812
  %v814 = vsel %vm813, %v806, %v810
  %v815 = vand.u32 2147483647, %v805
  %vm816 = vcmp.eq.f32.partialorder %v815, 8.507059e+37
  %v817 = vand.u32 %v805, 2147483648
  %v818 = vor.u32 1.1754944e-38, %v817
  %v819 = vsel %vm816, %v818, %v814
  %v820 = vmul.f32 1.0, %v819
  %821 = vmatpush.msra.mxu0 0.0
  %822 = vmatpush.msra.mxu0 0.0
  %823 = vmatpush.msra.mxu0 0.0
  %824 = vmatpush.msra.mxu0 0.0
  %825 = vmatpush.msra.mxu0 0.0
  %826 = vmatpush.msra.mxu0 0.0
  %827 = vmatpush.msra.mxu0 0.0
  %828 = vmatpush.msra.mxu0 0.0
  %829 = vmatpush.msra.mxu0 0.0
  %830 = vmatpush.msra.mxu0 0.0
  %831 = vmatpush.msra.mxu0 0.0
  %832 = vmatpush.msra.mxu0 0.0
  %833 = vmatpush.msra.mxu0 %v162
  %834 = vmatpush.msra.mxu0 %v161
  %835 = vmatpush.msra.mxu0 %v160
  %836 = vmatpush.msra.mxu0 %v159
  %837 = vmatmul.f32.gmra.mxu0 %v735
  %v838 = vpop.f32.mrf.mxu0
  %v839 = vadd.f32 0.0, %v838
  %840 = vdwg.mxu0
  %842 = vrot.lane.b32.xlu0 %v839, 64
  %v843 = vpop.permute.xlu0 %842
  %v845 = vadd.f32 %v120, %v843
  %v846 = vtanh.pop %v845
  %847 = vmatpush.msra.mxu0 0.0
  %848 = vmatpush.msra.mxu0 0.0
  %849 = vmatpush.msra.mxu0 0.0
  %850 = vmatpush.msra.mxu0 0.0
  %851 = vmatpush.msra.mxu0 0.0
  %852 = vmatpush.msra.mxu0 0.0
  %853 = vmatpush.msra.mxu0 0.0
  %854 = vmatpush.msra.mxu0 0.0
  %855 = vmatpush.msra.mxu0 0.0
  %856 = vmatpush.msra.mxu0 0.0
  %857 = vmatpush.msra.mxu0 0.0
  %858 = vmatpush.msra.mxu0 0.0
  %859 = vmatpush.msra.mxu0 %v167
  %860 = vmatpush.msra.mxu0 %v166
  %861 = vmatpush.msra.mxu0 %v165
  %862 = vmatpush.msra.mxu0 %v164
  %863 = vmatmul.f32.gmra.mxu0 %v735
  %v864 = vpop.f32.mrf.mxu0
  %v865 = vadd.f32 0.0, %v864
  %866 = vdwg.mxu0
  %868 = vrot.lane.b32.xlu0 %v865, 96
  %v869 = vpop.permute.xlu0 %868
  %v871 = vadd.f32 %v120, %v869
  %v872 = vxor.u32 %v871, 2147483648
  %v873 = vmul.f32 %v872, 1.442695
  %v874 = vpow.pop %v873
  %v875 = vadd.f32 %v874, 1.0
  %v876 = vrcp.pop %v875
  %v877 = vmul.f32 %v875, %v876
  %v878 = vsub.f32 1.0, %v877
  %v879 = vmul.f32 %v876, %v878
  %v880 = vadd.f32 %v876, %v879
  %vm881 = vweird.f32 %v875
  %vm882 = vweird.f32 %v876
  %vm883 = vmor %vm881, %vm882
  %v884 = vsel %vm883, %v876, %v880
  %v885 = vand.u32 2147483647, %v875
  %vm886 = vcmp.eq.f32.partialorder %v885, 8.507059e+37
  %v887 = vand.u32 %v875, 2147483648
  %v888 = vor.u32 1.1754944e-38, %v887
  %v889 = vsel %vm886, %v888, %v884
  %v890 = vmul.f32 1.0, %v889
  %v891 = vmul.f32 %v820, %v725
  %893 = vrot.lane.b32.xlu0 %v846, 64
  %v894 = vpop.permute.xlu0 %893
  %v896 = vmul.f32 %v776, %v894
  %898 = vrot.lane.b32.xlu0 %v896, 32
  %v899 = vpop.permute.xlu0 %898
  %v901 = vadd.f32 %v891, %v899
  %v902 = vtanh.pop %v901
  %904 = vrot.lane.b32.xlu0 %v902, 64
  %v905 = vpop.permute.xlu0 %904
  %v907 = vmul.f32 %v890, %v905
  %909 = vrot.lane.b32.xlu0 %v907, 32
  %v910 = vpop.permute.xlu0 %909
  %v911 = vsel %vm202, %v910, 0
  %913 = vmatpush.msra.mxu0 0.0
  %914 = vmatpush.msra.mxu0 0.0
  %915 = vmatpush.msra.mxu0 0.0
  %916 = vmatpush.msra.mxu0 0.0
  %917 = vmatpush.msra.mxu0 0.0
  %918 = vmatpush.msra.mxu0 0.0
  %919 = vmatpush.msra.mxu0 0.0
  %920 = vmatpush.msra.mxu0 0.0
  %921 = vmatpush.msra.mxu0 0.0
  %922 = vmatpush.msra.mxu0 0.0
  %923 = vmatpush.msra.mxu0 0.0
  %924 = vmatpush.msra.mxu0 0.0
  %925 = vmatpush.msra.mxu0 %v152
  %926 = vmatpush.msra.mxu0 %v151
  %927 = vmatpush.msra.mxu0 %v150
  %928 = vmatpush.msra.mxu0 %v149
  %929 = vmatmul.f32.gmra.mxu0 %v911
  %v930 = vpop.f32.mrf.mxu0
  %v931 = vadd.f32 0.0, %v930
  %932 = vdwg.mxu0
  %v933 = vadd.f32 %v123, %v931
  %v934 = vxor.u32 %v933, 2147483648
  %v935 = vmul.f32 %v934, 1.442695
  %v936 = vpow.pop %v935
  %v937 = vadd.f32 %v936, 1.0
  %v938 = vrcp.pop %v937
  %v939 = vmul.f32 %v937, %v938
  %v940 = vsub.f32 1.0, %v939
  %v941 = vmul.f32 %v938, %v940
  %v942 = vadd.f32 %v938, %v941
  %vm943 = vweird.f32 %v937
  %vm944 = vweird.f32 %v938
  %vm945 = vmor %vm943, %vm944
  %v946 = vsel %vm945, %v938, %v942
  %v947 = vand.u32 2147483647, %v937
  %vm948 = vcmp.eq.f32.partialorder %v947, 8.507059e+37
  %v949 = vand.u32 %v937, 2147483648
  %v950 = vor.u32 1.1754944e-38, %v949
  %v951 = vsel %vm948, %v950, %v946
  %v952 = vmul.f32 1.0, %v951
  %953 = vmatpush.msra.mxu0 0.0
  %954 = vmatpush.msra.mxu0 0.0
  %955 = vmatpush.msra.mxu0 0.0
  %956 = vmatpush.msra.mxu0 0.0
  %957 = vmatpush.msra.mxu0 0.0
  %958 = vmatpush.msra.mxu0 0.0
  %959 = vmatpush.msra.mxu0 0.0
  %960 = vmatpush.msra.mxu0 0.0
  %961 = vmatpush.msra.mxu0 0.0
  %962 = vmatpush.msra.mxu0 0.0
  %963 = vmatpush.msra.mxu0 0.0
  %964 = vmatpush.msra.mxu0 0.0
  %965 = vmatpush.msra.mxu0 %v157
  %966 = vmatpush.msra.mxu0 %v156
  %967 = vmatpush.msra.mxu0 %v155
  %968 = vmatpush.msra.mxu0 %v154
  %969 = vmatmul.f32.gmra.mxu0 %v911
  %v970 = vpop.f32.mrf.mxu0
  %v971 = vadd.f32 0.0, %v970
  %972 = vdwg.mxu0
  %974 = vrot.lane.b32.xlu0 %v971, 32
  %v975 = vpop.permute.xlu0 %974
  %v977 = vadd.f32 %v123, %v975
  %v978 = vxor.u32 %v977, 2147483648
  %v979 = vmul.f32 %v978, 1.442695
  %v980 = vpow.pop %v979
  %v981 = vadd.f32 %v980, 1.0
  %v982 = vrcp.pop %v981
  %v983 = vmul.f32 %v981, %v982
  %v984 = vsub.f32 1.0, %v983
  %v985 = vmul.f32 %v982, %v984
  %v986 = vadd.f32 %v982, %v985
  %vm987 = vweird.f32 %v981
  %vm988 = vweird.f32 %v982
  %vm989 = vmor %vm987, %vm988
  %v990 = vsel %vm989, %v982, %v986
  %v991 = vand.u32 2147483647, %v981
  %vm992 = vcmp.eq.f32.partialorder %v991, 8.507059e+37
  %v993 = vand.u32 %v981, 2147483648
  %v994 = vor.u32 1.1754944e-38, %v993
  %v995 = vsel %vm992, %v994, %v990
  %v996 = vmul.f32 1.0, %v995
  %997 = vmatpush.msra.mxu0 0.0
  %998 = vmatpush.msra.mxu0 0.0
  %999 = vmatpush.msra.mxu0 0.0
  %1000 = vmatpush.msra.mxu0 0.0
  %1001 = vmatpush.msra.mxu0 0.0
  %1002 = vmatpush.msra.mxu0 0.0
  %1003 = vmatpush.msra.mxu0 0.0
  %1004 = vmatpush.msra.mxu0 0.0
  %1005 = vmatpush.msra.mxu0 0.0
  %1006 = vmatpush.msra.mxu0 0.0
  %1007 = vmatpush.msra.mxu0 0.0
  %1008 = vmatpush.msra.mxu0 0.0
  %1009 = vmatpush.msra.mxu0 %v162
  %1010 = vmatpush.msra.mxu0 %v161
  %1011 = vmatpush.msra.mxu0 %v160
  %1012 = vmatpush.msra.mxu0 %v159
  %1013 = vmatmul.f32.gmra.mxu0 %v911
  %v1014 = vpop.f32.mrf.mxu0
  %v1015 = vadd.f32 0.0, %v1014
  %1016 = vdwg.mxu0
  %1018 = vrot.lane.b32.xlu0 %v1015, 64
  %v1019 = vpop.permute.xlu0 %1018
  %v1021 = vadd.f32 %v123, %v1019
  %v1022 = vtanh.pop %v1021
  %1023 = vmatpush.msra.mxu0 0.0
  %1024 = vmatpush.msra.mxu0 0.0
  %1025 = vmatpush.msra.mxu0 0.0
  %1026 = vmatpush.msra.mxu0 0.0
  %1027 = vmatpush.msra.mxu0 0.0
  %1028 = vmatpush.msra.mxu0 0.0
  %1029 = vmatpush.msra.mxu0 0.0
  %1030 = vmatpush.msra.mxu0 0.0
  %1031 = vmatpush.msra.mxu0 0.0
  %1032 = vmatpush.msra.mxu0 0.0
  %1033 = vmatpush.msra.mxu0 0.0
  %1034 = vmatpush.msra.mxu0 0.0
  %1035 = vmatpush.msra.mxu0 %v167
  %1036 = vmatpush.msra.mxu0 %v166
  %1037 = vmatpush.msra.mxu0 %v165
  %1038 = vmatpush.msra.mxu0 %v164
  %1039 = vmatmul.f32.gmra.mxu0 %v911
  %v1040 = vpop.f32.mrf.mxu0
  %v1041 = vadd.f32 0.0, %v1040
  %1042 = vdwg.mxu0
  %1044 = vrot.lane.b32.xlu0 %v1041, 96
  %v1045 = vpop.permute.xlu0 %1044
  %v1047 = vadd.f32 %v123, %v1045
  %v1048 = vxor.u32 %v1047, 2147483648
  %v1049 = vmul.f32 %v1048, 1.442695
  %v1050 = vpow.pop %v1049
  %v1051 = vadd.f32 %v1050, 1.0
  %v1052 = vrcp.pop %v1051
  %v1053 = vmul.f32 %v1051, %v1052
  %v1054 = vsub.f32 1.0, %v1053
  %v1055 = vmul.f32 %v1052, %v1054
  %v1056 = vadd.f32 %v1052, %v1055
  %vm1057 = vweird.f32 %v1051
  %vm1058 = vweird.f32 %v1052
  %vm1059 = vmor %vm1057, %vm1058
  %v1060 = vsel %vm1059, %v1052, %v1056
  %v1061 = vand.u32 2147483647, %v1051
  %vm1062 = vcmp.eq.f32.partialorder %v1061, 8.507059e+37
  %v1063 = vand.u32 %v1051, 2147483648
  %v1064 = vor.u32 1.1754944e-38, %v1063
  %v1065 = vsel %vm1062, %v1064, %v1060
  %v1066 = vmul.f32 1.0, %v1065
  %v1067 = vmul.f32 %v996, %v901
  %1069 = vrot.lane.b32.xlu0 %v1022, 64
  %v1070 = vpop.permute.xlu0 %1069
  %v1072 = vmul.f32 %v952, %v1070
  %1074 = vrot.lane.b32.xlu0 %v1072, 32
  %v1075 = vpop.permute.xlu0 %1074
  %v1077 = vadd.f32 %v1067, %v1075
  %v1078 = vtanh.pop %v1077
  %1080 = vrot.lane.b32.xlu0 %v1078, 64
  %v1081 = vpop.permute.xlu0 %1080
  %v1083 = vmul.f32 %v1066, %v1081
  %1085 = vrot.lane.b32.xlu0 %v1083, 32
  %v1086 = vpop.permute.xlu0 %1085
  %v1087 = vsel %vm202, %v1086, 0
  %1089 = vmatpush.msra.mxu0 0.0
  %1090 = vmatpush.msra.mxu0 0.0
  %1091 = vmatpush.msra.mxu0 0.0
  %1092 = vmatpush.msra.mxu0 0.0
  %1093 = vmatpush.msra.mxu0 0.0
  %1094 = vmatpush.msra.mxu0 0.0
  %1095 = vmatpush.msra.mxu0 0.0
  %1096 = vmatpush.msra.mxu0 0.0
  %1097 = vmatpush.msra.mxu0 0.0
  %1098 = vmatpush.msra.mxu0 0.0
  %1099 = vmatpush.msra.mxu0 0.0
  %1100 = vmatpush.msra.mxu0 0.0
  %1101 = vmatpush.msra.mxu0 %v152
  %1102 = vmatpush.msra.mxu0 %v151
  %1103 = vmatpush.msra.mxu0 %v150
  %1104 = vmatpush.msra.mxu0 %v149
  %1105 = vmatmul.f32.gmra.mxu0 %v1087
  %v1106 = vpop.f32.mrf.mxu0
  %v1107 = vadd.f32 0.0, %v1106
  %1108 = vdwg.mxu0
  %v1109 = vadd.f32 %v126, %v1107
  %v1110 = vxor.u32 %v1109, 2147483648
  %v1111 = vmul.f32 %v1110, 1.442695
  %v1112 = vpow.pop %v1111
  %v1113 = vadd.f32 %v1112, 1.0
  %v1114 = vrcp.pop %v1113
  %v1115 = vmul.f32 %v1113, %v1114
  %v1116 = vsub.f32 1.0, %v1115
  %v1117 = vmul.f32 %v1114, %v1116
  %v1118 = vadd.f32 %v1114, %v1117
  %vm1119 = vweird.f32 %v1113
  %vm1120 = vweird.f32 %v1114
  %vm1121 = vmor %vm1119, %vm1120
  %v1122 = vsel %vm1121, %v1114, %v1118
  %v1123 = vand.u32 2147483647, %v1113
  %vm1124 = vcmp.eq.f32.partialorder %v1123, 8.507059e+37
  %v1125 = vand.u32 %v1113, 2147483648
  %v1126 = vor.u32 1.1754944e-38, %v1125
  %v1127 = vsel %vm1124, %v1126, %v1122
  %v1128 = vmul.f32 1.0, %v1127
  %1129 = vmatpush.msra.mxu0 0.0
  %1130 = vmatpush.msra.mxu0 0.0
  %1131 = vmatpush.msra.mxu0 0.0
  %1132 = vmatpush.msra.mxu0 0.0
  %1133 = vmatpush.msra.mxu0 0.0
  %1134 = vmatpush.msra.mxu0 0.0
  %1135 = vmatpush.msra.mxu0 0.0
  %1136 = vmatpush.msra.mxu0 0.0
  %1137 = vmatpush.msra.mxu0 0.0
  %1138 = vmatpush.msra.mxu0 0.0
  %1139 = vmatpush.msra.mxu0 0.0
  %1140 = vmatpush.msra.mxu0 0.0
  %1141 = vmatpush.msra.mxu0 %v157
  %1142 = vmatpush.msra.mxu0 %v156
  %1143 = vmatpush.msra.mxu0 %v155
  %1144 = vmatpush.msra.mxu0 %v154
  %1145 = vmatmul.f32.gmra.mxu0 %v1087
  %v1146 = vpop.f32.mrf.mxu0
  %v1147 = vadd.f32 0.0, %v1146
  %1148 = vdwg.mxu0
  %1150 = vrot.lane.b32.xlu0 %v1147, 32
  %v1151 = vpop.permute.xlu0 %1150
  %v1153 = vadd.f32 %v126, %v1151
  %v1154 = vxor.u32 %v1153, 2147483648
  %v1155 = vmul.f32 %v1154, 1.442695
  %v1156 = vpow.pop %v1155
  %v1157 = vadd.f32 %v1156, 1.0
  %v1158 = vrcp.pop %v1157
  %v1159 = vmul.f32 %v1157, %v1158
  %v1160 = vsub.f32 1.0, %v1159
  %v1161 = vmul.f32 %v1158, %v1160
  %v1162 = vadd.f32 %v1158, %v1161
  %vm1163 = vweird.f32 %v1157
  %vm1164 = vweird.f32 %v1158
  %vm1165 = vmor %vm1163, %vm1164
  %v1166 = vsel %vm1165, %v1158, %v1162
  %v1167 = vand.u32 2147483647, %v1157
  %vm1168 = vcmp.eq.f32.partialorder %v1167, 8.507059e+37
  %v1169 = vand.u32 %v1157, 2147483648
  %v1170 = vor.u32 1.1754944e-38, %v1169
  %v1171 = vsel %vm1168, %v1170, %v1166
  %v1172 = vmul.f32 1.0, %v1171
  %1173 = vmatpush.msra.mxu0 0.0
  %1174 = vmatpush.msra.mxu0 0.0
  %1175 = vmatpush.msra.mxu0 0.0
  %1176 = vmatpush.msra.mxu0 0.0
  %1177 = vmatpush.msra.mxu0 0.0
  %1178 = vmatpush.msra.mxu0 0.0
  %1179 = vmatpush.msra.mxu0 0.0
  %1180 = vmatpush.msra.mxu0 0.0
  %1181 = vmatpush.msra.mxu0 0.0
  %1182 = vmatpush.msra.mxu0 0.0
  %1183 = vmatpush.msra.mxu0 0.0
  %1184 = vmatpush.msra.mxu0 0.0
  %1185 = vmatpush.msra.mxu0 %v162
  %1186 = vmatpush.msra.mxu0 %v161
  %1187 = vmatpush.msra.mxu0 %v160
  %1188 = vmatpush.msra.mxu0 %v159
  %1189 = vmatmul.f32.gmra.mxu0 %v1087
  %v1190 = vpop.f32.mrf.mxu0
  %v1191 = vadd.f32 0.0, %v1190
  %1192 = vdwg.mxu0
  %1194 = vrot.lane.b32.xlu0 %v1191, 64
  %v1195 = vpop.permute.xlu0 %1194
  %v1197 = vadd.f32 %v126, %v1195
  %v1198 = vtanh.pop %v1197
  %1199 = vmatpush.msra.mxu0 0.0
  %1200 = vmatpush.msra.mxu0 0.0
  %1201 = vmatpush.msra.mxu0 0.0
  %1202 = vmatpush.msra.mxu0 0.0
  %1203 = vmatpush.msra.mxu0 0.0
  %1204 = vmatpush.msra.mxu0 0.0
  %1205 = vmatpush.msra.mxu0 0.0
  %1206 = vmatpush.msra.mxu0 0.0
  %1207 = vmatpush.msra.mxu0 0.0
  %1208 = vmatpush.msra.mxu0 0.0
  %1209 = vmatpush.msra.mxu0 0.0
  %1210 = vmatpush.msra.mxu0 0.0
  %1211 = vmatpush.msra.mxu0 %v167
  %1212 = vmatpush.msra.mxu0 %v166
  %1213 = vmatpush.msra.mxu0 %v165
  %1214 = vmatpush.msra.mxu0 %v164
  %1215 = vmatmul.f32.gmra.mxu0 %v1087
  %v1216 = vpop.f32.mrf.mxu0
  %v1217 = vadd.f32 0.0, %v1216
  %1218 = vdwg.mxu0
  %1220 = vrot.lane.b32.xlu0 %v1217, 96
  %v1221 = vpop.permute.xlu0 %1220
  %v1223 = vadd.f32 %v126, %v1221
  %v1224 = vxor.u32 %v1223, 2147483648
  %v1225 = vmul.f32 %v1224, 1.442695
  %v1226 = vpow.pop %v1225
  %v1227 = vadd.f32 %v1226, 1.0
  %v1228 = vrcp.pop %v1227
  %v1229 = vmul.f32 %v1227, %v1228
  %v1230 = vsub.f32 1.0, %v1229
  %v1231 = vmul.f32 %v1228, %v1230
  %v1232 = vadd.f32 %v1228, %v1231
  %vm1233 = vweird.f32 %v1227
  %vm1234 = vweird.f32 %v1228
  %vm1235 = vmor %vm1233, %vm1234
  %v1236 = vsel %vm1235, %v1228, %v1232
  %v1237 = vand.u32 2147483647, %v1227
  %vm1238 = vcmp.eq.f32.partialorder %v1237, 8.507059e+37
  %v1239 = vand.u32 %v1227, 2147483648
  %v1240 = vor.u32 1.1754944e-38, %v1239
  %v1241 = vsel %vm1238, %v1240, %v1236
  %v1242 = vmul.f32 1.0, %v1241
  %v1243 = vmul.f32 %v1172, %v1077
  %1245 = vrot.lane.b32.xlu0 %v1198, 64
  %v1246 = vpop.permute.xlu0 %1245
  %v1248 = vmul.f32 %v1128, %v1246
  %1250 = vrot.lane.b32.xlu0 %v1248, 32
  %v1251 = vpop.permute.xlu0 %1250
  %v1253 = vadd.f32 %v1243, %v1251
  %v1254 = vtanh.pop %v1253
  %1256 = vrot.lane.b32.xlu0 %v1254, 64
  %v1257 = vpop.permute.xlu0 %1256
  %v1259 = vmul.f32 %v1242, %v1257
  %1261 = vrot.lane.b32.xlu0 %v1259, 32
  %v1262 = vpop.permute.xlu0 %1261
  %v1263 = vsel %vm202, %v1262, 0
  %1265 = vmatpush.msra.mxu0 0.0
  %1266 = vmatpush.msra.mxu0 0.0
  %1267 = vmatpush.msra.mxu0 0.0
  %1268 = vmatpush.msra.mxu0 0.0
  %1269 = vmatpush.msra.mxu0 0.0
  %1270 = vmatpush.msra.mxu0 0.0
  %1271 = vmatpush.msra.mxu0 0.0
  %1272 = vmatpush.msra.mxu0 0.0
  %1273 = vmatpush.msra.mxu0 0.0
  %1274 = vmatpush.msra.mxu0 0.0
  %1275 = vmatpush.msra.mxu0 0.0
  %1276 = vmatpush.msra.mxu0 0.0
  %1277 = vmatpush.msra.mxu0 %v152
  %1278 = vmatpush.msra.mxu0 %v151
  %1279 = vmatpush.msra.mxu0 %v150
  %1280 = vmatpush.msra.mxu0 %v149
  %1281 = vmatmul.f32.gmra.mxu0 %v1263
  %v1282 = vpop.f32.mrf.mxu0
  %v1283 = vadd.f32 0.0, %v1282
  %1284 = vdwg.mxu0
  %v1285 = vadd.f32 %v129, %v1283
  %v1286 = vxor.u32 %v1285, 2147483648
  %v1287 = vmul.f32 %v1286, 1.442695
  %v1288 = vpow.pop %v1287
  %v1289 = vadd.f32 %v1288, 1.0
  %v1290 = vrcp.pop %v1289
  %v1291 = vmul.f32 %v1289, %v1290
  %v1292 = vsub.f32 1.0, %v1291
  %v1293 = vmul.f32 %v1290, %v1292
  %v1294 = vadd.f32 %v1290, %v1293
  %vm1295 = vweird.f32 %v1289
  %vm1296 = vweird.f32 %v1290
  %vm1297 = vmor %vm1295, %vm1296
  %v1298 = vsel %vm1297, %v1290, %v1294
  %v1299 = vand.u32 2147483647, %v1289
  %vm1300 = vcmp.eq.f32.partialorder %v1299, 8.507059e+37
  %v1301 = vand.u32 %v1289, 2147483648
  %v1302 = vor.u32 1.1754944e-38, %v1301
  %v1303 = vsel %vm1300, %v1302, %v1298
  %v1304 = vmul.f32 1.0, %v1303
  %1305 = vmatpush.msra.mxu0 0.0
  %1306 = vmatpush.msra.mxu0 0.0
  %1307 = vmatpush.msra.mxu0 0.0
  %1308 = vmatpush.msra.mxu0 0.0
  %1309 = vmatpush.msra.mxu0 0.0
  %1310 = vmatpush.msra.mxu0 0.0
  %1311 = vmatpush.msra.mxu0 0.0
  %1312 = vmatpush.msra.mxu0 0.0
  %1313 = vmatpush.msra.mxu0 0.0
  %1314 = vmatpush.msra.mxu0 0.0
  %1315 = vmatpush.msra.mxu0 0.0
  %1316 = vmatpush.msra.mxu0 0.0
  %1317 = vmatpush.msra.mxu0 %v157
  %1318 = vmatpush.msra.mxu0 %v156
  %1319 = vmatpush.msra.mxu0 %v155
  %1320 = vmatpush.msra.mxu0 %v154
  %1321 = vmatmul.f32.gmra.mxu0 %v1263
  %v1322 = vpop.f32.mrf.mxu0
  %v1323 = vadd.f32 0.0, %v1322
  %1324 = vdwg.mxu0
  %1326 = vrot.lane.b32.xlu0 %v1323, 32
  %v1327 = vpop.permute.xlu0 %1326
  %v1329 = vadd.f32 %v129, %v1327
  %v1330 = vxor.u32 %v1329, 2147483648
  %v1331 = vmul.f32 %v1330, 1.442695
  %v1332 = vpow.pop %v1331
  %v1333 = vadd.f32 %v1332, 1.0
  %v1334 = vrcp.pop %v1333
  %v1335 = vmul.f32 %v1333, %v1334
  %v1336 = vsub.f32 1.0, %v1335
  %v1337 = vmul.f32 %v1334, %v1336
  %v1338 = vadd.f32 %v1334, %v1337
  %vm1339 = vweird.f32 %v1333
  %vm1340 = vweird.f32 %v1334
  %vm1341 = vmor %vm1339, %vm1340
  %v1342 = vsel %vm1341, %v1334, %v1338
  %v1343 = vand.u32 2147483647, %v1333
  %vm1344 = vcmp.eq.f32.partialorder %v1343, 8.507059e+37
  %v1345 = vand.u32 %v1333, 2147483648
  %v1346 = vor.u32 1.1754944e-38, %v1345
  %v1347 = vsel %vm1344, %v1346, %v1342
  %v1348 = vmul.f32 1.0, %v1347
  %1349 = vmatpush.msra.mxu0 0.0
  %1350 = vmatpush.msra.mxu0 0.0
  %1351 = vmatpush.msra.mxu0 0.0
  %1352 = vmatpush.msra.mxu0 0.0
  %1353 = vmatpush.msra.mxu0 0.0
  %1354 = vmatpush.msra.mxu0 0.0
  %1355 = vmatpush.msra.mxu0 0.0
  %1356 = vmatpush.msra.mxu0 0.0
  %1357 = vmatpush.msra.mxu0 0.0
  %1358 = vmatpush.msra.mxu0 0.0
  %1359 = vmatpush.msra.mxu0 0.0
  %1360 = vmatpush.msra.mxu0 0.0
  %1361 = vmatpush.msra.mxu0 %v162
  %1362 = vmatpush.msra.mxu0 %v161
  %1363 = vmatpush.msra.mxu0 %v160
  %1364 = vmatpush.msra.mxu0 %v159
  %1365 = vmatmul.f32.gmra.mxu0 %v1263
  %v1366 = vpop.f32.mrf.mxu0
  %v1367 = vadd.f32 0.0, %v1366
  %1368 = vdwg.mxu0
  %1370 = vrot.lane.b32.xlu0 %v1367, 64
  %v1371 = vpop.permute.xlu0 %1370
  %v1373 = vadd.f32 %v129, %v1371
  %v1374 = vtanh.pop %v1373
  %1375 = vmatpush.msra.mxu0 0.0
  %1376 = vmatpush.msra.mxu0 0.0
  %1377 = vmatpush.msra.mxu0 0.0
  %1378 = vmatpush.msra.mxu0 0.0
  %1379 = vmatpush.msra.mxu0 0.0
  %1380 = vmatpush.msra.mxu0 0.0
  %1381 = vmatpush.msra.mxu0 0.0
  %1382 = vmatpush.msra.mxu0 0.0
  %1383 = vmatpush.msra.mxu0 0.0
  %1384 = vmatpush.msra.mxu0 0.0
  %1385 = vmatpush.msra.mxu0 0.0
  %1386 = vmatpush.msra.mxu0 0.0
  %1387 = vmatpush.msra.mxu0 %v167
  %1388 = vmatpush.msra.mxu0 %v166
  %1389 = vmatpush.msra.mxu0 %v165
  %1390 = vmatpush.msra.mxu0 %v164
  %1391 = vmatmul.f32.gmra.mxu0 %v1263
  %v1392 = vpop.f32.mrf.mxu0
  %v1393 = vadd.f32 0.0, %v1392
  %1394 = vdwg.mxu0
  %1396 = vrot.lane.b32.xlu0 %v1393, 96
  %v1397 = vpop.permute.xlu0 %1396
  %v1399 = vadd.f32 %v129, %v1397
  %v1400 = vxor.u32 %v1399, 2147483648
  %v1401 = vmul.f32 %v1400, 1.442695
  %v1402 = vpow.pop %v1401
  %v1403 = vadd.f32 %v1402, 1.0
  %v1404 = vrcp.pop %v1403
  %v1405 = vmul.f32 %v1403, %v1404
  %v1406 = vsub.f32 1.0, %v1405
  %v1407 = vmul.f32 %v1404, %v1406
  %v1408 = vadd.f32 %v1404, %v1407
  %vm1409 = vweird.f32 %v1403
  %vm1410 = vweird.f32 %v1404
  %vm1411 = vmor %vm1409, %vm1410
  %v1412 = vsel %vm1411, %v1404, %v1408
  %v1413 = vand.u32 2147483647, %v1403
  %vm1414 = vcmp.eq.f32.partialorder %v1413, 8.507059e+37
  %v1415 = vand.u32 %v1403, 2147483648
  %v1416 = vor.u32 1.1754944e-38, %v1415
  %v1417 = vsel %vm1414, %v1416, %v1412
  %v1418 = vmul.f32 1.0, %v1417
  %v1419 = vmul.f32 %v1348, %v1253
  %1421 = vrot.lane.b32.xlu0 %v1374, 64
  %v1422 = vpop.permute.xlu0 %1421
  %v1424 = vmul.f32 %v1304, %v1422
  %1426 = vrot.lane.b32.xlu0 %v1424, 32
  %v1427 = vpop.permute.xlu0 %1426
  %v1429 = vadd.f32 %v1419, %v1427
  %v1430 = vtanh.pop %v1429
  %1432 = vrot.lane.b32.xlu0 %v1430, 64
  %v1433 = vpop.permute.xlu0 %1432
  %v1435 = vmul.f32 %v1418, %v1433
  %1437 = vrot.lane.b32.xlu0 %v1435, 32
  %v1438 = vpop.permute.xlu0 %1437
  %v1439 = vsel %vm202, %v1438, 0
  %1441 = vmatpush.msra.mxu0 0.0
  %1442 = vmatpush.msra.mxu0 0.0
  %1443 = vmatpush.msra.mxu0 0.0
  %1444 = vmatpush.msra.mxu0 0.0
  %1445 = vmatpush.msra.mxu0 0.0
  %1446 = vmatpush.msra.mxu0 0.0
  %1447 = vmatpush.msra.mxu0 0.0
  %1448 = vmatpush.msra.mxu0 0.0
  %1449 = vmatpush.msra.mxu0 0.0
  %1450 = vmatpush.msra.mxu0 0.0
  %1451 = vmatpush.msra.mxu0 0.0
  %1452 = vmatpush.msra.mxu0 0.0
  %1453 = vmatpush.msra.mxu0 %v152
  %1454 = vmatpush.msra.mxu0 %v151
  %1455 = vmatpush.msra.mxu0 %v150
  %1456 = vmatpush.msra.mxu0 %v149
  %1457 = vmatmul.f32.gmra.mxu0 %v1439
  %v1458 = vpop.f32.mrf.mxu0
  %v1459 = vadd.f32 0.0, %v1458
  %1460 = vdwg.mxu0
  %v1461 = vadd.f32 %v132, %v1459
  %v1462 = vxor.u32 %v1461, 2147483648
  %v1463 = vmul.f32 %v1462, 1.442695
  %v1464 = vpow.pop %v1463
  %v1465 = vadd.f32 %v1464, 1.0
  %v1466 = vrcp.pop %v1465
  %v1467 = vmul.f32 %v1465, %v1466
  %v1468 = vsub.f32 1.0, %v1467
  %v1469 = vmul.f32 %v1466, %v1468
  %v1470 = vadd.f32 %v1466, %v1469
  %vm1471 = vweird.f32 %v1465
  %vm1472 = vweird.f32 %v1466
  %vm1473 = vmor %vm1471, %vm1472
  %v1474 = vsel %vm1473, %v1466, %v1470
  %v1475 = vand.u32 2147483647, %v1465
  %vm1476 = vcmp.eq.f32.partialorder %v1475, 8.507059e+37
  %v1477 = vand.u32 %v1465, 2147483648
  %v1478 = vor.u32 1.1754944e-38, %v1477
  %v1479 = vsel %vm1476, %v1478, %v1474
  %v1480 = vmul.f32 1.0, %v1479
  %1481 = vmatpush.msra.mxu0 0.0
  %1482 = vmatpush.msra.mxu0 0.0
  %1483 = vmatpush.msra.mxu0 0.0
  %1484 = vmatpush.msra.mxu0 0.0
  %1485 = vmatpush.msra.mxu0 0.0
  %1486 = vmatpush.msra.mxu0 0.0
  %1487 = vmatpush.msra.mxu0 0.0
  %1488 = vmatpush.msra.mxu0 0.0
  %1489 = vmatpush.msra.mxu0 0.0
  %1490 = vmatpush.msra.mxu0 0.0
  %1491 = vmatpush.msra.mxu0 0.0
  %1492 = vmatpush.msra.mxu0 0.0
  %1493 = vmatpush.msra.mxu0 %v157
  %1494 = vmatpush.msra.mxu0 %v156
  %1495 = vmatpush.msra.mxu0 %v155
  %1496 = vmatpush.msra.mxu0 %v154
  %1497 = vmatmul.f32.gmra.mxu0 %v1439
  %v1498 = vpop.f32.mrf.mxu0
  %v1499 = vadd.f32 0.0, %v1498
  %1500 = vdwg.mxu0
  %1502 = vrot.lane.b32.xlu0 %v1499, 32
  %v1503 = vpop.permute.xlu0 %1502
  %v1505 = vadd.f32 %v132, %v1503
  %v1506 = vxor.u32 %v1505, 2147483648
  %v1507 = vmul.f32 %v1506, 1.442695
  %v1508 = vpow.pop %v1507
  %v1509 = vadd.f32 %v1508, 1.0
  %v1510 = vrcp.pop %v1509
  %v1511 = vmul.f32 %v1509, %v1510
  %v1512 = vsub.f32 1.0, %v1511
  %v1513 = vmul.f32 %v1510, %v1512
  %v1514 = vadd.f32 %v1510, %v1513
  %vm1515 = vweird.f32 %v1509
  %vm1516 = vweird.f32 %v1510
  %vm1517 = vmor %vm1515, %vm1516
  %v1518 = vsel %vm1517, %v1510, %v1514
  %v1519 = vand.u32 2147483647, %v1509
  %vm1520 = vcmp.eq.f32.partialorder %v1519, 8.507059e+37
  %v1521 = vand.u32 %v1509, 2147483648
  %v1522 = vor.u32 1.1754944e-38, %v1521
  %v1523 = vsel %vm1520, %v1522, %v1518
  %v1524 = vmul.f32 1.0, %v1523
  %1525 = vmatpush.msra.mxu0 0.0
  %1526 = vmatpush.msra.mxu0 0.0
  %1527 = vmatpush.msra.mxu0 0.0
  %1528 = vmatpush.msra.mxu0 0.0
  %1529 = vmatpush.msra.mxu0 0.0
  %1530 = vmatpush.msra.mxu0 0.0
  %1531 = vmatpush.msra.mxu0 0.0
  %1532 = vmatpush.msra.mxu0 0.0
  %1533 = vmatpush.msra.mxu0 0.0
  %1534 = vmatpush.msra.mxu0 0.0
  %1535 = vmatpush.msra.mxu0 0.0
  %1536 = vmatpush.msra.mxu0 0.0
  %1537 = vmatpush.msra.mxu0 %v162
  %1538 = vmatpush.msra.mxu0 %v161
  %1539 = vmatpush.msra.mxu0 %v160
  %1540 = vmatpush.msra.mxu0 %v159
  %1541 = vmatmul.f32.gmra.mxu0 %v1439
  %v1542 = vpop.f32.mrf.mxu0
  %v1543 = vadd.f32 0.0, %v1542
  %1544 = vdwg.mxu0
  %1546 = vrot.lane.b32.xlu0 %v1543, 64
  %v1547 = vpop.permute.xlu0 %1546
  %v1549 = vadd.f32 %v132, %v1547
  %v1550 = vtanh.pop %v1549
  %1551 = vmatpush.msra.mxu0 0.0
  %1552 = vmatpush.msra.mxu0 0.0
  %1553 = vmatpush.msra.mxu0 0.0
  %1554 = vmatpush.msra.mxu0 0.0
  %1555 = vmatpush.msra.mxu0 0.0
  %1556 = vmatpush.msra.mxu0 0.0
  %1557 = vmatpush.msra.mxu0 0.0
  %1558 = vmatpush.msra.mxu0 0.0
  %1559 = vmatpush.msra.mxu0 0.0
  %1560 = vmatpush.msra.mxu0 0.0
  %1561 = vmatpush.msra.mxu0 0.0
  %1562 = vmatpush.msra.mxu0 0.0
  %1563 = vmatpush.msra.mxu0 %v167
  %1564 = vmatpush.msra.mxu0 %v166
  %1565 = vmatpush.msra.mxu0 %v165
  %1566 = vmatpush.msra.mxu0 %v164
  %1567 = vmatmul.f32.gmra.mxu0 %v1439
  %v1568 = vpop.f32.mrf.mxu0
  %v1569 = vadd.f32 0.0, %v1568
  %1570 = vdwg.mxu0
  %1572 = vrot.lane.b32.xlu0 %v1569, 96
  %v1573 = vpop.permute.xlu0 %1572
  %v1575 = vadd.f32 %v132, %v1573
  %v1576 = vxor.u32 %v1575, 2147483648
  %v1577 = vmul.f32 %v1576, 1.442695
  %v1578 = vpow.pop %v1577
  %v1579 = vadd.f32 %v1578, 1.0
  %v1580 = vrcp.pop %v1579
  %v1581 = vmul.f32 %v1579, %v1580
  %v1582 = vsub.f32 1.0, %v1581
  %v1583 = vmul.f32 %v1580, %v1582
  %v1584 = vadd.f32 %v1580, %v1583
  %vm1585 = vweird.f32 %v1579
  %vm1586 = vweird.f32 %v1580
  %vm1587 = vmor %vm1585, %vm1586
  %v1588 = vsel %vm1587, %v1580, %v1584
  %v1589 = vand.u32 2147483647, %v1579
  %vm1590 = vcmp.eq.f32.partialorder %v1589, 8.507059e+37
  %v1591 = vand.u32 %v1579, 2147483648
  %v1592 = vor.u32 1.1754944e-38, %v1591
  %v1593 = vsel %vm1590, %v1592, %v1588
  %v1594 = vmul.f32 1.0, %v1593
  %v1595 = vmul.f32 %v1524, %v1429
  %1597 = vrot.lane.b32.xlu0 %v1550, 64
  %v1598 = vpop.permute.xlu0 %1597
  %v1600 = vmul.f32 %v1480, %v1598
  %1602 = vrot.lane.b32.xlu0 %v1600, 32
  %v1603 = vpop.permute.xlu0 %1602
  %v1605 = vadd.f32 %v1595, %v1603
  %v1606 = vtanh.pop %v1605
  %1608 = vrot.lane.b32.xlu0 %v1606, 64
  %v1609 = vpop.permute.xlu0 %1608
  %v1611 = vmul.f32 %v1594, %v1609
  %1613 = vrot.lane.b32.xlu0 %v1611, 32
  %v1614 = vpop.permute.xlu0 %1613
  %v1615 = vsel %vm202, %v1614, 0
  %1617 = vmatpush.msra.mxu0 0.0
  %1618 = vmatpush.msra.mxu0 0.0
  %1619 = vmatpush.msra.mxu0 0.0
  %1620 = vmatpush.msra.mxu0 0.0
  %1621 = vmatpush.msra.mxu0 0.0
  %1622 = vmatpush.msra.mxu0 0.0
  %1623 = vmatpush.msra.mxu0 0.0
  %1624 = vmatpush.msra.mxu0 0.0
  %1625 = vmatpush.msra.mxu0 0.0
  %1626 = vmatpush.msra.mxu0 0.0
  %1627 = vmatpush.msra.mxu0 0.0
  %1628 = vmatpush.msra.mxu0 0.0
  %1629 = vmatpush.msra.mxu0 %v152
  %1630 = vmatpush.msra.mxu0 %v151
  %1631 = vmatpush.msra.mxu0 %v150
  %1632 = vmatpush.msra.mxu0 %v149
  %1633 = vmatmul.f32.gmra.mxu0 %v1615
  %v1634 = vpop.f32.mrf.mxu0
  %v1635 = vadd.f32 0.0, %v1634
  %1636 = vdwg.mxu0
  %v1637 = vadd.f32 %v135, %v1635
  %v1638 = vxor.u32 %v1637, 2147483648
  %v1639 = vmul.f32 %v1638, 1.442695
  %v1640 = vpow.pop %v1639
  %v1641 = vadd.f32 %v1640, 1.0
  %v1642 = vrcp.pop %v1641
  %v1643 = vmul.f32 %v1641, %v1642
  %v1644 = vsub.f32 1.0, %v1643
  %v1645 = vmul.f32 %v1642, %v1644
  %v1646 = vadd.f32 %v1642, %v1645
  %vm1647 = vweird.f32 %v1641
  %vm1648 = vweird.f32 %v1642
  %vm1649 = vmor %vm1647, %vm1648
  %v1650 = vsel %vm1649, %v1642, %v1646
  %v1651 = vand.u32 2147483647, %v1641
  %vm1652 = vcmp.eq.f32.partialorder %v1651, 8.507059e+37
  %v1653 = vand.u32 %v1641, 2147483648
  %v1654 = vor.u32 1.1754944e-38, %v1653
  %v1655 = vsel %vm1652, %v1654, %v1650
  %v1656 = vmul.f32 1.0, %v1655
  %1657 = vmatpush.msra.mxu0 0.0
  %1658 = vmatpush.msra.mxu0 0.0
  %1659 = vmatpush.msra.mxu0 0.0
  %1660 = vmatpush.msra.mxu0 0.0
  %1661 = vmatpush.msra.mxu0 0.0
  %1662 = vmatpush.msra.mxu0 0.0
  %1663 = vmatpush.msra.mxu0 0.0
  %1664 = vmatpush.msra.mxu0 0.0
  %1665 = vmatpush.msra.mxu0 0.0
  %1666 = vmatpush.msra.mxu0 0.0
  %1667 = vmatpush.msra.mxu0 0.0
  %1668 = vmatpush.msra.mxu0 0.0
  %1669 = vmatpush.msra.mxu0 %v157
  %1670 = vmatpush.msra.mxu0 %v156
  %1671 = vmatpush.msra.mxu0 %v155
  %1672 = vmatpush.msra.mxu0 %v154
  %1673 = vmatmul.f32.gmra.mxu0 %v1615
  %v1674 = vpop.f32.mrf.mxu0
  %v1675 = vadd.f32 0.0, %v1674
  %1676 = vdwg.mxu0
  %1678 = vrot.lane.b32.xlu0 %v1675, 32
  %v1679 = vpop.permute.xlu0 %1678
  %v1681 = vadd.f32 %v135, %v1679
  %v1682 = vxor.u32 %v1681, 2147483648
  %v1683 = vmul.f32 %v1682, 1.442695
  %v1684 = vpow.pop %v1683
  %v1685 = vadd.f32 %v1684, 1.0
  %v1686 = vrcp.pop %v1685
  %v1687 = vmul.f32 %v1685, %v1686
  %v1688 = vsub.f32 1.0, %v1687
  %v1689 = vmul.f32 %v1686, %v1688
  %v1690 = vadd.f32 %v1686, %v1689
  %vm1691 = vweird.f32 %v1685
  %vm1692 = vweird.f32 %v1686
  %vm1693 = vmor %vm1691, %vm1692
  %v1694 = vsel %vm1693, %v1686, %v1690
  %v1695 = vand.u32 2147483647, %v1685
  %vm1696 = vcmp.eq.f32.partialorder %v1695, 8.507059e+37
  %v1697 = vand.u32 %v1685, 2147483648
  %v1698 = vor.u32 1.1754944e-38, %v1697
  %v1699 = vsel %vm1696, %v1698, %v1694
  %v1700 = vmul.f32 1.0, %v1699
  %1701 = vmatpush.msra.mxu0 0.0
  %1702 = vmatpush.msra.mxu0 0.0
  %1703 = vmatpush.msra.mxu0 0.0
  %1704 = vmatpush.msra.mxu0 0.0
  %1705 = vmatpush.msra.mxu0 0.0
  %1706 = vmatpush.msra.mxu0 0.0
  %1707 = vmatpush.msra.mxu0 0.0
  %1708 = vmatpush.msra.mxu0 0.0
  %1709 = vmatpush.msra.mxu0 0.0
  %1710 = vmatpush.msra.mxu0 0.0
  %1711 = vmatpush.msra.mxu0 0.0
  %1712 = vmatpush.msra.mxu0 0.0
  %1713 = vmatpush.msra.mxu0 %v162
  %1714 = vmatpush.msra.mxu0 %v161
  %1715 = vmatpush.msra.mxu0 %v160
  %1716 = vmatpush.msra.mxu0 %v159
  %1717 = vmatmul.f32.gmra.mxu0 %v1615
  %v1718 = vpop.f32.mrf.mxu0
  %v1719 = vadd.f32 0.0, %v1718
  %1720 = vdwg.mxu0
  %1722 = vrot.lane.b32.xlu0 %v1719, 64
  %v1723 = vpop.permute.xlu0 %1722
  %v1725 = vadd.f32 %v135, %v1723
  %v1726 = vtanh.pop %v1725
  %1727 = vmatpush.msra.mxu0 0.0
  %1728 = vmatpush.msra.mxu0 0.0
  %1729 = vmatpush.msra.mxu0 0.0
  %1730 = vmatpush.msra.mxu0 0.0
  %1731 = vmatpush.msra.mxu0 0.0
  %1732 = vmatpush.msra.mxu0 0.0
  %1733 = vmatpush.msra.mxu0 0.0
  %1734 = vmatpush.msra.mxu0 0.0
  %1735 = vmatpush.msra.mxu0 0.0
  %1736 = vmatpush.msra.mxu0 0.0
  %1737 = vmatpush.msra.mxu0 0.0
  %1738 = vmatpush.msra.mxu0 0.0
  %1739 = vmatpush.msra.mxu0 %v167
  %1740 = vmatpush.msra.mxu0 %v166
  %1741 = vmatpush.msra.mxu0 %v165
  %1742 = vmatpush.msra.mxu0 %v164
  %1743 = vmatmul.f32.gmra.mxu0 %v1615
  %v1744 = vpop.f32.mrf.mxu0
  %v1745 = vadd.f32 0.0, %v1744
  %1746 = vdwg.mxu0
  %1748 = vrot.lane.b32.xlu0 %v1745, 96
  %v1749 = vpop.permute.xlu0 %1748
  %v1751 = vadd.f32 %v135, %v1749
  %v1752 = vxor.u32 %v1751, 2147483648
  %v1753 = vmul.f32 %v1752, 1.442695
  %v1754 = vpow.pop %v1753
  %v1755 = vadd.f32 %v1754, 1.0
  %v1756 = vrcp.pop %v1755
  %v1757 = vmul.f32 %v1755, %v1756
  %v1758 = vsub.f32 1.0, %v1757
  %v1759 = vmul.f32 %v1756, %v1758
  %v1760 = vadd.f32 %v1756, %v1759
  %vm1761 = vweird.f32 %v1755
  %vm1762 = vweird.f32 %v1756
  %vm1763 = vmor %vm1761, %vm1762
  %v1764 = vsel %vm1763, %v1756, %v1760
  %v1765 = vand.u32 2147483647, %v1755
  %vm1766 = vcmp.eq.f32.partialorder %v1765, 8.507059e+37
  %v1767 = vand.u32 %v1755, 2147483648
  %v1768 = vor.u32 1.1754944e-38, %v1767
  %v1769 = vsel %vm1766, %v1768, %v1764
  %v1770 = vmul.f32 1.0, %v1769
  %v1771 = vmul.f32 %v1700, %v1605
  %1773 = vrot.lane.b32.xlu0 %v1726, 64
  %v1774 = vpop.permute.xlu0 %1773
  %v1776 = vmul.f32 %v1656, %v1774
  %1778 = vrot.lane.b32.xlu0 %v1776, 32
  %v1779 = vpop.permute.xlu0 %1778
  %v1781 = vadd.f32 %v1771, %v1779
  %v1782 = vtanh.pop %v1781
  %1784 = vrot.lane.b32.xlu0 %v1782, 64
  %v1785 = vpop.permute.xlu0 %1784
  %v1787 = vmul.f32 %v1770, %v1785
  %1789 = vrot.lane.b32.xlu0 %v1787, 32
  %v1790 = vpop.permute.xlu0 %1789
  %v1791 = vsel %vm202, %v1790, 0
  %1793 = vmatpush.msra.mxu0 0.0
  %1794 = vmatpush.msra.mxu0 0.0
  %1795 = vmatpush.msra.mxu0 0.0
  %1796 = vmatpush.msra.mxu0 0.0
  %1797 = vmatpush.msra.mxu0 0.0
  %1798 = vmatpush.msra.mxu0 0.0
  %1799 = vmatpush.msra.mxu0 0.0
  %1800 = vmatpush.msra.mxu0 0.0
  %1801 = vmatpush.msra.mxu0 0.0
  %1802 = vmatpush.msra.mxu0 0.0
  %1803 = vmatpush.msra.mxu0 0.0
  %1804 = vmatpush.msra.mxu0 0.0
  %1805 = vmatpush.msra.mxu0 %v152
  %1806 = vmatpush.msra.mxu0 %v151
  %1807 = vmatpush.msra.mxu0 %v150
  %1808 = vmatpush.msra.mxu0 %v149
  %1809 = vmatmul.f32.gmra.mxu0 %v1791
  %v1810 = vpop.f32.mrf.mxu0
  %v1811 = vadd.f32 0.0, %v1810
  %1812 = vdwg.mxu0
  %v1813 = vadd.f32 %v138, %v1811
  %v1814 = vxor.u32 %v1813, 2147483648
  %v1815 = vmul.f32 %v1814, 1.442695
  %v1816 = vpow.pop %v1815
  %v1817 = vadd.f32 %v1816, 1.0
  %v1818 = vrcp.pop %v1817
  %v1819 = vmul.f32 %v1817, %v1818
  %v1820 = vsub.f32 1.0, %v1819
  %v1821 = vmul.f32 %v1818, %v1820
  %v1822 = vadd.f32 %v1818, %v1821
  %vm1823 = vweird.f32 %v1817
  %vm1824 = vweird.f32 %v1818
  %vm1825 = vmor %vm1823, %vm1824
  %v1826 = vsel %vm1825, %v1818, %v1822
  %v1827 = vand.u32 2147483647, %v1817
  %vm1828 = vcmp.eq.f32.partialorder %v1827, 8.507059e+37
  %v1829 = vand.u32 %v1817, 2147483648
  %v1830 = vor.u32 1.1754944e-38, %v1829
  %v1831 = vsel %vm1828, %v1830, %v1826
  %v1832 = vmul.f32 1.0, %v1831
  %1833 = vmatpush.msra.mxu0 0.0
  %1834 = vmatpush.msra.mxu0 0.0
  %1835 = vmatpush.msra.mxu0 0.0
  %1836 = vmatpush.msra.mxu0 0.0
  %1837 = vmatpush.msra.mxu0 0.0
  %1838 = vmatpush.msra.mxu0 0.0
  %1839 = vmatpush.msra.mxu0 0.0
  %1840 = vmatpush.msra.mxu0 0.0
  %1841 = vmatpush.msra.mxu0 0.0
  %1842 = vmatpush.msra.mxu0 0.0
  %1843 = vmatpush.msra.mxu0 0.0
  %1844 = vmatpush.msra.mxu0 0.0
  %1845 = vmatpush.msra.mxu0 %v157
  %1846 = vmatpush.msra.mxu0 %v156
  %1847 = vmatpush.msra.mxu0 %v155
  %1848 = vmatpush.msra.mxu0 %v154
  %1849 = vmatmul.f32.gmra.mxu0 %v1791
  %v1850 = vpop.f32.mrf.mxu0
  %v1851 = vadd.f32 0.0, %v1850
  %1852 = vdwg.mxu0
  %1854 = vrot.lane.b32.xlu0 %v1851, 32
  %v1855 = vpop.permute.xlu0 %1854
  %v1857 = vadd.f32 %v138, %v1855
  %v1858 = vxor.u32 %v1857, 2147483648
  %v1859 = vmul.f32 %v1858, 1.442695
  %v1860 = vpow.pop %v1859
  %v1861 = vadd.f32 %v1860, 1.0
  %v1862 = vrcp.pop %v1861
  %v1863 = vmul.f32 %v1861, %v1862
  %v1864 = vsub.f32 1.0, %v1863
  %v1865 = vmul.f32 %v1862, %v1864
  %v1866 = vadd.f32 %v1862, %v1865
  %vm1867 = vweird.f32 %v1861
  %vm1868 = vweird.f32 %v1862
  %vm1869 = vmor %vm1867, %vm1868
  %v1870 = vsel %vm1869, %v1862, %v1866
  %v1871 = vand.u32 2147483647, %v1861
  %vm1872 = vcmp.eq.f32.partialorder %v1871, 8.507059e+37
  %v1873 = vand.u32 %v1861, 2147483648
  %v1874 = vor.u32 1.1754944e-38, %v1873
  %v1875 = vsel %vm1872, %v1874, %v1870
  %v1876 = vmul.f32 1.0, %v1875
  %1877 = vmatpush.msra.mxu0 0.0
  %1878 = vmatpush.msra.mxu0 0.0
  %1879 = vmatpush.msra.mxu0 0.0
  %1880 = vmatpush.msra.mxu0 0.0
  %1881 = vmatpush.msra.mxu0 0.0
  %1882 = vmatpush.msra.mxu0 0.0
  %1883 = vmatpush.msra.mxu0 0.0
  %1884 = vmatpush.msra.mxu0 0.0
  %1885 = vmatpush.msra.mxu0 0.0
  %1886 = vmatpush.msra.mxu0 0.0
  %1887 = vmatpush.msra.mxu0 0.0
  %1888 = vmatpush.msra.mxu0 0.0
  %1889 = vmatpush.msra.mxu0 %v162
  %1890 = vmatpush.msra.mxu0 %v161
  %1891 = vmatpush.msra.mxu0 %v160
  %1892 = vmatpush.msra.mxu0 %v159
  %1893 = vmatmul.f32.gmra.mxu0 %v1791
  %v1894 = vpop.f32.mrf.mxu0
  %v1895 = vadd.f32 0.0, %v1894
  %1896 = vdwg.mxu0
  %1898 = vrot.lane.b32.xlu0 %v1895, 64
  %v1899 = vpop.permute.xlu0 %1898
  %v1901 = vadd.f32 %v138, %v1899
  %v1902 = vtanh.pop %v1901
  %1903 = vmatpush.msra.mxu0 0.0
  %1904 = vmatpush.msra.mxu0 0.0
  %1905 = vmatpush.msra.mxu0 0.0
  %1906 = vmatpush.msra.mxu0 0.0
  %1907 = vmatpush.msra.mxu0 0.0
  %1908 = vmatpush.msra.mxu0 0.0
  %1909 = vmatpush.msra.mxu0 0.0
  %1910 = vmatpush.msra.mxu0 0.0
  %1911 = vmatpush.msra.mxu0 0.0
  %1912 = vmatpush.msra.mxu0 0.0
  %1913 = vmatpush.msra.mxu0 0.0
  %1914 = vmatpush.msra.mxu0 0.0
  %1915 = vmatpush.msra.mxu0 %v167
  %1916 = vmatpush.msra.mxu0 %v166
  %1917 = vmatpush.msra.mxu0 %v165
  %1918 = vmatpush.msra.mxu0 %v164
  %1919 = vmatmul.f32.gmra.mxu0 %v1791
  %v1920 = vpop.f32.mrf.mxu0
  %v1921 = vadd.f32 0.0, %v1920
  %1922 = vdwg.mxu0
  %1924 = vrot.lane.b32.xlu0 %v1921, 96
  %v1925 = vpop.permute.xlu0 %1924
  %v1927 = vadd.f32 %v138, %v1925
  %v1928 = vxor.u32 %v1927, 2147483648
  %v1929 = vmul.f32 %v1928, 1.442695
  %v1930 = vpow.pop %v1929
  %v1931 = vadd.f32 %v1930, 1.0
  %v1932 = vrcp.pop %v1931
  %v1933 = vmul.f32 %v1931, %v1932
  %v1934 = vsub.f32 1.0, %v1933
  %v1935 = vmul.f32 %v1932, %v1934
  %v1936 = vadd.f32 %v1932, %v1935
  %vm1937 = vweird.f32 %v1931
  %vm1938 = vweird.f32 %v1932
  %vm1939 = vmor %vm1937, %vm1938
  %v1940 = vsel %vm1939, %v1932, %v1936
  %v1941 = vand.u32 2147483647, %v1931
  %vm1942 = vcmp.eq.f32.partialorder %v1941, 8.507059e+37
  %v1943 = vand.u32 %v1931, 2147483648
  %v1944 = vor.u32 1.1754944e-38, %v1943
  %v1945 = vsel %vm1942, %v1944, %v1940
  %v1946 = vmul.f32 1.0, %v1945
  %v1947 = vmul.f32 %v1876, %v1781
  %1949 = vrot.lane.b32.xlu0 %v1902, 64
  %v1950 = vpop.permute.xlu0 %1949
  %v1952 = vmul.f32 %v1832, %v1950
  %1954 = vrot.lane.b32.xlu0 %v1952, 32
  %v1955 = vpop.permute.xlu0 %1954
  %v1957 = vadd.f32 %v1947, %v1955
  %v1958 = vtanh.pop %v1957
  %1960 = vrot.lane.b32.xlu0 %v1958, 64
  %v1961 = vpop.permute.xlu0 %1960
  %v1963 = vmul.f32 %v1946, %v1961
  %1965 = vrot.lane.b32.xlu0 %v1963, 32
  %v1966 = vpop.permute.xlu0 %1965
  %v1967 = vsel %vm202, %v1966, 0
  %1969 = vmatpush.msra.mxu0 0.0
  %1970 = vmatpush.msra.mxu0 0.0
  %1971 = vmatpush.msra.mxu0 0.0
  %1972 = vmatpush.msra.mxu0 0.0
  %1973 = vmatpush.msra.mxu0 0.0
  %1974 = vmatpush.msra.mxu0 0.0
  %1975 = vmatpush.msra.mxu0 0.0
  %1976 = vmatpush.msra.mxu0 0.0
  %1977 = vmatpush.msra.mxu0 0.0
  %1978 = vmatpush.msra.mxu0 0.0
  %1979 = vmatpush.msra.mxu0 0.0
  %1980 = vmatpush.msra.mxu0 0.0
  %1981 = vmatpush.msra.mxu0 %v152
  %1982 = vmatpush.msra.mxu0 %v151
  %1983 = vmatpush.msra.mxu0 %v150
  %1984 = vmatpush.msra.mxu0 %v149
  %1985 = vmatmul.f32.gmra.mxu0 %v1967
  %v1986 = vpop.f32.mrf.mxu0
  %v1987 = vadd.f32 0.0, %v1986
  %1988 = vdwg.mxu0
  %v1989 = vadd.f32 %v141, %v1987
  %v1990 = vxor.u32 %v1989, 2147483648
  %v1991 = vmul.f32 %v1990, 1.442695
  %v1992 = vpow.pop %v1991
  %v1993 = vadd.f32 %v1992, 1.0
  %v1994 = vrcp.pop %v1993
  %v1995 = vmul.f32 %v1993, %v1994
  %v1996 = vsub.f32 1.0, %v1995
  %v1997 = vmul.f32 %v1994, %v1996
  %v1998 = vadd.f32 %v1994, %v1997
  %vm1999 = vweird.f32 %v1993
  %vm2000 = vweird.f32 %v1994
  %vm2001 = vmor %vm1999, %vm2000
  %v2002 = vsel %vm2001, %v1994, %v1998
  %v2003 = vand.u32 2147483647, %v1993
  %vm2004 = vcmp.eq.f32.partialorder %v2003, 8.507059e+37
  %v2005 = vand.u32 %v1993, 2147483648
  %v2006 = vor.u32 1.1754944e-38, %v2005
  %v2007 = vsel %vm2004, %v2006, %v2002
  %v2008 = vmul.f32 1.0, %v2007
  %2009 = vmatpush.msra.mxu0 0.0
  %2010 = vmatpush.msra.mxu0 0.0
  %2011 = vmatpush.msra.mxu0 0.0
  %2012 = vmatpush.msra.mxu0 0.0
  %2013 = vmatpush.msra.mxu0 0.0
  %2014 = vmatpush.msra.mxu0 0.0
  %2015 = vmatpush.msra.mxu0 0.0
  %2016 = vmatpush.msra.mxu0 0.0
  %2017 = vmatpush.msra.mxu0 0.0
  %2018 = vmatpush.msra.mxu0 0.0
  %2019 = vmatpush.msra.mxu0 0.0
  %2020 = vmatpush.msra.mxu0 0.0
  %2021 = vmatpush.msra.mxu0 %v157
  %2022 = vmatpush.msra.mxu0 %v156
  %2023 = vmatpush.msra.mxu0 %v155
  %2024 = vmatpush.msra.mxu0 %v154
  %2025 = vmatmul.f32.gmra.mxu0 %v1967
  %v2026 = vpop.f32.mrf.mxu0
  %v2027 = vadd.f32 0.0, %v2026
  %2028 = vdwg.mxu0
  %2030 = vrot.lane.b32.xlu0 %v2027, 32
  %v2031 = vpop.permute.xlu0 %2030
  %v2033 = vadd.f32 %v141, %v2031
  %v2034 = vxor.u32 %v2033, 2147483648
  %v2035 = vmul.f32 %v2034, 1.442695
  %v2036 = vpow.pop %v2035
  %v2037 = vadd.f32 %v2036, 1.0
  %v2038 = vrcp.pop %v2037
  %v2039 = vmul.f32 %v2037, %v2038
  %v2040 = vsub.f32 1.0, %v2039
  %v2041 = vmul.f32 %v2038, %v2040
  %v2042 = vadd.f32 %v2038, %v2041
  %vm2043 = vweird.f32 %v2037
  %vm2044 = vweird.f32 %v2038
  %vm2045 = vmor %vm2043, %vm2044
  %v2046 = vsel %vm2045, %v2038, %v2042
  %v2047 = vand.u32 2147483647, %v2037
  %vm2048 = vcmp.eq.f32.partialorder %v2047, 8.507059e+37
  %v2049 = vand.u32 %v2037, 2147483648
  %v2050 = vor.u32 1.1754944e-38, %v2049
  %v2051 = vsel %vm2048, %v2050, %v2046
  %v2052 = vmul.f32 1.0, %v2051
  %2053 = vmatpush.msra.mxu0 0.0
  %2054 = vmatpush.msra.mxu0 0.0
  %2055 = vmatpush.msra.mxu0 0.0
  %2056 = vmatpush.msra.mxu0 0.0
  %2057 = vmatpush.msra.mxu0 0.0
  %2058 = vmatpush.msra.mxu0 0.0
  %2059 = vmatpush.msra.mxu0 0.0
  %2060 = vmatpush.msra.mxu0 0.0
  %2061 = vmatpush.msra.mxu0 0.0
  %2062 = vmatpush.msra.mxu0 0.0
  %2063 = vmatpush.msra.mxu0 0.0
  %2064 = vmatpush.msra.mxu0 0.0
  %2065 = vmatpush.msra.mxu0 %v162
  %2066 = vmatpush.msra.mxu0 %v161
  %2067 = vmatpush.msra.mxu0 %v160
  %2068 = vmatpush.msra.mxu0 %v159
  %2069 = vmatmul.f32.gmra.mxu0 %v1967
  %v2070 = vpop.f32.mrf.mxu0
  %v2071 = vadd.f32 0.0, %v2070
  %2072 = vdwg.mxu0
  %2074 = vrot.lane.b32.xlu0 %v2071, 64
  %v2075 = vpop.permute.xlu0 %2074
  %v2077 = vadd.f32 %v141, %v2075
  %v2078 = vtanh.pop %v2077
  %2079 = vmatpush.msra.mxu0 0.0
  %2080 = vmatpush.msra.mxu0 0.0
  %2081 = vmatpush.msra.mxu0 0.0
  %2082 = vmatpush.msra.mxu0 0.0
  %2083 = vmatpush.msra.mxu0 0.0
  %2084 = vmatpush.msra.mxu0 0.0
  %2085 = vmatpush.msra.mxu0 0.0
  %2086 = vmatpush.msra.mxu0 0.0
  %2087 = vmatpush.msra.mxu0 0.0
  %2088 = vmatpush.msra.mxu0 0.0
  %2089 = vmatpush.msra.mxu0 0.0
  %2090 = vmatpush.msra.mxu0 0.0
  %2091 = vmatpush.msra.mxu0 %v167
  %2092 = vmatpush.msra.mxu0 %v166
  %2093 = vmatpush.msra.mxu0 %v165
  %2094 = vmatpush.msra.mxu0 %v164
  %2095 = vmatmul.f32.gmra.mxu0 %v1967
  %v2096 = vpop.f32.mrf.mxu0
  %v2097 = vadd.f32 0.0, %v2096
  %2098 = vdwg.mxu0
  %2100 = vrot.lane.b32.xlu0 %v2097, 96
  %v2101 = vpop.permute.xlu0 %2100
  %v2103 = vadd.f32 %v141, %v2101
  %v2104 = vxor.u32 %v2103, 2147483648
  %v2105 = vmul.f32 %v2104, 1.442695
  %v2106 = vpow.pop %v2105
  %v2107 = vadd.f32 %v2106, 1.0
  %v2108 = vrcp.pop %v2107
  %v2109 = vmul.f32 %v2107, %v2108
  %v2110 = vsub.f32 1.0, %v2109
  %v2111 = vmul.f32 %v2108, %v2110
  %v2112 = vadd.f32 %v2108, %v2111
  %vm2113 = vweird.f32 %v2107
  %vm2114 = vweird.f32 %v2108
  %vm2115 = vmor %vm2113, %vm2114
  %v2116 = vsel %vm2115, %v2108, %v2112
  %v2117 = vand.u32 2147483647, %v2107
  %vm2118 = vcmp.eq.f32.partialorder %v2117, 8.507059e+37
  %v2119 = vand.u32 %v2107, 2147483648
  %v2120 = vor.u32 1.1754944e-38, %v2119
  %v2121 = vsel %vm2118, %v2120, %v2116
  %v2122 = vmul.f32 1.0, %v2121
  %v2123 = vmul.f32 %v2052, %v1957
  %2125 = vrot.lane.b32.xlu0 %v2078, 64
  %v2126 = vpop.permute.xlu0 %2125
  %v2128 = vmul.f32 %v2008, %v2126
  %2130 = vrot.lane.b32.xlu0 %v2128, 32
  %v2131 = vpop.permute.xlu0 %2130
  %v2133 = vadd.f32 %v2123, %v2131
  %v2134 = vtanh.pop %v2133
  %2136 = vrot.lane.b32.xlu0 %v2134, 64
  %v2137 = vpop.permute.xlu0 %2136
  %v2139 = vmul.f32 %v2122, %v2137
  %2141 = vrot.lane.b32.xlu0 %v2139, 32
  %v2142 = vpop.permute.xlu0 %2141
  %v2143 = vsel %vm202, %v2142, 0
  %2145 = vmatpush.msra.mxu0 0.0
  %2146 = vmatpush.msra.mxu0 0.0
  %2147 = vmatpush.msra.mxu0 0.0
  %2148 = vmatpush.msra.mxu0 0.0
  %2149 = vmatpush.msra.mxu0 0.0
  %2150 = vmatpush.msra.mxu0 0.0
  %2151 = vmatpush.msra.mxu0 0.0
  %2152 = vmatpush.msra.mxu0 0.0
  %2153 = vmatpush.msra.mxu0 0.0
  %2154 = vmatpush.msra.mxu0 0.0
  %2155 = vmatpush.msra.mxu0 0.0
  %2156 = vmatpush.msra.mxu0 0.0
  %2157 = vmatpush.msra.mxu0 %v152
  %2158 = vmatpush.msra.mxu0 %v151
  %2159 = vmatpush.msra.mxu0 %v150
  %2160 = vmatpush.msra.mxu0 %v149
  %2161 = vmatmul.f32.gmra.mxu0 %v2143
  %v2162 = vpop.f32.mrf.mxu0
  %v2163 = vadd.f32 0.0, %v2162
  %2164 = vdwg.mxu0
  %v2165 = vadd.f32 %v144, %v2163
  %v2166 = vxor.u32 %v2165, 2147483648
  %v2167 = vmul.f32 %v2166, 1.442695
  %v2168 = vpow.pop %v2167
  %v2169 = vadd.f32 %v2168, 1.0
  %v2170 = vrcp.pop %v2169
  %v2171 = vmul.f32 %v2169, %v2170
  %v2172 = vsub.f32 1.0, %v2171
  %v2173 = vmul.f32 %v2170, %v2172
  %v2174 = vadd.f32 %v2170, %v2173
  %vm2175 = vweird.f32 %v2169
  %vm2176 = vweird.f32 %v2170
  %vm2177 = vmor %vm2175, %vm2176
  %v2178 = vsel %vm2177, %v2170, %v2174
  %v2179 = vand.u32 2147483647, %v2169
  %vm2180 = vcmp.eq.f32.partialorder %v2179, 8.507059e+37
  %v2181 = vand.u32 %v2169, 2147483648
  %v2182 = vor.u32 1.1754944e-38, %v2181
  %v2183 = vsel %vm2180, %v2182, %v2178
  %v2184 = vmul.f32 1.0, %v2183
  %2185 = vmatpush.msra.mxu0 0.0
  %2186 = vmatpush.msra.mxu0 0.0
  %2187 = vmatpush.msra.mxu0 0.0
  %2188 = vmatpush.msra.mxu0 0.0
  %2189 = vmatpush.msra.mxu0 0.0
  %2190 = vmatpush.msra.mxu0 0.0
  %2191 = vmatpush.msra.mxu0 0.0
  %2192 = vmatpush.msra.mxu0 0.0
  %2193 = vmatpush.msra.mxu0 0.0
  %2194 = vmatpush.msra.mxu0 0.0
  %2195 = vmatpush.msra.mxu0 0.0
  %2196 = vmatpush.msra.mxu0 0.0
  %2197 = vmatpush.msra.mxu0 %v157
  %2198 = vmatpush.msra.mxu0 %v156
  %2199 = vmatpush.msra.mxu0 %v155
  %2200 = vmatpush.msra.mxu0 %v154
  %2201 = vmatmul.f32.gmra.mxu0 %v2143
  %v2202 = vpop.f32.mrf.mxu0
  %v2203 = vadd.f32 0.0, %v2202
  %2204 = vdwg.mxu0
  %2206 = vrot.lane.b32.xlu0 %v2203, 32
  %v2207 = vpop.permute.xlu0 %2206
  %v2209 = vadd.f32 %v144, %v2207
  %v2210 = vxor.u32 %v2209, 2147483648
  %v2211 = vmul.f32 %v2210, 1.442695
  %v2212 = vpow.pop %v2211
  %v2213 = vadd.f32 %v2212, 1.0
  %v2214 = vrcp.pop %v2213
  %v2215 = vmul.f32 %v2213, %v2214
  %v2216 = vsub.f32 1.0, %v2215
  %v2217 = vmul.f32 %v2214, %v2216
  %v2218 = vadd.f32 %v2214, %v2217
  %vm2219 = vweird.f32 %v2213
  %vm2220 = vweird.f32 %v2214
  %vm2221 = vmor %vm2219, %vm2220
  %v2222 = vsel %vm2221, %v2214, %v2218
  %v2223 = vand.u32 2147483647, %v2213
  %vm2224 = vcmp.eq.f32.partialorder %v2223, 8.507059e+37
  %v2225 = vand.u32 %v2213, 2147483648
  %v2226 = vor.u32 1.1754944e-38, %v2225
  %v2227 = vsel %vm2224, %v2226, %v2222
  %v2228 = vmul.f32 1.0, %v2227
  %2229 = vmatpush.msra.mxu0 0.0
  %2230 = vmatpush.msra.mxu0 0.0
  %2231 = vmatpush.msra.mxu0 0.0
  %2232 = vmatpush.msra.mxu0 0.0
  %2233 = vmatpush.msra.mxu0 0.0
  %2234 = vmatpush.msra.mxu0 0.0
  %2235 = vmatpush.msra.mxu0 0.0
  %2236 = vmatpush.msra.mxu0 0.0
  %2237 = vmatpush.msra.mxu0 0.0
  %2238 = vmatpush.msra.mxu0 0.0
  %2239 = vmatpush.msra.mxu0 0.0
  %2240 = vmatpush.msra.mxu0 0.0
  %2241 = vmatpush.msra.mxu0 %v162
  %2242 = vmatpush.msra.mxu0 %v161
  %2243 = vmatpush.msra.mxu0 %v160
  %2244 = vmatpush.msra.mxu0 %v159
  %2245 = vmatmul.f32.gmra.mxu0 %v2143
  %v2246 = vpop.f32.mrf.mxu0
  %v2247 = vadd.f32 0.0, %v2246
  %2248 = vdwg.mxu0
  %2250 = vrot.lane.b32.xlu0 %v2247, 64
  %v2251 = vpop.permute.xlu0 %2250
  %v2253 = vadd.f32 %v144, %v2251
  %v2254 = vtanh.pop %v2253
  %2255 = vmatpush.msra.mxu0 0.0
  %2256 = vmatpush.msra.mxu0 0.0
  %2257 = vmatpush.msra.mxu0 0.0
  %2258 = vmatpush.msra.mxu0 0.0
  %2259 = vmatpush.msra.mxu0 0.0
  %2260 = vmatpush.msra.mxu0 0.0
  %2261 = vmatpush.msra.mxu0 0.0
  %2262 = vmatpush.msra.mxu0 0.0
  %2263 = vmatpush.msra.mxu0 0.0
  %2264 = vmatpush.msra.mxu0 0.0
  %2265 = vmatpush.msra.mxu0 0.0
  %2266 = vmatpush.msra.mxu0 0.0
  %2267 = vmatpush.msra.mxu0 %v167
  %2268 = vmatpush.msra.mxu0 %v166
  %2269 = vmatpush.msra.mxu0 %v165
  %2270 = vmatpush.msra.mxu0 %v164
  %2271 = vmatmul.f32.gmra.mxu0 %v2143
  %v2272 = vpop.f32.mrf.mxu0
  %v2273 = vadd.f32 0.0, %v2272
  %2274 = vdwg.mxu0
  %2276 = vrot.lane.b32.xlu0 %v2273, 96
  %v2277 = vpop.permute.xlu0 %2276
  %v2279 = vadd.f32 %v144, %v2277
  %v2280 = vxor.u32 %v2279, 2147483648
  %v2281 = vmul.f32 %v2280, 1.442695
  %v2282 = vpow.pop %v2281
  %v2283 = vadd.f32 %v2282, 1.0
  %v2284 = vrcp.pop %v2283
  %v2285 = vmul.f32 %v2283, %v2284
  %v2286 = vsub.f32 1.0, %v2285
  %v2287 = vmul.f32 %v2284, %v2286
  %v2288 = vadd.f32 %v2284, %v2287
  %vm2289 = vweird.f32 %v2283
  %vm2290 = vweird.f32 %v2284
  %vm2291 = vmor %vm2289, %vm2290
  %v2292 = vsel %vm2291, %v2284, %v2288
  %v2293 = vand.u32 2147483647, %v2283
  %vm2294 = vcmp.eq.f32.partialorder %v2293, 8.507059e+37
  %v2295 = vand.u32 %v2283, 2147483648
  %v2296 = vor.u32 1.1754944e-38, %v2295
  %v2297 = vsel %vm2294, %v2296, %v2292
  %v2298 = vmul.f32 1.0, %v2297
  %v2299 = vmul.f32 %v2228, %v2133
  %2301 = vrot.lane.b32.xlu0 %v2254, 64
  %v2302 = vpop.permute.xlu0 %2301
  %v2304 = vmul.f32 %v2184, %v2302
  %2306 = vrot.lane.b32.xlu0 %v2304, 32
  %v2307 = vpop.permute.xlu0 %2306
  %v2309 = vadd.f32 %v2299, %v2307
  %v2310 = vtanh.pop %v2309
  %2312 = vrot.lane.b32.xlu0 %v2310, 64
  %v2313 = vpop.permute.xlu0 %2312
  %v2315 = vmul.f32 %v2298, %v2313
  %2317 = vrot.lane.b32.xlu0 %v2315, 32
  %v2318 = vpop.permute.xlu0 %2317
  %v2319 = vsel %vm202, %v2318, 0
  %2321 = vmatpush.msra.mxu0 0.0
  %2322 = vmatpush.msra.mxu0 0.0
  %2323 = vmatpush.msra.mxu0 0.0
  %2324 = vmatpush.msra.mxu0 0.0
  %2325 = vmatpush.msra.mxu0 0.0
  %2326 = vmatpush.msra.mxu0 0.0
  %2327 = vmatpush.msra.mxu0 0.0
  %2328 = vmatpush.msra.mxu0 0.0
  %2329 = vmatpush.msra.mxu0 0.0
  %2330 = vmatpush.msra.mxu0 0.0
  %2331 = vmatpush.msra.mxu0 0.0
  %2332 = vmatpush.msra.mxu0 0.0
  %2333 = vmatpush.msra.mxu0 %v152
  %2334 = vmatpush.msra.mxu0 %v151
  %2335 = vmatpush.msra.mxu0 %v150
  %2336 = vmatpush.msra.mxu0 %v149
  %2337 = vmatmul.f32.gmra.mxu0 %v2319
  %v2338 = vpop.f32.mrf.mxu0
  %v2339 = vadd.f32 0.0, %v2338
  %2340 = vdwg.mxu0
  %v2341 = vadd.f32 %v147, %v2339
  %v2342 = vxor.u32 %v2341, 2147483648
  %v2343 = vmul.f32 %v2342, 1.442695
  %v2344 = vpow.pop %v2343
  %v2345 = vadd.f32 %v2344, 1.0
  %v2346 = vrcp.pop %v2345
  %v2347 = vmul.f32 %v2345, %v2346
  %v2348 = vsub.f32 1.0, %v2347
  %v2349 = vmul.f32 %v2346, %v2348
  %v2350 = vadd.f32 %v2346, %v2349
  %vm2351 = vweird.f32 %v2345
  %vm2352 = vweird.f32 %v2346
  %vm2353 = vmor %vm2351, %vm2352
  %v2354 = vsel %vm2353, %v2346, %v2350
  %v2355 = vand.u32 2147483647, %v2345
  %vm2356 = vcmp.eq.f32.partialorder %v2355, 8.507059e+37
  %v2357 = vand.u32 %v2345, 2147483648
  %v2358 = vor.u32 1.1754944e-38, %v2357
  %v2359 = vsel %vm2356, %v2358, %v2354
  %v2360 = vmul.f32 1.0, %v2359
  %2361 = vmatpush.msra.mxu0 0.0
  %2362 = vmatpush.msra.mxu0 0.0
  %2363 = vmatpush.msra.mxu0 0.0
  %2364 = vmatpush.msra.mxu0 0.0
  %2365 = vmatpush.msra.mxu0 0.0
  %2366 = vmatpush.msra.mxu0 0.0
  %2367 = vmatpush.msra.mxu0 0.0
  %2368 = vmatpush.msra.mxu0 0.0
  %2369 = vmatpush.msra.mxu0 0.0
  %2370 = vmatpush.msra.mxu0 0.0
  %2371 = vmatpush.msra.mxu0 0.0
  %2372 = vmatpush.msra.mxu0 0.0
  %2373 = vmatpush.msra.mxu0 %v157
  %2374 = vmatpush.msra.mxu0 %v156
  %2375 = vmatpush.msra.mxu0 %v155
  %2376 = vmatpush.msra.mxu0 %v154
  %2377 = vmatmul.f32.gmra.mxu0 %v2319
  %v2378 = vpop.f32.mrf.mxu0
  %v2379 = vadd.f32 0.0, %v2378
  %2380 = vdwg.mxu0
  %2382 = vrot.lane.b32.xlu0 %v2379, 32
  %v2383 = vpop.permute.xlu0 %2382
  %v2385 = vadd.f32 %v147, %v2383
  %v2386 = vxor.u32 %v2385, 2147483648
  %v2387 = vmul.f32 %v2386, 1.442695
  %v2388 = vpow.pop %v2387
  %v2389 = vadd.f32 %v2388, 1.0
  %v2390 = vrcp.pop %v2389
  %v2391 = vmul.f32 %v2389, %v2390
  %v2392 = vsub.f32 1.0, %v2391
  %v2393 = vmul.f32 %v2390, %v2392
  %v2394 = vadd.f32 %v2390, %v2393
  %vm2395 = vweird.f32 %v2389
  %vm2396 = vweird.f32 %v2390
  %vm2397 = vmor %vm2395, %vm2396
  %v2398 = vsel %vm2397, %v2390, %v2394
  %v2399 = vand.u32 2147483647, %v2389
  %vm2400 = vcmp.eq.f32.partialorder %v2399, 8.507059e+37
  %v2401 = vand.u32 %v2389, 2147483648
  %v2402 = vor.u32 1.1754944e-38, %v2401
  %v2403 = vsel %vm2400, %v2402, %v2398
  %v2404 = vmul.f32 1.0, %v2403
  %2405 = vmatpush.msra.mxu0 0.0
  %2406 = vmatpush.msra.mxu0 0.0
  %2407 = vmatpush.msra.mxu0 0.0
  %2408 = vmatpush.msra.mxu0 0.0
  %2409 = vmatpush.msra.mxu0 0.0
  %2410 = vmatpush.msra.mxu0 0.0
  %2411 = vmatpush.msra.mxu0 0.0
  %2412 = vmatpush.msra.mxu0 0.0
  %2413 = vmatpush.msra.mxu0 0.0
  %2414 = vmatpush.msra.mxu0 0.0
  %2415 = vmatpush.msra.mxu0 0.0
  %2416 = vmatpush.msra.mxu0 0.0
  %2417 = vmatpush.msra.mxu0 %v162
  %2418 = vmatpush.msra.mxu0 %v161
  %2419 = vmatpush.msra.mxu0 %v160
  %2420 = vmatpush.msra.mxu0 %v159
  %2421 = vmatmul.f32.gmra.mxu0 %v2319
  %v2422 = vpop.f32.mrf.mxu0
  %v2423 = vadd.f32 0.0, %v2422
  %2424 = vdwg.mxu0
  %2426 = vrot.lane.b32.xlu0 %v2423, 64
  %v2427 = vpop.permute.xlu0 %2426
  %v2429 = vadd.f32 %v147, %v2427
  %v2430 = vtanh.pop %v2429
  %2431 = vmatpush.msra.mxu0 0.0
  %2432 = vmatpush.msra.mxu0 0.0
  %2433 = vmatpush.msra.mxu0 0.0
  %2434 = vmatpush.msra.mxu0 0.0
  %2435 = vmatpush.msra.mxu0 0.0
  %2436 = vmatpush.msra.mxu0 0.0
  %2437 = vmatpush.msra.mxu0 0.0
  %2438 = vmatpush.msra.mxu0 0.0
  %2439 = vmatpush.msra.mxu0 0.0
  %2440 = vmatpush.msra.mxu0 0.0
  %2441 = vmatpush.msra.mxu0 0.0
  %2442 = vmatpush.msra.mxu0 0.0
  %2443 = vmatpush.msra.mxu0 %v167
  %2444 = vmatpush.msra.mxu0 %v166
  %2445 = vmatpush.msra.mxu0 %v165
  %2446 = vmatpush.msra.mxu0 %v164
  %2447 = vmatmul.f32.gmra.mxu0 %v2319
  %v2448 = vpop.f32.mrf.mxu0
  %v2449 = vadd.f32 0.0, %v2448
  %2450 = vdwg.mxu0
  %2452 = vrot.lane.b32.xlu0 %v2449, 96
  %v2453 = vpop.permute.xlu0 %2452
  %v2455 = vadd.f32 %v147, %v2453
  %v2456 = vxor.u32 %v2455, 2147483648
  %v2457 = vmul.f32 %v2456, 1.442695
  %v2458 = vpow.pop %v2457
  %v2459 = vadd.f32 %v2458, 1.0
  %v2460 = vrcp.pop %v2459
  %v2461 = vmul.f32 %v2459, %v2460
  %v2462 = vsub.f32 1.0, %v2461
  %v2463 = vmul.f32 %v2460, %v2462
  %v2464 = vadd.f32 %v2460, %v2463
  %vm2465 = vweird.f32 %v2459
  %vm2466 = vweird.f32 %v2460
  %vm2467 = vmor %vm2465, %vm2466
  %v2468 = vsel %vm2467, %v2460, %v2464
  %v2469 = vand.u32 2147483647, %v2459
  %vm2470 = vcmp.eq.f32.partialorder %v2469, 8.507059e+37
  %v2471 = vand.u32 %v2459, 2147483648
  %v2472 = vor.u32 1.1754944e-38, %v2471
  %v2473 = vsel %vm2470, %v2472, %v2468
  %v2474 = vmul.f32 1.0, %v2473
  %v2475 = vmul.f32 %v2404, %v2309
  %2477 = vrot.lane.b32.xlu0 %v2430, 64
  %v2478 = vpop.permute.xlu0 %2477
  %v2480 = vmul.f32 %v2360, %v2478
  %2482 = vrot.lane.b32.xlu0 %v2480, 32
  %v2483 = vpop.permute.xlu0 %2482
  %v2485 = vadd.f32 %v2475, %v2483
  %v2486 = vtanh.pop %v2485
  %2488 = vrot.lane.b32.xlu0 %v2486, 64
  %v2489 = vpop.permute.xlu0 %2488
  %v2491 = vmul.f32 %v2474, %v2489
  %v2492 = vld [vmem:[%s4] sm:$0xff]
  %v2493 = vld [vmem:[%s4 + $0x8] sm:$0xff]
  %v2494 = vld [vmem:[%s4 + $0x10] sm:$0xff]
  %v2495 = vld [vmem:[%s4 + $0x18] sm:$0xff]
  %v2496 = vld [vmem:[%s5] sm:$0x1]
  %v2498 = vperm.slane %v2496, 0
  %2501 = vrot.lane.b32.xlu0 %v2491, 32
  %v2502 = vpop.permute.xlu0 %2501
  %v2503 = vsel %vm202, %v2502, 0
  %2505 = vmatpush.msra.mxu0 0.0
  %2506 = vmatpush.msra.mxu0 0.0
  %2507 = vmatpush.msra.mxu0 0.0
  %2508 = vmatpush.msra.mxu0 0.0
  %2509 = vmatpush.msra.mxu0 0.0
  %2510 = vmatpush.msra.mxu0 0.0
  %2511 = vmatpush.msra.mxu0 0.0
  %2512 = vmatpush.msra.mxu0 0.0
  %2513 = vmatpush.msra.mxu0 0.0
  %2514 = vmatpush.msra.mxu0 0.0
  %2515 = vmatpush.msra.mxu0 0.0
  %2516 = vmatpush.msra.mxu0 0.0
  %2517 = vmatpush.msra.mxu0 %v2495
  %2518 = vmatpush.msra.mxu0 %v2494
  %2519 = vmatpush.msra.mxu0 %v2493
  %2520 = vmatpush.msra.mxu0 %v2492
  %2521 = vmatmul.f32.gmra.mxu0 %v2503
  %v2522 = vpop.f32.mrf.mxu0
  %v2523 = vadd.f32 %v2498, %v2522
  %2524 = vdwg.mxu0
  %vm2525 = vcmask 31744
  %2526 = vst.msk [vmem:[%s6] sm:$0xff] %vm2525, %v2523
  // Predicated region
  $region26: #{_crnn_forward_impl.1} parent=0 // pred_check
    _
  $region27: #{_crnn_forward_impl.1} parent=0 // pred_check_branch
    %2528 = sbr.rel (0) target = $region29
  $region28: #{_crnn_forward_impl.1} parent=0 // pred_region
    _
  $region29: #{_crnn_forward_impl.1} parent=0 // pred_fallthru
    _
  // Predicated region
  $region30: #{_crnn_forward_impl.1} parent=0 // pred_check
    _
  $region31: #{_crnn_forward_impl.1} parent=0 // pred_check_branch
    %2530 = sbr.rel (0) target = $region33
  $region32: #{_crnn_forward_impl.1} parent=0 // pred_region
    _
  $region33: #{_crnn_forward_impl.1} parent=0 // pred_fallthru
    _

</llo_original>
